<compile_context>
chip_gen: v6e
topology: v6e:2x2x1
jax: 0.10.0
libtpu: 0.0.40
codegen_flags: <defaults>
</compile_context>

<pallas_src>
import jax
import jax.numpy as jnp
from jax.experimental import pallas as pl
from jax.experimental.pallas import tpu as pltpu

# Dimensions fixed by ef_extracter.__init__
C_IN = 1792     # backbone feature channels
C_OUT = 2048    # up_sample_2048 output channels
K = 100         # up_sample_100 output channels
BN_EPS = 1e-5

TD = 1024       # tile along the 2048-wide output-channel axis (grid of 2 -> even for v7x)


# ---------------------------------------------------------------------------
# Kernels
# ---------------------------------------------------------------------------
def ef_head_full_kernel(x_ref, w1q_ref, cs_ref, sh1_ref, a_ref, b_ref, out_ref):
    # int8 -> bf16 dequant on the VPU (int8 values are exact in bf16); hidden under DMA.
    w = w1q_ref[...].astype(jnp.bfloat16)                                    # (C_IN, TD)
    # Conv2d(1792, 2048, k=1, bias=False): bf16 x bf16 on the MXU, f32 accumulation.
    y = jnp.dot(x_ref[...], w, preferred_element_type=jnp.float32)          # (N, TD)
    # Per-column dequant scale (includes BN2048 scale) + BN2048 shift.
    y = y * cs_ref[...] + sh1_ref[...]                                      # (N, TD)
    # transpose(1,3) + Conv2d(1,100,k=1,bias=False) + BN2d(100):
    #   out[n, k, d] = y[n, d] * a[k] + b[k], stored in bf16 to halve the output stream.
    out = y[:, None, :] * a_ref[...][None, :, :] + b_ref[...][None, :, :]   # (N, K, TD)
    out_ref[...] = out.astype(out_ref.dtype)


def ef_head_compact_kernel(x_ref, w1q_ref, cs_ref, sh1_ref, y_ref):
    # Bandwidth-minimal form: only y = BN2048(conv1x1(x)); the 100x broadcast affine is
    # left to the downstream consumer (fuses into the MCAN backbone / next kernel).
    w = w1q_ref[...].astype(jnp.bfloat16)
    y = jnp.dot(x_ref[...], w, preferred_element_type=jnp.float32)
    y_ref[...] = y * cs_ref[...] + sh1_ref[...]


# ---------------------------------------------------------------------------
# Wrappers
# ---------------------------------------------------------------------------
def _common_in_specs(N):
    return [
        pl.BlockSpec((N, C_IN), lambda j: (0, 0)),     # x bf16 (resident each step)
        pl.BlockSpec((C_IN, TD), lambda j: (0, j)),    # W1 int8 tile (dominant stream)
        pl.BlockSpec((1, TD), lambda j: (0, j)),       # per-column dequant*BN2048 scale
        pl.BlockSpec((1, TD), lambda j: (0, j)),       # BN2048 shift
    ]


def ef_extracter_head(x_bf16, w1_q, colscale, shift1, a, b, out_dtype=jnp.bfloat16):
    """Full module output.
    x_bf16: (N, C_IN) bf16 backbone features.
    w1_q: (C_IN, C_OUT) int8 conv weight (BN2048 scale folded, per-column quantized).
    colscale: (1, C_OUT) f32 per-column dequant scale.  shift1: (1, C_OUT) f32 BN2048 shift.
    a, b: (K, 1) f32 folded conv(1->100)*BN100 scale / BN100 shift.
    Returns (N, K, C_OUT) in out_dtype (bf16 by default)."""
    N = x_bf16.shape[0]
    out_bytes = N * K * C_OUT * jnp.dtype(out_dtype).itemsize
    cost = pl.CostEstimate(
        flops=2 * N * C_IN * C_OUT + 2 * N * K * C_OUT,
        transcendentals=0,
        bytes_accessed=int(x_bf16.size * 2 + w1_q.size
                           + (colscale.size + shift1.size + a.size + b.size) * 4
                           + out_bytes),
    )
    return pl.pallas_call(
        ef_head_full_kernel,
        out_shape=jax.ShapeDtypeStruct((N, K, C_OUT), out_dtype),
        grid_spec=pltpu.PrefetchScalarGridSpec(
            num_scalar_prefetch=0,
            grid=(C_OUT // TD,),
            in_specs=_common_in_specs(N) + [
                pl.BlockSpec((K, 1), lambda j: (0, 0)),   # folded conv(1->100)*BN100 scale
                pl.BlockSpec((K, 1), lambda j: (0, 0)),   # BN100 shift
            ],
            out_specs=pl.BlockSpec((N, K, TD), lambda j: (0, 0, j)),
        ),
        compiler_params=pltpu.CompilerParams(
            dimension_semantics=("parallel",),
            vmem_limit_bytes=24 << 20,
        ),
        cost_estimate=cost,
    )(x_bf16, w1_q, colscale, shift1, a, b)


def ef_head_compact(x_bf16, w1_q, colscale, shift1):
    """Bandwidth-minimal head: returns y = BN2048(conv1x1(x)) as (N, C_OUT) f32; apply
    out[n,k,d] = y[n,d]*a[k]+b[k] in the downstream consumer (fuses for free)."""
    N = x_bf16.shape[0]
    cost = pl.CostEstimate(
        flops=2 * N * C_IN * C_OUT,
        transcendentals=0,
        bytes_accessed=int(x_bf16.size * 2 + w1_q.size
                           + (colscale.size + shift1.size) * 4 + N * C_OUT * 4),
    )
    return pl.pallas_call(
        ef_head_compact_kernel,
        out_shape=jax.ShapeDtypeStruct((N, C_OUT), jnp.float32),
        grid_spec=pltpu.PrefetchScalarGridSpec(
            num_scalar_prefetch=0,
            grid=(C_OUT // TD,),
            in_specs=_common_in_specs(N),
            out_specs=pl.BlockSpec((N, TD), lambda j: (0, j)),
        ),
        compiler_params=pltpu.CompilerParams(
            dimension_semantics=("parallel",),
            vmem_limit_bytes=24 << 20,
        ),
        cost_estimate=cost,
    )(x_bf16, w1_q, colscale, shift1)


# ---------------------------------------------------------------------------
# Offline (load-time) parameter folding / quantization
# ---------------------------------------------------------------------------
def fold_bn(gamma, beta, mean, var, eps=BN_EPS):
    scale = gamma / jnp.sqrt(var + eps)
    shift = beta - mean * scale
    return scale, shift


def quantize_w1(w1, bn_scale):
    """Fold BN2048 scale into the conv weight, then per-output-column symmetric int8."""
    w = w1 * bn_scale[None, :]                                   # (C_IN, C_OUT)
    absmax = jnp.max(jnp.abs(w), axis=0, keepdims=True)          # (1, C_OUT)
    qscale = jnp.maximum(absmax, 1e-12) / 127.0
    w_q = jnp.clip(jnp.round(w / qscale), -127, 127).astype(jnp.int8)
    return w_q, qscale.astype(jnp.float32)


if __name__ == "__main__":
    key = jax.random.PRNGKey(0)
    ks = jax.random.split(key, 12)
    N = 2

    # Stand-in for the EfficientNet backbone output (N, 1792, 1, 1), spatial squeezed.
    x = jax.random.normal(ks[0], (N, C_IN), dtype=jnp.float32)

    # Conv2d(1792, 2048, k=1, bias=False): torch weight (2048,1792,1,1) stored as (C_IN, C_OUT).
    w1 = jax.random.normal(ks[1], (C_IN, C_OUT), dtype=jnp.float32) * (1.0 / jnp.sqrt(C_IN))
    # BatchNorm2d(2048) inference parameters -> folded scale/shift.
    g1 = 1.0 + 0.1 * jax.random.normal(ks[2], (C_OUT,), dtype=jnp.float32)
    b1 = 0.1 * jax.random.normal(ks[3], (C_OUT,), dtype=jnp.float32)
    m1 = 0.1 * jax.random.normal(ks[4], (C_OUT,), dtype=jnp.float32)
    v1 = jnp.abs(jax.random.normal(ks[5], (C_OUT,), dtype=jnp.float32)) + 0.5
    scale1, shift1 = fold_bn(g1, b1, m1, v1)
    shift1 = shift1[None, :]                                     # (1, C_OUT)

    # Conv2d(1, 100, k=1, bias=False): torch weight (100,1,1,1) -> (K,1); BN100 folded.
    w100 = jax.random.normal(ks[6], (K, 1), dtype=jnp.float32)
    g2 = 1.0 + 0.1 * jax.random.normal(ks[7], (K,), dtype=jnp.float32)
    b2 = 0.1 * jax.random.normal(ks[8], (K,), dtype=jnp.float32)
    m2 = 0.1 * jax.random.normal(ks[9], (K,), dtype=jnp.float32)
    v2 = jnp.abs(jax.random.normal(ks[10], (K,), dtype=jnp.float32)) + 0.5
    scale100, shift100 = fold_bn(g2, b2, m2, v2)

    # ---- Offline constant folding + weight quantization ----
    w1_q, colscale = quantize_w1(w1, scale1)                     # int8 weights + (1, C_OUT) scale
    a = (w100[:, 0] * scale100)[:, None].astype(jnp.float32)     # (K, 1)
    b = shift100[:, None].astype(jnp.float32)                    # (K, 1)
    x_bf16 = x.astype(jnp.bfloat16)

    # ---- Run both kernels ----
    out = ef_extracter_head(x_bf16, w1_q, colscale, shift1, a, b)
    y_compact = ef_head_compact(x_bf16, w1_q, colscale, shift1)
    out, y_compact = jax.block_until_ready((out, y_compact))

    # ---- Reference over the SAME quantized operands (validates the kernels) ----
    w1_deq = w1_q.astype(jnp.float32) * colscale                 # (C_IN, C_OUT)
    y_ref = jnp.dot(x_bf16.astype(jnp.float32), w1_deq,
                    precision=jax.lax.Precision.HIGHEST) + shift1[0]
    ref_full = y_ref[:, None, :] * a[:, 0][None, :, None] + b[:, 0][None, :, None]

    assert out.shape == (N, K, C_OUT), out.shape
    assert y_compact.shape == (N, C_OUT), y_compact.shape
    out_f32 = out.astype(jnp.float32)
    assert jnp.allclose(out_f32, ref_full, atol=5e-2, rtol=5e-2), \
        float(jnp.max(jnp.abs(out_f32 - ref_full)))
    assert jnp.allclose(y_compact, y_ref, atol=2e-3, rtol=2e-3), \
        float(jnp.max(jnp.abs(y_compact - y_ref)))

    # ---- Separate fidelity check vs the unquantized f32 baseline (bf16 x, int8 W1, bf16 out) ----
    y_fp = jnp.dot(x, w1 * scale1[None, :], precision=jax.lax.Precision.HIGHEST) + shift1[0]
    full_fp = y_fp[:, None, :] * a[:, 0][None, :, None] + b[:, 0][None, :, None]
    rel_err = float(jnp.max(jnp.abs(out_f32 - full_fp)) / jnp.max(jnp.abs(full_fp)))
    assert rel_err < 0.07, rel_err

    print("KERNEL_OK")
</pallas_src>

<mosaic_0001>
module attributes {stable_mosaic.version = 11 : i64} {
  func.func @ef_head_full_kernel(%arg0: i32, %arg1: memref<2x1792xbf16, #tpu.memory_space<vmem>>, %arg2: memref<1792x1024xi8, #tpu.memory_space<vmem>>, %arg3: memref<1x1024xf32, #tpu.memory_space<vmem>>, %arg4: memref<1x1024xf32, #tpu.memory_space<vmem>>, %arg5: memref<100x1xf32, #tpu.memory_space<vmem>>, %arg6: memref<100x1xf32, #tpu.memory_space<vmem>>, %arg7: memref<2x100x1024xbf16, #tpu.memory_space<vmem>>) attributes {dimension_semantics = [#tpu.dimension_semantics<parallel>], iteration_bounds = array<i64: 2>, scalar_prefetch = 0 : i64, scratch_operands = 0 : i64, tpu.core_type = #tpu.core_type<tc>, window_params = [{pipeline_mode = #tpu.pipeline_mode<synchronous>, transform_indices = @transform_0, window_bounds = array<i64: 2, 1792>}, {transform_indices = @transform_1, window_bounds = array<i64: 1792, 1024>}, {transform_indices = @transform_2, window_bounds = array<i64: 1, 1024>}, {transform_indices = @transform_3, window_bounds = array<i64: 1, 1024>}, {pipeline_mode = #tpu.pipeline_mode<synchronous>, transform_indices = @transform_4, window_bounds = array<i64: 100, 1>}, {pipeline_mode = #tpu.pipeline_mode<synchronous>, transform_indices = @transform_5, window_bounds = array<i64: 100, 1>}, {transform_indices = @transform_6, window_bounds = array<i64: 2, 100, 1024>}]} {
    %c0 = arith.constant 0 : index
    %c0_0 = arith.constant 0 : index
    %0 = vector.load %arg2[%c0, %c0_0] : memref<1792x1024xi8, #tpu.memory_space<vmem>>, vector<1792x1024xi8>
    %1 = arith.sitofp %0 : vector<1792x1024xi8> to vector<1792x1024xbf16>
    %c0_1 = arith.constant 0 : index
    %c0_2 = arith.constant 0 : index
    %2 = vector.load %arg1[%c0_1, %c0_2] : memref<2x1792xbf16, #tpu.memory_space<vmem>>, vector<2x1792xbf16>
    %cst = arith.constant dense<0.000000e+00> : vector<2x1024xf32>
    %3 = tpu.matmul %2, %1, %cst {dimension_numbers = #tpu.dot_dimension_numbers<[1], [0], [0], [1], [0, 0, 1, 1], [], []>} : vector<2x1792xbf16>, vector<1792x1024xbf16>, vector<2x1024xf32> -> vector<2x1024xf32>
    %c0_3 = arith.constant 0 : index
    %c0_4 = arith.constant 0 : index
    %4 = vector.load %arg3[%c0_3, %c0_4] : memref<1x1024xf32, #tpu.memory_space<vmem>>, vector<1x1024xf32>
    %5 = vector.broadcast %4 : vector<1x1024xf32> to vector<2x1024xf32>
    %6 = arith.mulf %3, %5 : vector<2x1024xf32>
    %c0_5 = arith.constant 0 : index
    %c0_6 = arith.constant 0 : index
    %7 = vector.load %arg4[%c0_5, %c0_6] : memref<1x1024xf32, #tpu.memory_space<vmem>>, vector<1x1024xf32>
    %8 = vector.broadcast %7 : vector<1x1024xf32> to vector<2x1024xf32>
    %9 = arith.addf %6, %8 : vector<2x1024xf32>
    %10 = vector.shape_cast %9 : vector<2x1024xf32> to vector<2x1x1024xf32>
    %c0_7 = arith.constant 0 : index
    %c0_8 = arith.constant 0 : index
    %11 = vector.load %arg5[%c0_7, %c0_8] : memref<100x1xf32, #tpu.memory_space<vmem>>, vector<100x1xf32>
    %12 = vector.shape_cast %11 : vector<100x1xf32> to vector<1x100x1xf32>
    %13 = vector.broadcast %10 : vector<2x1x1024xf32> to vector<2x100x1024xf32>
    %14 = vector.broadcast %12 : vector<1x100x1xf32> to vector<2x100x1024xf32>
    %15 = arith.mulf %13, %14 : vector<2x100x1024xf32>
    %c0_9 = arith.constant 0 : index
    %c0_10 = arith.constant 0 : index
    %16 = vector.load %arg6[%c0_9, %c0_10] : memref<100x1xf32, #tpu.memory_space<vmem>>, vector<100x1xf32>
    %17 = vector.shape_cast %16 : vector<100x1xf32> to vector<1x100x1xf32>
    %18 = vector.broadcast %17 : vector<1x100x1xf32> to vector<2x100x1024xf32>
    %19 = arith.addf %15, %18 : vector<2x100x1024xf32>
    %20 = arith.truncf %19 : vector<2x100x1024xf32> to vector<2x100x1024xbf16>
    %c0_11 = arith.constant 0 : index
    %c0_12 = arith.constant 0 : index
    %c0_13 = arith.constant 0 : index
    %21 = vector.load %arg7[%c0_11, %c0_12, %c0_13] : memref<2x100x1024xbf16, #tpu.memory_space<vmem>>, vector<2x100x1024xbf16>
    tpu.vector_store %arg7[%c0_11, %c0_12, %c0_13], %20 {strides = array<i32>} : memref<2x100x1024xbf16, #tpu.memory_space<vmem>>, vector<2x100x1024xbf16>,
    return
  }
  func.func @transform_0(%arg0: i32) -> (i32, i32) {
    %c0_i32 = arith.constant 0 : i32
    %c0_i32_0 = arith.constant 0 : i32
    %c0_i32_1 = arith.constant 0 : i32
    return %c0_i32, %c0_i32_0 : i32, i32
  }
  func.func @transform_1(%arg0: i32) -> (i32, i32) {
    %c0_i32 = arith.constant 0 : i32
    %c0_i32_0 = arith.constant 0 : i32
    return %c0_i32, %arg0 : i32, i32
  }
  func.func @transform_2(%arg0: i32) -> (i32, i32) {
    %c0_i32 = arith.constant 0 : i32
    %c0_i32_0 = arith.constant 0 : i32
    return %c0_i32, %arg0 : i32, i32
  }
  func.func @transform_3(%arg0: i32) -> (i32, i32) {
    %c0_i32 = arith.constant 0 : i32
    %c0_i32_0 = arith.constant 0 : i32
    return %c0_i32, %arg0 : i32, i32
  }
  func.func @transform_4(%arg0: i32) -> (i32, i32) {
    %c0_i32 = arith.constant 0 : i32
    %c0_i32_0 = arith.constant 0 : i32
    %c0_i32_1 = arith.constant 0 : i32
    return %c0_i32, %c0_i32_0 : i32, i32
  }
  func.func @transform_5(%arg0: i32) -> (i32, i32) {
    %c0_i32 = arith.constant 0 : i32
    %c0_i32_0 = arith.constant 0 : i32
    %c0_i32_1 = arith.constant 0 : i32
    return %c0_i32, %c0_i32_0 : i32, i32
  }
  func.func @transform_6(%arg0: i32) -> (i32, i32, i32) {
    %c0_i32 = arith.constant 0 : i32
    %c0_i32_0 = arith.constant 0 : i32
    %c0_i32_1 = arith.constant 0 : i32
    return %c0_i32, %c0_i32_0, %arg0 : i32, i32, i32
  }
}

</mosaic_0001>

<llo_original>
// kernel: tpu_custom_call.1
$region0: #{tpu_custom_call.1}
  #allocation0 [shape = 'u32[]', space=smem, size = 0x4, offset = 0x4, fixed_abs, tag = 'smem constant byte address 0x4 - core index']
  #allocation1 [shape = 'u32[144,128]{1,0:T(1,128)}', space=vmem, size = 0x12000, scoped, tag = 'internal scratch']
  %s0 = inlined_call_operand.hbm [shape: bf16[2,1792], index: 0, kind: input, shape index: {}]
  %s1 = inlined_call_operand.hbm [shape: s8[1792,2048], index: 1, kind: input, shape index: {}]
  %s2 = inlined_call_operand.hbm [shape: f32[1,2048], index: 2, kind: input, shape index: {}]
  %s3 = inlined_call_operand.hbm [shape: f32[1,2048], index: 3, kind: input, shape index: {}]
  %s4 = inlined_call_operand.vmem [shape: f32[100,1], index: 4, kind: input, shape index: {}]
  %s5 = inlined_call_operand.vmem [shape: f32[100,1], index: 5, kind: input, shape index: {}]
  %s6 = inlined_call_operand.vmem [shape: bf16[2,100,2048], index: 6, kind: output, shape index: {}]
  %s7 = sld [smem:[#allocation0]]
  $region92: #{tpu_custom_call.1} parent=0
    _
  %s9 = ssub.s32 1, %s7
  %s10 = scalar_select 0, %s9, %s7
  $region1: #{tpu_custom_call.1} parent=0
    #allocation2 [shape = 'u8[7168]{0}', space=vmem, size = 0x1c00, scoped, tag = 'input window, operand 0, single buffered']
    #allocation3 [shape = 's32[2]{0}', space=sflag, size = 0x8, scoped, tag = 'scoped memory for tpu_custom_call.1']
    #allocation4 [shape = 'u8[3670016]{0}', space=vmem, size = 0x380000, scoped, tag = 'input window, operand 1']
    #allocation5 [shape = 's32[2]{0}', space=sflag, size = 0x8, scoped, tag = 'scoped memory for tpu_custom_call.1']
    #allocation6 [shape = 'u8[8192]{0}', space=vmem, size = 0x2000, scoped, tag = 'input window, operand 2']
    #allocation7 [shape = 'u8[8192]{0}', space=vmem, size = 0x2000, scoped, tag = 'input window, operand 3']
    #allocation8 [shape = 's32[2]{0}', space=sflag, size = 0x8, scoped, tag = 'scoped memory for tpu_custom_call.1']
    #allocation9 [shape = 'u8[851968]{0}', space=vmem, size = 0xd0000, scoped, tag = 'output window, operand 0']
    %11 = vsyncpa [#allocation3], 0
    %12 = vsyncpa [#allocation5], 0
    %s13 = scalar_lea.sflag [#allocation5], 1
    %14 = vsyncpa %s13, 0
    %15 = vsyncpa [#allocation8], 0
    %s16 = scalar_lea.sflag [#allocation8], 1
    %17 = vsyncpa %s16, 0
    loop: start=0, step=1, limit=4
    $region2: #{tpu_custom_call.1} parent=1 // loop_pre_header
      _
    $region3: #{tpu_custom_call.1} parent=1 // loop_header
      %s19 = sphi 0, %s23
      %p20 = scmp.ge.s32.totalorder %s19, 4
      %s27 = sphi 0, %s27
      %s29 = sphi 0, %s27
      %s30 = sphi 0, %s29
      %s44 = sphi 0, %s30
      %s50 = sphi 0, %s52
      %s53 = sphi 0, %s50
      %s54 = sphi 0, %s53
      %s70 = sphi 0, %s54
      %s76 = sphi 0, %s78
      %s79 = sphi 0, %s76
      %s80 = sphi 0, %s79
      %s96 = sphi 0, %s80
      %s102 = sphi 0, %s104
      %s105 = sphi 0, %s102
      %s106 = sphi 0, %s105
      %s122 = sphi 0, %s106
      %s126 = sphi 0, %s126
      %s128 = sphi 0, %s126
      %s129 = sphi 0, %s128
      %s143 = sphi 0, %s129
      %s147 = sphi 0, %s147
      %s149 = sphi 0, %s147
      %s150 = sphi 0, %s149
      %s164 = sphi 0, %s150
      %s170 = sphi 0, %s172
      %s173 = sphi 0, %s170
      %s174 = sphi 0, %s173
      %s190 = sphi 0, %s174
    $region4: #{tpu_custom_call.1} parent=1 // loop_header_branch
      %22 = sbr.rel (%p20) target = $region8
    $region5: #{tpu_custom_call.1} parent=1 // loop_body
      %s24 = ssub.s32 %s19, 1
      %s25 = ssub.s32 %s19, 2
      %s26 = sadd.s32 %s19, 1
      %s28 = sadd.s32 %s27, 1
      %p31 = scmp.eq.s32.totalorder %s19, 1
      %p32 = scmp.ne.s32.totalorder %s27, %s29
      %p33 = scmp.eq.s32.totalorder %s19, 0
      %p34 = por %p32, %p33
      %p35 = scmp.ne.s32.totalorder %s27, %s29
      %p36 = scmp.eq.s32.totalorder %s24, 1
      %p37 = por %p35, %p36
      %p38 = scmp.ne.s32.totalorder %s29, %s30
      %p39 = scmp.eq.s32.totalorder %s24, 0
      %p40 = por %p38, %p39
      %p41 = scmp.ne.s32.totalorder %s29, %s30
      %p42 = scmp.eq.s32.totalorder %s25, 1
      %p43 = por %p41, %p42
      %p45 = scmp.ne.s32.totalorder %s30, %s44
      %p46 = scmp.eq.s32.totalorder %s25, 0
      %p47 = por %p45, %p46
      %s48 = ssub.s32 %s19, %s26
      %p49 = scmp.eq.s32.totalorder %s48, 0
      %s51 = sadd.s32 %s50, 1
      %s52 = scalar_select %p49, %s50, %s51
      %p55 = pneg %p49
      %p56 = scmp.eq.s32.totalorder %s19, 1
      %p57 = por %p55, %p56
      %p58 = scmp.ne.s32.totalorder %s50, %s53
      %p59 = scmp.eq.s32.totalorder %s19, 0
      %p60 = por %p58, %p59
      %p61 = scmp.ne.s32.totalorder %s50, %s53
      %p62 = scmp.eq.s32.totalorder %s24, 1
      %p63 = por %p61, %p62
      %p64 = scmp.ne.s32.totalorder %s53, %s54
      %p65 = scmp.eq.s32.totalorder %s24, 0
      %p66 = por %p64, %p65
      %p67 = scmp.ne.s32.totalorder %s53, %s54
      %p68 = scmp.eq.s32.totalorder %s25, 1
      %p69 = por %p67, %p68
      %p71 = scmp.ne.s32.totalorder %s54, %s70
      %p72 = scmp.eq.s32.totalorder %s25, 0
      %p73 = por %p71, %p72
      %s74 = ssub.s32 %s19, %s26
      %p75 = scmp.eq.s32.totalorder %s74, 0
      %s77 = sadd.s32 %s76, 1
      %s78 = scalar_select %p75, %s76, %s77
      %p81 = pneg %p75
      %p82 = scmp.eq.s32.totalorder %s19, 1
      %p83 = por %p81, %p82
      %p84 = scmp.ne.s32.totalorder %s76, %s79
      %p85 = scmp.eq.s32.totalorder %s19, 0
      %p86 = por %p84, %p85
      %p87 = scmp.ne.s32.totalorder %s76, %s79
      %p88 = scmp.eq.s32.totalorder %s24, 1
      %p89 = por %p87, %p88
      %p90 = scmp.ne.s32.totalorder %s79, %s80
      %p91 = scmp.eq.s32.totalorder %s24, 0
      %p92 = por %p90, %p91
      %p93 = scmp.ne.s32.totalorder %s79, %s80
      %p94 = scmp.eq.s32.totalorder %s25, 1
      %p95 = por %p93, %p94
      %p97 = scmp.ne.s32.totalorder %s80, %s96
      %p98 = scmp.eq.s32.totalorder %s25, 0
      %p99 = por %p97, %p98
      %s100 = ssub.s32 %s19, %s26
      %p101 = scmp.eq.s32.totalorder %s100, 0
      %s103 = sadd.s32 %s102, 1
      %s104 = scalar_select %p101, %s102, %s103
      %p107 = pneg %p101
      %p108 = scmp.eq.s32.totalorder %s19, 1
      %p109 = por %p107, %p108
      %p110 = scmp.ne.s32.totalorder %s102, %s105
      %p111 = scmp.eq.s32.totalorder %s19, 0
      %p112 = por %p110, %p111
      %p113 = scmp.ne.s32.totalorder %s102, %s105
      %p114 = scmp.eq.s32.totalorder %s24, 1
      %p115 = por %p113, %p114
      %p116 = scmp.ne.s32.totalorder %s105, %s106
      %p117 = scmp.eq.s32.totalorder %s24, 0
      %p118 = por %p116, %p117
      %p119 = scmp.ne.s32.totalorder %s105, %s106
      %p120 = scmp.eq.s32.totalorder %s25, 1
      %p121 = por %p119, %p120
      %p123 = scmp.ne.s32.totalorder %s106, %s122
      %p124 = scmp.eq.s32.totalorder %s25, 0
      %p125 = por %p123, %p124
      %s127 = sadd.s32 %s126, 1
      %p130 = scmp.eq.s32.totalorder %s19, 1
      %p131 = scmp.ne.s32.totalorder %s126, %s128
      %p132 = scmp.eq.s32.totalorder %s19, 0
      %p133 = por %p131, %p132
      %p134 = scmp.ne.s32.totalorder %s126, %s128
      %p135 = scmp.eq.s32.totalorder %s24, 1
      %p136 = por %p134, %p135
      %p137 = scmp.ne.s32.totalorder %s128, %s129
      %p138 = scmp.eq.s32.totalorder %s24, 0
      %p139 = por %p137, %p138
      %p140 = scmp.ne.s32.totalorder %s128, %s129
      %p141 = scmp.eq.s32.totalorder %s25, 1
      %p142 = por %p140, %p141
      %p144 = scmp.ne.s32.totalorder %s129, %s143
      %p145 = scmp.eq.s32.totalorder %s25, 0
      %p146 = por %p144, %p145
      %s148 = sadd.s32 %s147, 1
      %p151 = scmp.eq.s32.totalorder %s19, 1
      %p152 = scmp.ne.s32.totalorder %s147, %s149
      %p153 = scmp.eq.s32.totalorder %s19, 0
      %p154 = por %p152, %p153
      %p155 = scmp.ne.s32.totalorder %s147, %s149
      %p156 = scmp.eq.s32.totalorder %s24, 1
      %p157 = por %p155, %p156
      %p158 = scmp.ne.s32.totalorder %s149, %s150
      %p159 = scmp.eq.s32.totalorder %s24, 0
      %p160 = por %p158, %p159
      %p161 = scmp.ne.s32.totalorder %s149, %s150
      %p162 = scmp.eq.s32.totalorder %s25, 1
      %p163 = por %p161, %p162
      %p165 = scmp.ne.s32.totalorder %s150, %s164
      %p166 = scmp.eq.s32.totalorder %s25, 0
      %p167 = por %p165, %p166
      %s168 = ssub.s32 %s19, %s26
      %p169 = scmp.eq.s32.totalorder %s168, 0
      %s171 = sadd.s32 %s170, 1
      %s172 = scalar_select %p169, %s170, %s171
      %p175 = pneg %p169
      %p176 = scmp.eq.s32.totalorder %s19, 1
      %p177 = por %p175, %p176
      %p178 = scmp.ne.s32.totalorder %s170, %s173
      %p179 = scmp.eq.s32.totalorder %s19, 0
      %p180 = por %p178, %p179
      %p181 = scmp.ne.s32.totalorder %s170, %s173
      %p182 = scmp.eq.s32.totalorder %s24, 1
      %p183 = por %p181, %p182
      %p184 = scmp.ne.s32.totalorder %s173, %s174
      %p185 = scmp.eq.s32.totalorder %s24, 0
      %p186 = por %p184, %p185
      %p187 = scmp.ne.s32.totalorder %s173, %s174
      %p188 = scmp.eq.s32.totalorder %s25, 1
      %p189 = por %p187, %p188
      %p191 = scmp.ne.s32.totalorder %s174, %s190
      %p192 = scmp.eq.s32.totalorder %s25, 0
      %p193 = por %p191, %p192
      %p194 = scmp.le.s32.totalorder 1, %s19
      %p195 = scmp.lt.s32.totalorder %s19, 3
      %p196 = pnand %p194, %p195
      %p197 = pneg %p196
      // Predicated region
      $region9: #{tpu_custom_call.1} parent=5 // pred_check
        _
      $region10: #{tpu_custom_call.1} parent=5 // pred_check_branch
        %199 = sbr.rel (%p196) target = $region12
      $region11: #{tpu_custom_call.1} parent=5 // pred_region
        %s200 = ssub.s32 %s19, 1
        // Predicated region
        $region13: #{tpu_custom_call.1} parent=11 // pred_check
          %p201 = pneg %p40
        $region14: #{tpu_custom_call.1} parent=11 // pred_check_branch
          %203 = sbr.rel (%p201) target = $region16
        $region15: #{tpu_custom_call.1} parent=11 // pred_region
          %s205 = ssub.s32 224, 224
          %206 = vsyncadd [#allocation3], %s205
          %s208 = sshll.u32 [#allocation2], 4
          %s209 = int_to_ptr.vmem [resolvable:$true] %s208
          %211 = dma.hbm_to_vmem [thread:$0]  %s0, 224, %s209, [#allocation3]
        $region16: #{tpu_custom_call.1} parent=11 // pred_fallthru
          _
        // Predicated region
        $region17: #{tpu_custom_call.1} parent=11 // pred_check
          %p212 = pneg %p139
        $region18: #{tpu_custom_call.1} parent=11 // pred_check_branch
          %214 = sbr.rel (%p212) target = $region20
        $region19: #{tpu_custom_call.1} parent=11 // pred_region
          _
        $region20: #{tpu_custom_call.1} parent=11 // pred_fallthru
          _
        // Predicated region
        $region21: #{tpu_custom_call.1} parent=11 // pred_check
          %p215 = pneg %p160
        $region22: #{tpu_custom_call.1} parent=11 // pred_check_branch
          %217 = sbr.rel (%p215) target = $region24
        $region23: #{tpu_custom_call.1} parent=11 // pred_region
          _
        $region24: #{tpu_custom_call.1} parent=11 // pred_fallthru
          _
      $region12: #{tpu_custom_call.1} parent=5 // pred_fallthru
        _
      %p218 = scmp.lt.s32.totalorder %s19, 2
      // Predicated region
      $region25: #{tpu_custom_call.1} parent=5 // pred_check
        %p219 = pneg %p218
      $region26: #{tpu_custom_call.1} parent=5 // pred_check_branch
        %221 = sbr.rel (%p219) target = $region28
      $region27: #{tpu_custom_call.1} parent=5 // pred_region
        // Predicated region
        $region29: #{tpu_custom_call.1} parent=27 // pred_check
          %p222 = pneg %p60
        $region30: #{tpu_custom_call.1} parent=27 // pred_check_branch
          %224 = sbr.rel (%p222) target = $region32
        $region31: #{tpu_custom_call.1} parent=27 // pred_region
          %s225 = sand.u32 %s19, 1
          %s226 = scalar_lea.sflag [#allocation5], %s225
          %s227 = sand.u32 %s50, 1
          %s228 = smul.addr %s227, 3584
          %s229 = scalar_lea.vmem [#allocation4], %s228
          %s230 = smul.u32 8, %s19
          %s232 = ssub.s32 57344, 57344
          %233 = vsyncadd %s226, %s232
          %s234 = smul.addr %s230, 128
          %s235 = scalar_lea.hbm %s1, %s234
          %s236 = sshll.u32 %s229, 4
          %s237 = int_to_ptr.vmem [resolvable:$true] %s236
          %242 = dma.hbm_to_vmem [thread:$0]  %s235, 57344, %s237, %s226, 2048, 1024, 64
        $region32: #{tpu_custom_call.1} parent=27 // pred_fallthru
          _
        // Predicated region
        $region33: #{tpu_custom_call.1} parent=27 // pred_check
          %p243 = pneg %p86
        $region34: #{tpu_custom_call.1} parent=27 // pred_check_branch
          %245 = sbr.rel (%p243) target = $region36
        $region35: #{tpu_custom_call.1} parent=27 // pred_region
          %s246 = sand.u32 %s19, 1
          %s247 = scalar_lea.sflag [#allocation5], %s246
          %s248 = sand.u32 %s76, 1
          %s249 = smul.addr %s248, 8
          %s250 = scalar_lea.vmem [#allocation6], %s249
          %s251 = smul.u32 8, %s19
          %s253 = ssub.s32 128, 128
          %254 = vsyncadd %s247, %s253
          %s255 = smul.addr %s251, 16
          %s256 = scalar_lea.hbm %s2, %s255
          %s258 = sshll.u32 %s250, 4
          %s259 = int_to_ptr.vmem [resolvable:$true] %s258
          %261 = dma.hbm_to_vmem [thread:$0]  %s256, 128, %s259, %s247
        $region36: #{tpu_custom_call.1} parent=27 // pred_fallthru
          _
        // Predicated region
        $region37: #{tpu_custom_call.1} parent=27 // pred_check
          %p262 = pneg %p112
        $region38: #{tpu_custom_call.1} parent=27 // pred_check_branch
          %264 = sbr.rel (%p262) target = $region40
        $region39: #{tpu_custom_call.1} parent=27 // pred_region
          %s265 = sand.u32 %s102, 1
          %s266 = scalar_lea.sflag [#allocation8], %s265
          %s267 = sand.u32 %s102, 1
          %s268 = smul.addr %s267, 8
          %s269 = scalar_lea.vmem [#allocation7], %s268
          %s270 = smul.u32 8, %s19
          %s272 = ssub.s32 128, 128
          %273 = vsyncadd %s266, %s272
          %s274 = smul.addr %s270, 16
          %s275 = scalar_lea.hbm %s3, %s274
          %s277 = sshll.u32 %s269, 4
          %s278 = int_to_ptr.vmem [resolvable:$true] %s277
          %280 = dma.hbm_to_vmem [thread:$0]  %s275, 128, %s278, %s266
        $region40: #{tpu_custom_call.1} parent=27 // pred_fallthru
          _
      $region28: #{tpu_custom_call.1} parent=5 // pred_fallthru
        _
      %p281 = scmp.le.s32.totalorder 1, %s19
      %p282 = scmp.lt.s32.totalorder %s19, 3
      %p283 = pnand %p281, %p282
      %p284 = pneg %p283
      // Predicated region
      $region41: #{tpu_custom_call.1} parent=5 // pred_check
        _
      $region42: #{tpu_custom_call.1} parent=5 // pred_check_branch
        %286 = sbr.rel (%p283) target = $region44
      $region43: #{tpu_custom_call.1} parent=5 // pred_region
        %s287 = ssub.s32 %s19, 1
        // Predicated region
        $region45: #{tpu_custom_call.1} parent=43 // pred_check
          %p288 = pneg %p40
        $region46: #{tpu_custom_call.1} parent=43 // pred_check_branch
          %290 = sbr.rel (%p288) target = $region48
        $region47: #{tpu_custom_call.1} parent=43 // pred_region
          %291 = dma.done [#allocation3], 224
        $region48: #{tpu_custom_call.1} parent=43 // pred_fallthru
          _
        %s292 = sand.u32 %s24, 1
        %s293 = scalar_lea.sflag [#allocation5], %s292
        %s294 = sand.u32 %s53, 1
        %s295 = smul.addr %s294, 3584
        %s296 = scalar_lea.vmem [#allocation4], %s295
        // Predicated region
        $region49: #{tpu_custom_call.1} parent=43 // pred_check
          %p297 = pneg %p66
        $region50: #{tpu_custom_call.1} parent=43 // pred_check_branch
          %299 = sbr.rel (%p297) target = $region52
        $region51: #{tpu_custom_call.1} parent=43 // pred_region
          %300 = dma.done %s293, 57344
        $region52: #{tpu_custom_call.1} parent=43 // pred_fallthru
          _
        %s301 = sand.u32 %s24, 1
        %s302 = scalar_lea.sflag [#allocation5], %s301
        %s303 = sand.u32 %s79, 1
        %s304 = smul.addr %s303, 8
        %s305 = scalar_lea.vmem [#allocation6], %s304
        // Predicated region
        $region53: #{tpu_custom_call.1} parent=43 // pred_check
          %p306 = pneg %p92
        $region54: #{tpu_custom_call.1} parent=43 // pred_check_branch
          %308 = sbr.rel (%p306) target = $region56
        $region55: #{tpu_custom_call.1} parent=43 // pred_region
          %309 = dma.done %s302, 128
        $region56: #{tpu_custom_call.1} parent=43 // pred_fallthru
          _
        %s310 = sand.u32 %s105, 1
        %s311 = scalar_lea.sflag [#allocation8], %s310
        %s312 = sand.u32 %s105, 1
        %s313 = smul.addr %s312, 8
        %s314 = scalar_lea.vmem [#allocation7], %s313
        // Predicated region
        $region57: #{tpu_custom_call.1} parent=43 // pred_check
          %p315 = pneg %p118
        $region58: #{tpu_custom_call.1} parent=43 // pred_check_branch
          %317 = sbr.rel (%p315) target = $region60
        $region59: #{tpu_custom_call.1} parent=43 // pred_region
          %318 = dma.done %s311, 128
        $region60: #{tpu_custom_call.1} parent=43 // pred_fallthru
          _
        %p319 = pneg %p40
        %p320 = pneg %p37
        %s321 = sand.u32 %s24, 1
        %s322 = scalar_lea.sflag [#allocation5], %s321
        %s323 = sand.u32 %s53, 1
        %s324 = smul.addr %s323, 3584
        %s325 = scalar_lea.vmem [#allocation4], %s324
        %p326 = pneg %p66
        %p327 = pneg %p63
        %s328 = sand.u32 %s24, 1
        %s329 = scalar_lea.sflag [#allocation5], %s328
        %s330 = sand.u32 %s79, 1
        %s331 = smul.addr %s330, 8
        %s332 = scalar_lea.vmem [#allocation6], %s331
        %p333 = pneg %p92
        %p334 = pneg %p89
        %s335 = sand.u32 %s105, 1
        %s336 = scalar_lea.sflag [#allocation8], %s335
        %s337 = sand.u32 %s105, 1
        %s338 = smul.addr %s337, 8
        %s339 = scalar_lea.vmem [#allocation7], %s338
        %p340 = pneg %p118
        %p341 = pneg %p115
        %p342 = pneg %p139
        %p343 = pneg %p136
        %p344 = pneg %p160
        %p345 = pneg %p157
        %p346 = pneg %p186
        %p347 = pneg %p183
        %s348 = sand.u32 %s173, 1
        %s349 = sand.u32 %s173, 1
        %s350 = smul.addr %s349, 832
        %s351 = scalar_lea.vmem [#allocation9], %s350
        %s352 = smul.u32 8, %s24
        %s353 = smul.u32 8, %s24
        %s354 = smul.u32 8, %s24
        %s355 = smul.u32 8, %s24
        %v356 = vld [vmem:[%s296] sm:$0xff]
        %v357 = vld [vmem:[%s296 + $0x8] sm:$0xff]
        %v358 = vld [vmem:[%s296 + $0x10] sm:$0xff]
        %v359 = vld [vmem:[%s296 + $0x18] sm:$0xff]
        %v360 = vld [vmem:[%s296 + $0x20] sm:$0xff]
        %v361 = vld [vmem:[%s296 + $0x28] sm:$0xff]
        %v362 = vld [vmem:[%s296 + $0x30] sm:$0xff]
        %v363 = vld [vmem:[%s296 + $0x38] sm:$0xff]
        %v364 = vld [vmem:[%s296 + $0x40] sm:$0xff]
        %v365 = vld [vmem:[%s296 + $0x48] sm:$0xff]
        %v366 = vld [vmem:[%s296 + $0x50] sm:$0xff]
        %v367 = vld [vmem:[%s296 + $0x58] sm:$0xff]
        %v368 = vld [vmem:[%s296 + $0x60] sm:$0xff]
        %v369 = vld [vmem:[%s296 + $0x68] sm:$0xff]
        %v370 = vld [vmem:[%s296 + $0x70] sm:$0xff]
        %v371 = vld [vmem:[%s296 + $0x78] sm:$0xff]
        %v372 = vld [vmem:[%s296 + $0x80] sm:$0xff]
        %v373 = vld [vmem:[%s296 + $0x88] sm:$0xff]
        %v374 = vld [vmem:[%s296 + $0x90] sm:$0xff]
        %v375 = vld [vmem:[%s296 + $0x98] sm:$0xff]
        %v376 = vld [vmem:[%s296 + $0xa0] sm:$0xff]
        %v377 = vld [vmem:[%s296 + $0xa8] sm:$0xff]
        %v378 = vld [vmem:[%s296 + $0xb0] sm:$0xff]
        %v379 = vld [vmem:[%s296 + $0xb8] sm:$0xff]
        %v380 = vld [vmem:[%s296 + $0xc0] sm:$0xff]
        %v381 = vld [vmem:[%s296 + $0xc8] sm:$0xff]
        %v382 = vld [vmem:[%s296 + $0xd0] sm:$0xff]
        %v383 = vld [vmem:[%s296 + $0xd8] sm:$0xff]
        %v384 = vld [vmem:[%s296 + $0xe0] sm:$0xff]
        %v385 = vld [vmem:[%s296 + $0xe8] sm:$0xff]
        %v386 = vld [vmem:[%s296 + $0xf0] sm:$0xff]
        %v387 = vld [vmem:[%s296 + $0xf8] sm:$0xff]
        %v388 = vld [vmem:[%s296 + $0x100] sm:$0xff]
        %v389 = vld [vmem:[%s296 + $0x108] sm:$0xff]
        %v390 = vld [vmem:[%s296 + $0x110] sm:$0xff]
        %v391 = vld [vmem:[%s296 + $0x118] sm:$0xff]
        %v392 = vld [vmem:[%s296 + $0x120] sm:$0xff]
        %v393 = vld [vmem:[%s296 + $0x128] sm:$0xff]
        %v394 = vld [vmem:[%s296 + $0x130] sm:$0xff]
        %v395 = vld [vmem:[%s296 + $0x138] sm:$0xff]
        %v396 = vld [vmem:[%s296 + $0x140] sm:$0xff]
        %v397 = vld [vmem:[%s296 + $0x148] sm:$0xff]
        %v398 = vld [vmem:[%s296 + $0x150] sm:$0xff]
        %v399 = vld [vmem:[%s296 + $0x158] sm:$0xff]
        %v400 = vld [vmem:[%s296 + $0x160] sm:$0xff]
        %v401 = vld [vmem:[%s296 + $0x168] sm:$0xff]
        %v402 = vld [vmem:[%s296 + $0x170] sm:$0xff]
        %v403 = vld [vmem:[%s296 + $0x178] sm:$0xff]
        %v404 = vld [vmem:[%s296 + $0x180] sm:$0xff]
        %v405 = vld [vmem:[%s296 + $0x188] sm:$0xff]
        %v406 = vld [vmem:[%s296 + $0x190] sm:$0xff]
        %v407 = vld [vmem:[%s296 + $0x198] sm:$0xff]
        %v408 = vld [vmem:[%s296 + $0x1a0] sm:$0xff]
        %v409 = vld [vmem:[%s296 + $0x1a8] sm:$0xff]
        %v410 = vld [vmem:[%s296 + $0x1b0] sm:$0xff]
        %v411 = vld [vmem:[%s296 + $0x1b8] sm:$0xff]
        %v412 = vld [vmem:[%s296 + $0x1c0] sm:$0xff]
        %v413 = vld [vmem:[%s296 + $0x1c8] sm:$0xff]
        %v414 = vld [vmem:[%s296 + $0x1d0] sm:$0xff]
        %v415 = vld [vmem:[%s296 + $0x1d8] sm:$0xff]
        %v416 = vld [vmem:[%s296 + $0x1e0] sm:$0xff]
        %v417 = vld [vmem:[%s296 + $0x1e8] sm:$0xff]
        %v418 = vld [vmem:[%s296 + $0x1f0] sm:$0xff]
        %v419 = vld [vmem:[%s296 + $0x1f8] sm:$0xff]
        %v420 = vld [vmem:[%s296 + $0x200] sm:$0xff]
        %v421 = vld [vmem:[%s296 + $0x208] sm:$0xff]
        %v422 = vld [vmem:[%s296 + $0x210] sm:$0xff]
        %v423 = vld [vmem:[%s296 + $0x218] sm:$0xff]
        %v424 = vld [vmem:[%s296 + $0x220] sm:$0xff]
        %v425 = vld [vmem:[%s296 + $0x228] sm:$0xff]
        %v426 = vld [vmem:[%s296 + $0x230] sm:$0xff]
        %v427 = vld [vmem:[%s296 + $0x238] sm:$0xff]
        %v428 = vld [vmem:[%s296 + $0x240] sm:$0xff]
        %v429 = vld [vmem:[%s296 + $0x248] sm:$0xff]
        %v430 = vld [vmem:[%s296 + $0x250] sm:$0xff]
        %v431 = vld [vmem:[%s296 + $0x258] sm:$0xff]
        %v432 = vld [vmem:[%s296 + $0x260] sm:$0xff]
        %v433 = vld [vmem:[%s296 + $0x268] sm:$0xff]
        %v434 = vld [vmem:[%s296 + $0x270] sm:$0xff]
        %v435 = vld [vmem:[%s296 + $0x278] sm:$0xff]
        %v436 = vld [vmem:[%s296 + $0x280] sm:$0xff]
        %v437 = vld [vmem:[%s296 + $0x288] sm:$0xff]
        %v438 = vld [vmem:[%s296 + $0x290] sm:$0xff]
        %v439 = vld [vmem:[%s296 + $0x298] sm:$0xff]
        %v440 = vld [vmem:[%s296 + $0x2a0] sm:$0xff]
        %v441 = vld [vmem:[%s296 + $0x2a8] sm:$0xff]
        %v442 = vld [vmem:[%s296 + $0x2b0] sm:$0xff]
        %v443 = vld [vmem:[%s296 + $0x2b8] sm:$0xff]
        %v444 = vld [vmem:[%s296 + $0x2c0] sm:$0xff]
        %v445 = vld [vmem:[%s296 + $0x2c8] sm:$0xff]
        %v446 = vld [vmem:[%s296 + $0x2d0] sm:$0xff]
        %v447 = vld [vmem:[%s296 + $0x2d8] sm:$0xff]
        %v448 = vld [vmem:[%s296 + $0x2e0] sm:$0xff]
        %v449 = vld [vmem:[%s296 + $0x2e8] sm:$0xff]
        %v450 = vld [vmem:[%s296 + $0x2f0] sm:$0xff]
        %v451 = vld [vmem:[%s296 + $0x2f8] sm:$0xff]
        %v452 = vld [vmem:[%s296 + $0x300] sm:$0xff]
        %v453 = vld [vmem:[%s296 + $0x308] sm:$0xff]
        %v454 = vld [vmem:[%s296 + $0x310] sm:$0xff]
        %v455 = vld [vmem:[%s296 + $0x318] sm:$0xff]
        %v456 = vld [vmem:[%s296 + $0x320] sm:$0xff]
        %v457 = vld [vmem:[%s296 + $0x328] sm:$0xff]
        %v458 = vld [vmem:[%s296 + $0x330] sm:$0xff]
        %v459 = vld [vmem:[%s296 + $0x338] sm:$0xff]
        %v460 = vld [vmem:[%s296 + $0x340] sm:$0xff]
        %v461 = vld [vmem:[%s296 + $0x348] sm:$0xff]
        %v462 = vld [vmem:[%s296 + $0x350] sm:$0xff]
        %v463 = vld [vmem:[%s296 + $0x358] sm:$0xff]
        %v464 = vld [vmem:[%s296 + $0x360] sm:$0xff]
        %v465 = vld [vmem:[%s296 + $0x368] sm:$0xff]
        %v466 = vld [vmem:[%s296 + $0x370] sm:$0xff]
        %v467 = vld [vmem:[%s296 + $0x378] sm:$0xff]
        %v468 = vld [vmem:[%s296 + $0x380] sm:$0xff]
        %v469 = vld [vmem:[%s296 + $0x388] sm:$0xff]
        %v470 = vld [vmem:[%s296 + $0x390] sm:$0xff]
        %v471 = vld [vmem:[%s296 + $0x398] sm:$0xff]
        %v472 = vld [vmem:[%s296 + $0x3a0] sm:$0xff]
        %v473 = vld [vmem:[%s296 + $0x3a8] sm:$0xff]
        %v474 = vld [vmem:[%s296 + $0x3b0] sm:$0xff]
        %v475 = vld [vmem:[%s296 + $0x3b8] sm:$0xff]
        %v476 = vld [vmem:[%s296 + $0x3c0] sm:$0xff]
        %v477 = vld [vmem:[%s296 + $0x3c8] sm:$0xff]
        %v478 = vld [vmem:[%s296 + $0x3d0] sm:$0xff]
        %v479 = vld [vmem:[%s296 + $0x3d8] sm:$0xff]
        %v480 = vld [vmem:[%s296 + $0x3e0] sm:$0xff]
        %v481 = vld [vmem:[%s296 + $0x3e8] sm:$0xff]
        %v482 = vld [vmem:[%s296 + $0x3f0] sm:$0xff]
        %v483 = vld [vmem:[%s296 + $0x3f8] sm:$0xff]
        %v484 = vld [vmem:[%s296 + $0x400] sm:$0xff]
        %v485 = vld [vmem:[%s296 + $0x408] sm:$0xff]
        %v486 = vld [vmem:[%s296 + $0x410] sm:$0xff]
        %v487 = vld [vmem:[%s296 + $0x418] sm:$0xff]
        %v488 = vld [vmem:[%s296 + $0x420] sm:$0xff]
        %v489 = vld [vmem:[%s296 + $0x428] sm:$0xff]
        %v490 = vld [vmem:[%s296 + $0x430] sm:$0xff]
        %v491 = vld [vmem:[%s296 + $0x438] sm:$0xff]
        %v492 = vld [vmem:[%s296 + $0x440] sm:$0xff]
        %v493 = vld [vmem:[%s296 + $0x448] sm:$0xff]
        %v494 = vld [vmem:[%s296 + $0x450] sm:$0xff]
        %v495 = vld [vmem:[%s296 + $0x458] sm:$0xff]
        %v496 = vld [vmem:[%s296 + $0x460] sm:$0xff]
        %v497 = vld [vmem:[%s296 + $0x468] sm:$0xff]
        %v498 = vld [vmem:[%s296 + $0x470] sm:$0xff]
        %v499 = vld [vmem:[%s296 + $0x478] sm:$0xff]
        %v500 = vld [vmem:[%s296 + $0x480] sm:$0xff]
        %v501 = vld [vmem:[%s296 + $0x488] sm:$0xff]
        %v502 = vld [vmem:[%s296 + $0x490] sm:$0xff]
        %v503 = vld [vmem:[%s296 + $0x498] sm:$0xff]
        %v504 = vld [vmem:[%s296 + $0x4a0] sm:$0xff]
        %v505 = vld [vmem:[%s296 + $0x4a8] sm:$0xff]
        %v506 = vld [vmem:[%s296 + $0x4b0] sm:$0xff]
        %v507 = vld [vmem:[%s296 + $0x4b8] sm:$0xff]
        %v508 = vld [vmem:[%s296 + $0x4c0] sm:$0xff]
        %v509 = vld [vmem:[%s296 + $0x4c8] sm:$0xff]
        %v510 = vld [vmem:[%s296 + $0x4d0] sm:$0xff]
        %v511 = vld [vmem:[%s296 + $0x4d8] sm:$0xff]
        %v512 = vld [vmem:[%s296 + $0x4e0] sm:$0xff]
        %v513 = vld [vmem:[%s296 + $0x4e8] sm:$0xff]
        %v514 = vld [vmem:[%s296 + $0x4f0] sm:$0xff]
        %v515 = vld [vmem:[%s296 + $0x4f8] sm:$0xff]
        %v516 = vld [vmem:[%s296 + $0x500] sm:$0xff]
        %v517 = vld [vmem:[%s296 + $0x508] sm:$0xff]
        %v518 = vld [vmem:[%s296 + $0x510] sm:$0xff]
        %v519 = vld [vmem:[%s296 + $0x518] sm:$0xff]
        %v520 = vld [vmem:[%s296 + $0x520] sm:$0xff]
        %v521 = vld [vmem:[%s296 + $0x528] sm:$0xff]
        %v522 = vld [vmem:[%s296 + $0x530] sm:$0xff]
        %v523 = vld [vmem:[%s296 + $0x538] sm:$0xff]
        %v524 = vld [vmem:[%s296 + $0x540] sm:$0xff]
        %v525 = vld [vmem:[%s296 + $0x548] sm:$0xff]
        %v526 = vld [vmem:[%s296 + $0x550] sm:$0xff]
        %v527 = vld [vmem:[%s296 + $0x558] sm:$0xff]
        %v528 = vld [vmem:[%s296 + $0x560] sm:$0xff]
        %v529 = vld [vmem:[%s296 + $0x568] sm:$0xff]
        %v530 = vld [vmem:[%s296 + $0x570] sm:$0xff]
        %v531 = vld [vmem:[%s296 + $0x578] sm:$0xff]
        %v532 = vld [vmem:[%s296 + $0x580] sm:$0xff]
        %v533 = vld [vmem:[%s296 + $0x588] sm:$0xff]
        %v534 = vld [vmem:[%s296 + $0x590] sm:$0xff]
        %v535 = vld [vmem:[%s296 + $0x598] sm:$0xff]
        %v536 = vld [vmem:[%s296 + $0x5a0] sm:$0xff]
        %v537 = vld [vmem:[%s296 + $0x5a8] sm:$0xff]
        %v538 = vld [vmem:[%s296 + $0x5b0] sm:$0xff]
        %v539 = vld [vmem:[%s296 + $0x5b8] sm:$0xff]
        %v540 = vld [vmem:[%s296 + $0x5c0] sm:$0xff]
        %v541 = vld [vmem:[%s296 + $0x5c8] sm:$0xff]
        %v542 = vld [vmem:[%s296 + $0x5d0] sm:$0xff]
        %v543 = vld [vmem:[%s296 + $0x5d8] sm:$0xff]
        %v544 = vld [vmem:[%s296 + $0x5e0] sm:$0xff]
        %v545 = vld [vmem:[%s296 + $0x5e8] sm:$0xff]
        %v546 = vld [vmem:[%s296 + $0x5f0] sm:$0xff]
        %v547 = vld [vmem:[%s296 + $0x5f8] sm:$0xff]
        %v548 = vld [vmem:[%s296 + $0x600] sm:$0xff]
        %v549 = vld [vmem:[%s296 + $0x608] sm:$0xff]
        %v550 = vld [vmem:[%s296 + $0x610] sm:$0xff]
        %v551 = vld [vmem:[%s296 + $0x618] sm:$0xff]
        %v552 = vld [vmem:[%s296 + $0x620] sm:$0xff]
        %v553 = vld [vmem:[%s296 + $0x628] sm:$0xff]
        %v554 = vld [vmem:[%s296 + $0x630] sm:$0xff]
        %v555 = vld [vmem:[%s296 + $0x638] sm:$0xff]
        %v556 = vld [vmem:[%s296 + $0x640] sm:$0xff]
        %v557 = vld [vmem:[%s296 + $0x648] sm:$0xff]
        %v558 = vld [vmem:[%s296 + $0x650] sm:$0xff]
        %v559 = vld [vmem:[%s296 + $0x658] sm:$0xff]
        %v560 = vld [vmem:[%s296 + $0x660] sm:$0xff]
        %v561 = vld [vmem:[%s296 + $0x668] sm:$0xff]
        %v562 = vld [vmem:[%s296 + $0x670] sm:$0xff]
        %v563 = vld [vmem:[%s296 + $0x678] sm:$0xff]
        %v564 = vld [vmem:[%s296 + $0x680] sm:$0xff]
        %v565 = vld [vmem:[%s296 + $0x688] sm:$0xff]
        %v566 = vld [vmem:[%s296 + $0x690] sm:$0xff]
        %v567 = vld [vmem:[%s296 + $0x698] sm:$0xff]
        %v568 = vld [vmem:[%s296 + $0x6a0] sm:$0xff]
        %v569 = vld [vmem:[%s296 + $0x6a8] sm:$0xff]
        %v570 = vld [vmem:[%s296 + $0x6b0] sm:$0xff]
        %v571 = vld [vmem:[%s296 + $0x6b8] sm:$0xff]
        %v572 = vld [vmem:[%s296 + $0x6c0] sm:$0xff]
        %v573 = vld [vmem:[%s296 + $0x6c8] sm:$0xff]
        %v574 = vld [vmem:[%s296 + $0x6d0] sm:$0xff]
        %v575 = vld [vmem:[%s296 + $0x6d8] sm:$0xff]
        %v576 = vld [vmem:[%s296 + $0x6e0] sm:$0xff]
        %v577 = vld [vmem:[%s296 + $0x6e8] sm:$0xff]
        %v578 = vld [vmem:[%s296 + $0x6f0] sm:$0xff]
        %v579 = vld [vmem:[%s296 + $0x6f8] sm:$0xff]
        %v580 = vld [vmem:[%s296 + $0x700] sm:$0xff]
        %v581 = vld [vmem:[%s296 + $0x708] sm:$0xff]
        %v582 = vld [vmem:[%s296 + $0x710] sm:$0xff]
        %v583 = vld [vmem:[%s296 + $0x718] sm:$0xff]
        %v584 = vld [vmem:[%s296 + $0x720] sm:$0xff]
        %v585 = vld [vmem:[%s296 + $0x728] sm:$0xff]
        %v586 = vld [vmem:[%s296 + $0x730] sm:$0xff]
        %v587 = vld [vmem:[%s296 + $0x738] sm:$0xff]
        %v588 = vld [vmem:[%s296 + $0x740] sm:$0xff]
        %v589 = vld [vmem:[%s296 + $0x748] sm:$0xff]
        %v590 = vld [vmem:[%s296 + $0x750] sm:$0xff]
        %v591 = vld [vmem:[%s296 + $0x758] sm:$0xff]
        %v592 = vld [vmem:[%s296 + $0x760] sm:$0xff]
        %v593 = vld [vmem:[%s296 + $0x768] sm:$0xff]
        %v594 = vld [vmem:[%s296 + $0x770] sm:$0xff]
        %v595 = vld [vmem:[%s296 + $0x778] sm:$0xff]
        %v596 = vld [vmem:[%s296 + $0x780] sm:$0xff]
        %v597 = vld [vmem:[%s296 + $0x788] sm:$0xff]
        %v598 = vld [vmem:[%s296 + $0x790] sm:$0xff]
        %v599 = vld [vmem:[%s296 + $0x798] sm:$0xff]
        %v600 = vld [vmem:[%s296 + $0x7a0] sm:$0xff]
        %v601 = vld [vmem:[%s296 + $0x7a8] sm:$0xff]
        %v602 = vld [vmem:[%s296 + $0x7b0] sm:$0xff]
        %v603 = vld [vmem:[%s296 + $0x7b8] sm:$0xff]
        %v604 = vld [vmem:[%s296 + $0x7c0] sm:$0xff]
        %v605 = vld [vmem:[%s296 + $0x7c8] sm:$0xff]
        %v606 = vld [vmem:[%s296 + $0x7d0] sm:$0xff]
        %v607 = vld [vmem:[%s296 + $0x7d8] sm:$0xff]
        %v608 = vld [vmem:[%s296 + $0x7e0] sm:$0xff]
        %v609 = vld [vmem:[%s296 + $0x7e8] sm:$0xff]
        %v610 = vld [vmem:[%s296 + $0x7f0] sm:$0xff]
        %v611 = vld [vmem:[%s296 + $0x7f8] sm:$0xff]
        %v612 = vld [vmem:[%s296 + $0x800] sm:$0xff]
        %v613 = vld [vmem:[%s296 + $0x808] sm:$0xff]
        %v614 = vld [vmem:[%s296 + $0x810] sm:$0xff]
        %v615 = vld [vmem:[%s296 + $0x818] sm:$0xff]
        %v616 = vld [vmem:[%s296 + $0x820] sm:$0xff]
        %v617 = vld [vmem:[%s296 + $0x828] sm:$0xff]
        %v618 = vld [vmem:[%s296 + $0x830] sm:$0xff]
        %v619 = vld [vmem:[%s296 + $0x838] sm:$0xff]
        %v620 = vld [vmem:[%s296 + $0x840] sm:$0xff]
        %v621 = vld [vmem:[%s296 + $0x848] sm:$0xff]
        %v622 = vld [vmem:[%s296 + $0x850] sm:$0xff]
        %v623 = vld [vmem:[%s296 + $0x858] sm:$0xff]
        %v624 = vld [vmem:[%s296 + $0x860] sm:$0xff]
        %v625 = vld [vmem:[%s296 + $0x868] sm:$0xff]
        %v626 = vld [vmem:[%s296 + $0x870] sm:$0xff]
        %v627 = vld [vmem:[%s296 + $0x878] sm:$0xff]
        %v628 = vld [vmem:[%s296 + $0x880] sm:$0xff]
        %v629 = vld [vmem:[%s296 + $0x888] sm:$0xff]
        %v630 = vld [vmem:[%s296 + $0x890] sm:$0xff]
        %v631 = vld [vmem:[%s296 + $0x898] sm:$0xff]
        %v632 = vld [vmem:[%s296 + $0x8a0] sm:$0xff]
        %v633 = vld [vmem:[%s296 + $0x8a8] sm:$0xff]
        %v634 = vld [vmem:[%s296 + $0x8b0] sm:$0xff]
        %v635 = vld [vmem:[%s296 + $0x8b8] sm:$0xff]
        %v636 = vld [vmem:[%s296 + $0x8c0] sm:$0xff]
        %v637 = vld [vmem:[%s296 + $0x8c8] sm:$0xff]
        %v638 = vld [vmem:[%s296 + $0x8d0] sm:$0xff]
        %v639 = vld [vmem:[%s296 + $0x8d8] sm:$0xff]
        %v640 = vld [vmem:[%s296 + $0x8e0] sm:$0xff]
        %v641 = vld [vmem:[%s296 + $0x8e8] sm:$0xff]
        %v642 = vld [vmem:[%s296 + $0x8f0] sm:$0xff]
        %v643 = vld [vmem:[%s296 + $0x8f8] sm:$0xff]
        %v644 = vld [vmem:[%s296 + $0x900] sm:$0xff]
        %v645 = vld [vmem:[%s296 + $0x908] sm:$0xff]
        %v646 = vld [vmem:[%s296 + $0x910] sm:$0xff]
        %v647 = vld [vmem:[%s296 + $0x918] sm:$0xff]
        %v648 = vld [vmem:[%s296 + $0x920] sm:$0xff]
        %v649 = vld [vmem:[%s296 + $0x928] sm:$0xff]
        %v650 = vld [vmem:[%s296 + $0x930] sm:$0xff]
        %v651 = vld [vmem:[%s296 + $0x938] sm:$0xff]
        %v652 = vld [vmem:[%s296 + $0x940] sm:$0xff]
        %v653 = vld [vmem:[%s296 + $0x948] sm:$0xff]
        %v654 = vld [vmem:[%s296 + $0x950] sm:$0xff]
        %v655 = vld [vmem:[%s296 + $0x958] sm:$0xff]
        %v656 = vld [vmem:[%s296 + $0x960] sm:$0xff]
        %v657 = vld [vmem:[%s296 + $0x968] sm:$0xff]
        %v658 = vld [vmem:[%s296 + $0x970] sm:$0xff]
        %v659 = vld [vmem:[%s296 + $0x978] sm:$0xff]
        %v660 = vld [vmem:[%s296 + $0x980] sm:$0xff]
        %v661 = vld [vmem:[%s296 + $0x988] sm:$0xff]
        %v662 = vld [vmem:[%s296 + $0x990] sm:$0xff]
        %v663 = vld [vmem:[%s296 + $0x998] sm:$0xff]
        %v664 = vld [vmem:[%s296 + $0x9a0] sm:$0xff]
        %v665 = vld [vmem:[%s296 + $0x9a8] sm:$0xff]
        %v666 = vld [vmem:[%s296 + $0x9b0] sm:$0xff]
        %v667 = vld [vmem:[%s296 + $0x9b8] sm:$0xff]
        %v668 = vld [vmem:[%s296 + $0x9c0] sm:$0xff]
        %v669 = vld [vmem:[%s296 + $0x9c8] sm:$0xff]
        %v670 = vld [vmem:[%s296 + $0x9d0] sm:$0xff]
        %v671 = vld [vmem:[%s296 + $0x9d8] sm:$0xff]
        %v672 = vld [vmem:[%s296 + $0x9e0] sm:$0xff]
        %v673 = vld [vmem:[%s296 + $0x9e8] sm:$0xff]
        %v674 = vld [vmem:[%s296 + $0x9f0] sm:$0xff]
        %v675 = vld [vmem:[%s296 + $0x9f8] sm:$0xff]
        %v676 = vld [vmem:[%s296 + $0xa00] sm:$0xff]
        %v677 = vld [vmem:[%s296 + $0xa08] sm:$0xff]
        %v678 = vld [vmem:[%s296 + $0xa10] sm:$0xff]
        %v679 = vld [vmem:[%s296 + $0xa18] sm:$0xff]
        %v680 = vld [vmem:[%s296 + $0xa20] sm:$0xff]
        %v681 = vld [vmem:[%s296 + $0xa28] sm:$0xff]
        %v682 = vld [vmem:[%s296 + $0xa30] sm:$0xff]
        %v683 = vld [vmem:[%s296 + $0xa38] sm:$0xff]
        %v684 = vld [vmem:[%s296 + $0xa40] sm:$0xff]
        %v685 = vld [vmem:[%s296 + $0xa48] sm:$0xff]
        %v686 = vld [vmem:[%s296 + $0xa50] sm:$0xff]
        %v687 = vld [vmem:[%s296 + $0xa58] sm:$0xff]
        %v688 = vld [vmem:[%s296 + $0xa60] sm:$0xff]
        %v689 = vld [vmem:[%s296 + $0xa68] sm:$0xff]
        %v690 = vld [vmem:[%s296 + $0xa70] sm:$0xff]
        %v691 = vld [vmem:[%s296 + $0xa78] sm:$0xff]
        %v692 = vld [vmem:[%s296 + $0xa80] sm:$0xff]
        %v693 = vld [vmem:[%s296 + $0xa88] sm:$0xff]
        %v694 = vld [vmem:[%s296 + $0xa90] sm:$0xff]
        %v695 = vld [vmem:[%s296 + $0xa98] sm:$0xff]
        %v696 = vld [vmem:[%s296 + $0xaa0] sm:$0xff]
        %v697 = vld [vmem:[%s296 + $0xaa8] sm:$0xff]
        %v698 = vld [vmem:[%s296 + $0xab0] sm:$0xff]
        %v699 = vld [vmem:[%s296 + $0xab8] sm:$0xff]
        %v700 = vld [vmem:[%s296 + $0xac0] sm:$0xff]
        %v701 = vld [vmem:[%s296 + $0xac8] sm:$0xff]
        %v702 = vld [vmem:[%s296 + $0xad0] sm:$0xff]
        %v703 = vld [vmem:[%s296 + $0xad8] sm:$0xff]
        %v704 = vld [vmem:[%s296 + $0xae0] sm:$0xff]
        %v705 = vld [vmem:[%s296 + $0xae8] sm:$0xff]
        %v706 = vld [vmem:[%s296 + $0xaf0] sm:$0xff]
        %v707 = vld [vmem:[%s296 + $0xaf8] sm:$0xff]
        %v708 = vld [vmem:[%s296 + $0xb00] sm:$0xff]
        %v709 = vld [vmem:[%s296 + $0xb08] sm:$0xff]
        %v710 = vld [vmem:[%s296 + $0xb10] sm:$0xff]
        %v711 = vld [vmem:[%s296 + $0xb18] sm:$0xff]
        %v712 = vld [vmem:[%s296 + $0xb20] sm:$0xff]
        %v713 = vld [vmem:[%s296 + $0xb28] sm:$0xff]
        %v714 = vld [vmem:[%s296 + $0xb30] sm:$0xff]
        %v715 = vld [vmem:[%s296 + $0xb38] sm:$0xff]
        %v716 = vld [vmem:[%s296 + $0xb40] sm:$0xff]
        %v717 = vld [vmem:[%s296 + $0xb48] sm:$0xff]
        %v718 = vld [vmem:[%s296 + $0xb50] sm:$0xff]
        %v719 = vld [vmem:[%s296 + $0xb58] sm:$0xff]
        %v720 = vld [vmem:[%s296 + $0xb60] sm:$0xff]
        %v721 = vld [vmem:[%s296 + $0xb68] sm:$0xff]
        %v722 = vld [vmem:[%s296 + $0xb70] sm:$0xff]
        %v723 = vld [vmem:[%s296 + $0xb78] sm:$0xff]
        %v724 = vld [vmem:[%s296 + $0xb80] sm:$0xff]
        %v725 = vld [vmem:[%s296 + $0xb88] sm:$0xff]
        %v726 = vld [vmem:[%s296 + $0xb90] sm:$0xff]
        %v727 = vld [vmem:[%s296 + $0xb98] sm:$0xff]
        %v728 = vld [vmem:[%s296 + $0xba0] sm:$0xff]
        %v729 = vld [vmem:[%s296 + $0xba8] sm:$0xff]
        %v730 = vld [vmem:[%s296 + $0xbb0] sm:$0xff]
        %v731 = vld [vmem:[%s296 + $0xbb8] sm:$0xff]
        %v732 = vld [vmem:[%s296 + $0xbc0] sm:$0xff]
        %v733 = vld [vmem:[%s296 + $0xbc8] sm:$0xff]
        %v734 = vld [vmem:[%s296 + $0xbd0] sm:$0xff]
        %v735 = vld [vmem:[%s296 + $0xbd8] sm:$0xff]
        %v736 = vld [vmem:[%s296 + $0xbe0] sm:$0xff]
        %v737 = vld [vmem:[%s296 + $0xbe8] sm:$0xff]
        %v738 = vld [vmem:[%s296 + $0xbf0] sm:$0xff]
        %v739 = vld [vmem:[%s296 + $0xbf8] sm:$0xff]
        %v740 = vld [vmem:[%s296 + $0xc00] sm:$0xff]
        %v741 = vld [vmem:[%s296 + $0xc08] sm:$0xff]
        %v742 = vld [vmem:[%s296 + $0xc10] sm:$0xff]
        %v743 = vld [vmem:[%s296 + $0xc18] sm:$0xff]
        %v744 = vld [vmem:[%s296 + $0xc20] sm:$0xff]
        %v745 = vld [vmem:[%s296 + $0xc28] sm:$0xff]
        %v746 = vld [vmem:[%s296 + $0xc30] sm:$0xff]
        %v747 = vld [vmem:[%s296 + $0xc38] sm:$0xff]
        %v748 = vld [vmem:[%s296 + $0xc40] sm:$0xff]
        %v749 = vld [vmem:[%s296 + $0xc48] sm:$0xff]
        %v750 = vld [vmem:[%s296 + $0xc50] sm:$0xff]
        %v751 = vld [vmem:[%s296 + $0xc58] sm:$0xff]
        %v752 = vld [vmem:[%s296 + $0xc60] sm:$0xff]
        %v753 = vld [vmem:[%s296 + $0xc68] sm:$0xff]
        %v754 = vld [vmem:[%s296 + $0xc70] sm:$0xff]
        %v755 = vld [vmem:[%s296 + $0xc78] sm:$0xff]
        %v756 = vld [vmem:[%s296 + $0xc80] sm:$0xff]
        %v757 = vld [vmem:[%s296 + $0xc88] sm:$0xff]
        %v758 = vld [vmem:[%s296 + $0xc90] sm:$0xff]
        %v759 = vld [vmem:[%s296 + $0xc98] sm:$0xff]
        %v760 = vld [vmem:[%s296 + $0xca0] sm:$0xff]
        %v761 = vld [vmem:[%s296 + $0xca8] sm:$0xff]
        %v762 = vld [vmem:[%s296 + $0xcb0] sm:$0xff]
        %v763 = vld [vmem:[%s296 + $0xcb8] sm:$0xff]
        %v764 = vld [vmem:[%s296 + $0xcc0] sm:$0xff]
        %v765 = vld [vmem:[%s296 + $0xcc8] sm:$0xff]
        %v766 = vld [vmem:[%s296 + $0xcd0] sm:$0xff]
        %v767 = vld [vmem:[%s296 + $0xcd8] sm:$0xff]
        %v768 = vld [vmem:[%s296 + $0xce0] sm:$0xff]
        %v769 = vld [vmem:[%s296 + $0xce8] sm:$0xff]
        %v770 = vld [vmem:[%s296 + $0xcf0] sm:$0xff]
        %v771 = vld [vmem:[%s296 + $0xcf8] sm:$0xff]
        %v772 = vld [vmem:[%s296 + $0xd00] sm:$0xff]
        %v773 = vld [vmem:[%s296 + $0xd08] sm:$0xff]
        %v774 = vld [vmem:[%s296 + $0xd10] sm:$0xff]
        %v775 = vld [vmem:[%s296 + $0xd18] sm:$0xff]
        %v776 = vld [vmem:[%s296 + $0xd20] sm:$0xff]
        %v777 = vld [vmem:[%s296 + $0xd28] sm:$0xff]
        %v778 = vld [vmem:[%s296 + $0xd30] sm:$0xff]
        %v779 = vld [vmem:[%s296 + $0xd38] sm:$0xff]
        %v780 = vld [vmem:[%s296 + $0xd40] sm:$0xff]
        %v781 = vld [vmem:[%s296 + $0xd48] sm:$0xff]
        %v782 = vld [vmem:[%s296 + $0xd50] sm:$0xff]
        %v783 = vld [vmem:[%s296 + $0xd58] sm:$0xff]
        %v784 = vld [vmem:[%s296 + $0xd60] sm:$0xff]
        %v785 = vld [vmem:[%s296 + $0xd68] sm:$0xff]
        %v786 = vld [vmem:[%s296 + $0xd70] sm:$0xff]
        %v787 = vld [vmem:[%s296 + $0xd78] sm:$0xff]
        %v788 = vld [vmem:[%s296 + $0xd80] sm:$0xff]
        %v789 = vld [vmem:[%s296 + $0xd88] sm:$0xff]
        %v790 = vld [vmem:[%s296 + $0xd90] sm:$0xff]
        %v791 = vld [vmem:[%s296 + $0xd98] sm:$0xff]
        %v792 = vld [vmem:[%s296 + $0xda0] sm:$0xff]
        %v793 = vld [vmem:[%s296 + $0xda8] sm:$0xff]
        %v794 = vld [vmem:[%s296 + $0xdb0] sm:$0xff]
        %v795 = vld [vmem:[%s296 + $0xdb8] sm:$0xff]
        %v796 = vld [vmem:[%s296 + $0xdc0] sm:$0xff]
        %v797 = vld [vmem:[%s296 + $0xdc8] sm:$0xff]
        %v798 = vld [vmem:[%s296 + $0xdd0] sm:$0xff]
        %v799 = vld [vmem:[%s296 + $0xdd8] sm:$0xff]
        %v800 = vld [vmem:[%s296 + $0xde0] sm:$0xff]
        %v801 = vld [vmem:[%s296 + $0xde8] sm:$0xff]
        %v802 = vld [vmem:[%s296 + $0xdf0] sm:$0xff]
        %v803 = vld [vmem:[%s296 + $0xdf8] sm:$0xff]
        %v804 = vunpack.c.l.s8.bf16 %v356
        %v805 = vunpack.c.l.s8.bf16 %v357
        %v806 = vunpack.c.l.s8.bf16 %v358
        %v807 = vunpack.c.l.s8.bf16 %v359
        %v808 = vunpack.c.l.s8.bf16 %v360
        %v809 = vunpack.c.l.s8.bf16 %v361
        %v810 = vunpack.c.l.s8.bf16 %v362
        %v811 = vunpack.c.l.s8.bf16 %v363
        %v812 = vunpack.c.h.s8.bf16 %v356
        %v813 = vunpack.c.h.s8.bf16 %v357
        %v814 = vunpack.c.h.s8.bf16 %v358
        %v815 = vunpack.c.h.s8.bf16 %v359
        %v816 = vunpack.c.h.s8.bf16 %v360
        %v817 = vunpack.c.h.s8.bf16 %v361
        %v818 = vunpack.c.h.s8.bf16 %v362
        %v819 = vunpack.c.h.s8.bf16 %v363
        %v820 = vunpack.c.l.s8.bf16 %v364
        %v821 = vunpack.c.l.s8.bf16 %v365
        %v822 = vunpack.c.l.s8.bf16 %v366
        %v823 = vunpack.c.l.s8.bf16 %v367
        %v824 = vunpack.c.l.s8.bf16 %v368
        %v825 = vunpack.c.l.s8.bf16 %v369
        %v826 = vunpack.c.l.s8.bf16 %v370
        %v827 = vunpack.c.l.s8.bf16 %v371
        %v828 = vunpack.c.h.s8.bf16 %v364
        %v829 = vunpack.c.h.s8.bf16 %v365
        %v830 = vunpack.c.h.s8.bf16 %v366
        %v831 = vunpack.c.h.s8.bf16 %v367
        %v832 = vunpack.c.h.s8.bf16 %v368
        %v833 = vunpack.c.h.s8.bf16 %v369
        %v834 = vunpack.c.h.s8.bf16 %v370
        %v835 = vunpack.c.h.s8.bf16 %v371
        %v836 = vunpack.c.l.s8.bf16 %v372
        %v837 = vunpack.c.l.s8.bf16 %v373
        %v838 = vunpack.c.l.s8.bf16 %v374
        %v839 = vunpack.c.l.s8.bf16 %v375
        %v840 = vunpack.c.l.s8.bf16 %v376
        %v841 = vunpack.c.l.s8.bf16 %v377
        %v842 = vunpack.c.l.s8.bf16 %v378
        %v843 = vunpack.c.l.s8.bf16 %v379
        %v844 = vunpack.c.h.s8.bf16 %v372
        %v845 = vunpack.c.h.s8.bf16 %v373
        %v846 = vunpack.c.h.s8.bf16 %v374
        %v847 = vunpack.c.h.s8.bf16 %v375
        %v848 = vunpack.c.h.s8.bf16 %v376
        %v849 = vunpack.c.h.s8.bf16 %v377
        %v850 = vunpack.c.h.s8.bf16 %v378
        %v851 = vunpack.c.h.s8.bf16 %v379
        %v852 = vunpack.c.l.s8.bf16 %v380
        %v853 = vunpack.c.l.s8.bf16 %v381
        %v854 = vunpack.c.l.s8.bf16 %v382
        %v855 = vunpack.c.l.s8.bf16 %v383
        %v856 = vunpack.c.l.s8.bf16 %v384
        %v857 = vunpack.c.l.s8.bf16 %v385
        %v858 = vunpack.c.l.s8.bf16 %v386
        %v859 = vunpack.c.l.s8.bf16 %v387
        %v860 = vunpack.c.h.s8.bf16 %v380
        %v861 = vunpack.c.h.s8.bf16 %v381
        %v862 = vunpack.c.h.s8.bf16 %v382
        %v863 = vunpack.c.h.s8.bf16 %v383
        %v864 = vunpack.c.h.s8.bf16 %v384
        %v865 = vunpack.c.h.s8.bf16 %v385
        %v866 = vunpack.c.h.s8.bf16 %v386
        %v867 = vunpack.c.h.s8.bf16 %v387
        %v868 = vunpack.c.l.s8.bf16 %v388
        %v869 = vunpack.c.l.s8.bf16 %v389
        %v870 = vunpack.c.l.s8.bf16 %v390
        %v871 = vunpack.c.l.s8.bf16 %v391
        %v872 = vunpack.c.l.s8.bf16 %v392
        %v873 = vunpack.c.l.s8.bf16 %v393
        %v874 = vunpack.c.l.s8.bf16 %v394
        %v875 = vunpack.c.l.s8.bf16 %v395
        %v876 = vunpack.c.h.s8.bf16 %v388
        %v877 = vunpack.c.h.s8.bf16 %v389
        %v878 = vunpack.c.h.s8.bf16 %v390
        %v879 = vunpack.c.h.s8.bf16 %v391
        %v880 = vunpack.c.h.s8.bf16 %v392
        %v881 = vunpack.c.h.s8.bf16 %v393
        %v882 = vunpack.c.h.s8.bf16 %v394
        %v883 = vunpack.c.h.s8.bf16 %v395
        %v884 = vunpack.c.l.s8.bf16 %v396
        %v885 = vunpack.c.l.s8.bf16 %v397
        %v886 = vunpack.c.l.s8.bf16 %v398
        %v887 = vunpack.c.l.s8.bf16 %v399
        %v888 = vunpack.c.l.s8.bf16 %v400
        %v889 = vunpack.c.l.s8.bf16 %v401
        %v890 = vunpack.c.l.s8.bf16 %v402
        %v891 = vunpack.c.l.s8.bf16 %v403
        %v892 = vunpack.c.h.s8.bf16 %v396
        %v893 = vunpack.c.h.s8.bf16 %v397
        %v894 = vunpack.c.h.s8.bf16 %v398
        %v895 = vunpack.c.h.s8.bf16 %v399
        %v896 = vunpack.c.h.s8.bf16 %v400
        %v897 = vunpack.c.h.s8.bf16 %v401
        %v898 = vunpack.c.h.s8.bf16 %v402
        %v899 = vunpack.c.h.s8.bf16 %v403
        %v900 = vunpack.c.l.s8.bf16 %v404
        %v901 = vunpack.c.l.s8.bf16 %v405
        %v902 = vunpack.c.l.s8.bf16 %v406
        %v903 = vunpack.c.l.s8.bf16 %v407
        %v904 = vunpack.c.l.s8.bf16 %v408
        %v905 = vunpack.c.l.s8.bf16 %v409
        %v906 = vunpack.c.l.s8.bf16 %v410
        %v907 = vunpack.c.l.s8.bf16 %v411
        %v908 = vunpack.c.h.s8.bf16 %v404
        %v909 = vunpack.c.h.s8.bf16 %v405
        %v910 = vunpack.c.h.s8.bf16 %v406
        %v911 = vunpack.c.h.s8.bf16 %v407
        %v912 = vunpack.c.h.s8.bf16 %v408
        %v913 = vunpack.c.h.s8.bf16 %v409
        %v914 = vunpack.c.h.s8.bf16 %v410
        %v915 = vunpack.c.h.s8.bf16 %v411
        %v916 = vunpack.c.l.s8.bf16 %v412
        %v917 = vunpack.c.l.s8.bf16 %v413
        %v918 = vunpack.c.l.s8.bf16 %v414
        %v919 = vunpack.c.l.s8.bf16 %v415
        %v920 = vunpack.c.l.s8.bf16 %v416
        %v921 = vunpack.c.l.s8.bf16 %v417
        %v922 = vunpack.c.l.s8.bf16 %v418
        %v923 = vunpack.c.l.s8.bf16 %v419
        %v924 = vunpack.c.h.s8.bf16 %v412
        %v925 = vunpack.c.h.s8.bf16 %v413
        %v926 = vunpack.c.h.s8.bf16 %v414
        %v927 = vunpack.c.h.s8.bf16 %v415
        %v928 = vunpack.c.h.s8.bf16 %v416
        %v929 = vunpack.c.h.s8.bf16 %v417
        %v930 = vunpack.c.h.s8.bf16 %v418
        %v931 = vunpack.c.h.s8.bf16 %v419
        %v932 = vunpack.c.l.s8.bf16 %v420
        %v933 = vunpack.c.l.s8.bf16 %v421
        %v934 = vunpack.c.l.s8.bf16 %v422
        %v935 = vunpack.c.l.s8.bf16 %v423
        %v936 = vunpack.c.l.s8.bf16 %v424
        %v937 = vunpack.c.l.s8.bf16 %v425
        %v938 = vunpack.c.l.s8.bf16 %v426
        %v939 = vunpack.c.l.s8.bf16 %v427
        %v940 = vunpack.c.h.s8.bf16 %v420
        %v941 = vunpack.c.h.s8.bf16 %v421
        %v942 = vunpack.c.h.s8.bf16 %v422
        %v943 = vunpack.c.h.s8.bf16 %v423
        %v944 = vunpack.c.h.s8.bf16 %v424
        %v945 = vunpack.c.h.s8.bf16 %v425
        %v946 = vunpack.c.h.s8.bf16 %v426
        %v947 = vunpack.c.h.s8.bf16 %v427
        %v948 = vunpack.c.l.s8.bf16 %v428
        %v949 = vunpack.c.l.s8.bf16 %v429
        %v950 = vunpack.c.l.s8.bf16 %v430
        %v951 = vunpack.c.l.s8.bf16 %v431
        %v952 = vunpack.c.l.s8.bf16 %v432
        %v953 = vunpack.c.l.s8.bf16 %v433
        %v954 = vunpack.c.l.s8.bf16 %v434
        %v955 = vunpack.c.l.s8.bf16 %v435
        %v956 = vunpack.c.h.s8.bf16 %v428
        %v957 = vunpack.c.h.s8.bf16 %v429
        %v958 = vunpack.c.h.s8.bf16 %v430
        %v959 = vunpack.c.h.s8.bf16 %v431
        %v960 = vunpack.c.h.s8.bf16 %v432
        %v961 = vunpack.c.h.s8.bf16 %v433
        %v962 = vunpack.c.h.s8.bf16 %v434
        %v963 = vunpack.c.h.s8.bf16 %v435
        %v964 = vunpack.c.l.s8.bf16 %v436
        %v965 = vunpack.c.l.s8.bf16 %v437
        %v966 = vunpack.c.l.s8.bf16 %v438
        %v967 = vunpack.c.l.s8.bf16 %v439
        %v968 = vunpack.c.l.s8.bf16 %v440
        %v969 = vunpack.c.l.s8.bf16 %v441
        %v970 = vunpack.c.l.s8.bf16 %v442
        %v971 = vunpack.c.l.s8.bf16 %v443
        %v972 = vunpack.c.h.s8.bf16 %v436
        %v973 = vunpack.c.h.s8.bf16 %v437
        %v974 = vunpack.c.h.s8.bf16 %v438
        %v975 = vunpack.c.h.s8.bf16 %v439
        %v976 = vunpack.c.h.s8.bf16 %v440
        %v977 = vunpack.c.h.s8.bf16 %v441
        %v978 = vunpack.c.h.s8.bf16 %v442
        %v979 = vunpack.c.h.s8.bf16 %v443
        %v980 = vunpack.c.l.s8.bf16 %v444
        %v981 = vunpack.c.l.s8.bf16 %v445
        %v982 = vunpack.c.l.s8.bf16 %v446
        %v983 = vunpack.c.l.s8.bf16 %v447
        %v984 = vunpack.c.l.s8.bf16 %v448
        %v985 = vunpack.c.l.s8.bf16 %v449
        %v986 = vunpack.c.l.s8.bf16 %v450
        %v987 = vunpack.c.l.s8.bf16 %v451
        %v988 = vunpack.c.h.s8.bf16 %v444
        %v989 = vunpack.c.h.s8.bf16 %v445
        %v990 = vunpack.c.h.s8.bf16 %v446
        %v991 = vunpack.c.h.s8.bf16 %v447
        %v992 = vunpack.c.h.s8.bf16 %v448
        %v993 = vunpack.c.h.s8.bf16 %v449
        %v994 = vunpack.c.h.s8.bf16 %v450
        %v995 = vunpack.c.h.s8.bf16 %v451
        %v996 = vunpack.c.l.s8.bf16 %v452
        %v997 = vunpack.c.l.s8.bf16 %v453
        %v998 = vunpack.c.l.s8.bf16 %v454
        %v999 = vunpack.c.l.s8.bf16 %v455
        %v1000 = vunpack.c.l.s8.bf16 %v456
        %v1001 = vunpack.c.l.s8.bf16 %v457
        %v1002 = vunpack.c.l.s8.bf16 %v458
        %v1003 = vunpack.c.l.s8.bf16 %v459
        %v1004 = vunpack.c.h.s8.bf16 %v452
        %v1005 = vunpack.c.h.s8.bf16 %v453
        %v1006 = vunpack.c.h.s8.bf16 %v454
        %v1007 = vunpack.c.h.s8.bf16 %v455
        %v1008 = vunpack.c.h.s8.bf16 %v456
        %v1009 = vunpack.c.h.s8.bf16 %v457
        %v1010 = vunpack.c.h.s8.bf16 %v458
        %v1011 = vunpack.c.h.s8.bf16 %v459
        %v1012 = vunpack.c.l.s8.bf16 %v460
        %v1013 = vunpack.c.l.s8.bf16 %v461
        %v1014 = vunpack.c.l.s8.bf16 %v462
        %v1015 = vunpack.c.l.s8.bf16 %v463
        %v1016 = vunpack.c.l.s8.bf16 %v464
        %v1017 = vunpack.c.l.s8.bf16 %v465
        %v1018 = vunpack.c.l.s8.bf16 %v466
        %v1019 = vunpack.c.l.s8.bf16 %v467
        %v1020 = vunpack.c.h.s8.bf16 %v460
        %v1021 = vunpack.c.h.s8.bf16 %v461
        %v1022 = vunpack.c.h.s8.bf16 %v462
        %v1023 = vunpack.c.h.s8.bf16 %v463
        %v1024 = vunpack.c.h.s8.bf16 %v464
        %v1025 = vunpack.c.h.s8.bf16 %v465
        %v1026 = vunpack.c.h.s8.bf16 %v466
        %v1027 = vunpack.c.h.s8.bf16 %v467
        %v1028 = vunpack.c.l.s8.bf16 %v468
        %v1029 = vunpack.c.l.s8.bf16 %v469
        %v1030 = vunpack.c.l.s8.bf16 %v470
        %v1031 = vunpack.c.l.s8.bf16 %v471
        %v1032 = vunpack.c.l.s8.bf16 %v472
        %v1033 = vunpack.c.l.s8.bf16 %v473
        %v1034 = vunpack.c.l.s8.bf16 %v474
        %v1035 = vunpack.c.l.s8.bf16 %v475
        %v1036 = vunpack.c.h.s8.bf16 %v468
        %v1037 = vunpack.c.h.s8.bf16 %v469
        %v1038 = vunpack.c.h.s8.bf16 %v470
        %v1039 = vunpack.c.h.s8.bf16 %v471
        %v1040 = vunpack.c.h.s8.bf16 %v472
        %v1041 = vunpack.c.h.s8.bf16 %v473
        %v1042 = vunpack.c.h.s8.bf16 %v474
        %v1043 = vunpack.c.h.s8.bf16 %v475
        %v1044 = vunpack.c.l.s8.bf16 %v476
        %v1045 = vunpack.c.l.s8.bf16 %v477
        %v1046 = vunpack.c.l.s8.bf16 %v478
        %v1047 = vunpack.c.l.s8.bf16 %v479
        %v1048 = vunpack.c.l.s8.bf16 %v480
        %v1049 = vunpack.c.l.s8.bf16 %v481
        %v1050 = vunpack.c.l.s8.bf16 %v482
        %v1051 = vunpack.c.l.s8.bf16 %v483
        %v1052 = vunpack.c.h.s8.bf16 %v476
        %v1053 = vunpack.c.h.s8.bf16 %v477
        %v1054 = vunpack.c.h.s8.bf16 %v478
        %v1055 = vunpack.c.h.s8.bf16 %v479
        %v1056 = vunpack.c.h.s8.bf16 %v480
        %v1057 = vunpack.c.h.s8.bf16 %v481
        %v1058 = vunpack.c.h.s8.bf16 %v482
        %v1059 = vunpack.c.h.s8.bf16 %v483
        %v1060 = vunpack.c.l.s8.bf16 %v484
        %v1061 = vunpack.c.l.s8.bf16 %v485
        %v1062 = vunpack.c.l.s8.bf16 %v486
        %v1063 = vunpack.c.l.s8.bf16 %v487
        %v1064 = vunpack.c.l.s8.bf16 %v488
        %v1065 = vunpack.c.l.s8.bf16 %v489
        %v1066 = vunpack.c.l.s8.bf16 %v490
        %v1067 = vunpack.c.l.s8.bf16 %v491
        %v1068 = vunpack.c.h.s8.bf16 %v484
        %v1069 = vunpack.c.h.s8.bf16 %v485
        %v1070 = vunpack.c.h.s8.bf16 %v486
        %v1071 = vunpack.c.h.s8.bf16 %v487
        %v1072 = vunpack.c.h.s8.bf16 %v488
        %v1073 = vunpack.c.h.s8.bf16 %v489
        %v1074 = vunpack.c.h.s8.bf16 %v490
        %v1075 = vunpack.c.h.s8.bf16 %v491
        %v1076 = vunpack.c.l.s8.bf16 %v492
        %v1077 = vunpack.c.l.s8.bf16 %v493
        %v1078 = vunpack.c.l.s8.bf16 %v494
        %v1079 = vunpack.c.l.s8.bf16 %v495
        %v1080 = vunpack.c.l.s8.bf16 %v496
        %v1081 = vunpack.c.l.s8.bf16 %v497
        %v1082 = vunpack.c.l.s8.bf16 %v498
        %v1083 = vunpack.c.l.s8.bf16 %v499
        %v1084 = vunpack.c.h.s8.bf16 %v492
        %v1085 = vunpack.c.h.s8.bf16 %v493
        %v1086 = vunpack.c.h.s8.bf16 %v494
        %v1087 = vunpack.c.h.s8.bf16 %v495
        %v1088 = vunpack.c.h.s8.bf16 %v496
        %v1089 = vunpack.c.h.s8.bf16 %v497
        %v1090 = vunpack.c.h.s8.bf16 %v498
        %v1091 = vunpack.c.h.s8.bf16 %v499
        %v1092 = vunpack.c.l.s8.bf16 %v500
        %v1093 = vunpack.c.l.s8.bf16 %v501
        %v1094 = vunpack.c.l.s8.bf16 %v502
        %v1095 = vunpack.c.l.s8.bf16 %v503
        %v1096 = vunpack.c.l.s8.bf16 %v504
        %v1097 = vunpack.c.l.s8.bf16 %v505
        %v1098 = vunpack.c.l.s8.bf16 %v506
        %v1099 = vunpack.c.l.s8.bf16 %v507
        %v1100 = vunpack.c.h.s8.bf16 %v500
        %v1101 = vunpack.c.h.s8.bf16 %v501
        %v1102 = vunpack.c.h.s8.bf16 %v502
        %v1103 = vunpack.c.h.s8.bf16 %v503
        %v1104 = vunpack.c.h.s8.bf16 %v504
        %v1105 = vunpack.c.h.s8.bf16 %v505
        %v1106 = vunpack.c.h.s8.bf16 %v506
        %v1107 = vunpack.c.h.s8.bf16 %v507
        %v1108 = vunpack.c.l.s8.bf16 %v508
        %v1109 = vunpack.c.l.s8.bf16 %v509
        %v1110 = vunpack.c.l.s8.bf16 %v510
        %v1111 = vunpack.c.l.s8.bf16 %v511
        %v1112 = vunpack.c.l.s8.bf16 %v512
        %v1113 = vunpack.c.l.s8.bf16 %v513
        %v1114 = vunpack.c.l.s8.bf16 %v514
        %v1115 = vunpack.c.l.s8.bf16 %v515
        %v1116 = vunpack.c.h.s8.bf16 %v508
        %v1117 = vunpack.c.h.s8.bf16 %v509
        %v1118 = vunpack.c.h.s8.bf16 %v510
        %v1119 = vunpack.c.h.s8.bf16 %v511
        %v1120 = vunpack.c.h.s8.bf16 %v512
        %v1121 = vunpack.c.h.s8.bf16 %v513
        %v1122 = vunpack.c.h.s8.bf16 %v514
        %v1123 = vunpack.c.h.s8.bf16 %v515
        %v1124 = vunpack.c.l.s8.bf16 %v516
        %v1125 = vunpack.c.l.s8.bf16 %v517
        %v1126 = vunpack.c.l.s8.bf16 %v518
        %v1127 = vunpack.c.l.s8.bf16 %v519
        %v1128 = vunpack.c.l.s8.bf16 %v520
        %v1129 = vunpack.c.l.s8.bf16 %v521
        %v1130 = vunpack.c.l.s8.bf16 %v522
        %v1131 = vunpack.c.l.s8.bf16 %v523
        %v1132 = vunpack.c.h.s8.bf16 %v516
        %v1133 = vunpack.c.h.s8.bf16 %v517
        %v1134 = vunpack.c.h.s8.bf16 %v518
        %v1135 = vunpack.c.h.s8.bf16 %v519
        %v1136 = vunpack.c.h.s8.bf16 %v520
        %v1137 = vunpack.c.h.s8.bf16 %v521
        %v1138 = vunpack.c.h.s8.bf16 %v522
        %v1139 = vunpack.c.h.s8.bf16 %v523
        %v1140 = vunpack.c.l.s8.bf16 %v524
        %v1141 = vunpack.c.l.s8.bf16 %v525
        %v1142 = vunpack.c.l.s8.bf16 %v526
        %v1143 = vunpack.c.l.s8.bf16 %v527
        %v1144 = vunpack.c.l.s8.bf16 %v528
        %v1145 = vunpack.c.l.s8.bf16 %v529
        %v1146 = vunpack.c.l.s8.bf16 %v530
        %v1147 = vunpack.c.l.s8.bf16 %v531
        %v1148 = vunpack.c.h.s8.bf16 %v524
        %v1149 = vunpack.c.h.s8.bf16 %v525
        %v1150 = vunpack.c.h.s8.bf16 %v526
        %v1151 = vunpack.c.h.s8.bf16 %v527
        %v1152 = vunpack.c.h.s8.bf16 %v528
        %v1153 = vunpack.c.h.s8.bf16 %v529
        %v1154 = vunpack.c.h.s8.bf16 %v530
        %v1155 = vunpack.c.h.s8.bf16 %v531
        %v1156 = vunpack.c.l.s8.bf16 %v532
        %v1157 = vunpack.c.l.s8.bf16 %v533
        %v1158 = vunpack.c.l.s8.bf16 %v534
        %v1159 = vunpack.c.l.s8.bf16 %v535
        %v1160 = vunpack.c.l.s8.bf16 %v536
        %v1161 = vunpack.c.l.s8.bf16 %v537
        %v1162 = vunpack.c.l.s8.bf16 %v538
        %v1163 = vunpack.c.l.s8.bf16 %v539
        %v1164 = vunpack.c.h.s8.bf16 %v532
        %v1165 = vunpack.c.h.s8.bf16 %v533
        %v1166 = vunpack.c.h.s8.bf16 %v534
        %v1167 = vunpack.c.h.s8.bf16 %v535
        %v1168 = vunpack.c.h.s8.bf16 %v536
        %v1169 = vunpack.c.h.s8.bf16 %v537
        %v1170 = vunpack.c.h.s8.bf16 %v538
        %v1171 = vunpack.c.h.s8.bf16 %v539
        %v1172 = vunpack.c.l.s8.bf16 %v540
        %v1173 = vunpack.c.l.s8.bf16 %v541
        %v1174 = vunpack.c.l.s8.bf16 %v542
        %v1175 = vunpack.c.l.s8.bf16 %v543
        %v1176 = vunpack.c.l.s8.bf16 %v544
        %v1177 = vunpack.c.l.s8.bf16 %v545
        %v1178 = vunpack.c.l.s8.bf16 %v546
        %v1179 = vunpack.c.l.s8.bf16 %v547
        %v1180 = vunpack.c.h.s8.bf16 %v540
        %v1181 = vunpack.c.h.s8.bf16 %v541
        %v1182 = vunpack.c.h.s8.bf16 %v542
        %v1183 = vunpack.c.h.s8.bf16 %v543
        %v1184 = vunpack.c.h.s8.bf16 %v544
        %v1185 = vunpack.c.h.s8.bf16 %v545
        %v1186 = vunpack.c.h.s8.bf16 %v546
        %v1187 = vunpack.c.h.s8.bf16 %v547
        %v1188 = vunpack.c.l.s8.bf16 %v548
        %v1189 = vunpack.c.l.s8.bf16 %v549
        %v1190 = vunpack.c.l.s8.bf16 %v550
        %v1191 = vunpack.c.l.s8.bf16 %v551
        %v1192 = vunpack.c.l.s8.bf16 %v552
        %v1193 = vunpack.c.l.s8.bf16 %v553
        %v1194 = vunpack.c.l.s8.bf16 %v554
        %v1195 = vunpack.c.l.s8.bf16 %v555
        %v1196 = vunpack.c.h.s8.bf16 %v548
        %v1197 = vunpack.c.h.s8.bf16 %v549
        %v1198 = vunpack.c.h.s8.bf16 %v550
        %v1199 = vunpack.c.h.s8.bf16 %v551
        %v1200 = vunpack.c.h.s8.bf16 %v552
        %v1201 = vunpack.c.h.s8.bf16 %v553
        %v1202 = vunpack.c.h.s8.bf16 %v554
        %v1203 = vunpack.c.h.s8.bf16 %v555
        %v1204 = vunpack.c.l.s8.bf16 %v556
        %v1205 = vunpack.c.l.s8.bf16 %v557
        %v1206 = vunpack.c.l.s8.bf16 %v558
        %v1207 = vunpack.c.l.s8.bf16 %v559
        %v1208 = vunpack.c.l.s8.bf16 %v560
        %v1209 = vunpack.c.l.s8.bf16 %v561
        %v1210 = vunpack.c.l.s8.bf16 %v562
        %v1211 = vunpack.c.l.s8.bf16 %v563
        %v1212 = vunpack.c.h.s8.bf16 %v556
        %v1213 = vunpack.c.h.s8.bf16 %v557
        %v1214 = vunpack.c.h.s8.bf16 %v558
        %v1215 = vunpack.c.h.s8.bf16 %v559
        %v1216 = vunpack.c.h.s8.bf16 %v560
        %v1217 = vunpack.c.h.s8.bf16 %v561
        %v1218 = vunpack.c.h.s8.bf16 %v562
        %v1219 = vunpack.c.h.s8.bf16 %v563
        %v1220 = vunpack.c.l.s8.bf16 %v564
        %v1221 = vunpack.c.l.s8.bf16 %v565
        %v1222 = vunpack.c.l.s8.bf16 %v566
        %v1223 = vunpack.c.l.s8.bf16 %v567
        %v1224 = vunpack.c.l.s8.bf16 %v568
        %v1225 = vunpack.c.l.s8.bf16 %v569
        %v1226 = vunpack.c.l.s8.bf16 %v570
        %v1227 = vunpack.c.l.s8.bf16 %v571
        %v1228 = vunpack.c.h.s8.bf16 %v564
        %v1229 = vunpack.c.h.s8.bf16 %v565
        %v1230 = vunpack.c.h.s8.bf16 %v566
        %v1231 = vunpack.c.h.s8.bf16 %v567
        %v1232 = vunpack.c.h.s8.bf16 %v568
        %v1233 = vunpack.c.h.s8.bf16 %v569
        %v1234 = vunpack.c.h.s8.bf16 %v570
        %v1235 = vunpack.c.h.s8.bf16 %v571
        %v1236 = vunpack.c.l.s8.bf16 %v572
        %v1237 = vunpack.c.l.s8.bf16 %v573
        %v1238 = vunpack.c.l.s8.bf16 %v574
        %v1239 = vunpack.c.l.s8.bf16 %v575
        %v1240 = vunpack.c.l.s8.bf16 %v576
        %v1241 = vunpack.c.l.s8.bf16 %v577
        %v1242 = vunpack.c.l.s8.bf16 %v578
        %v1243 = vunpack.c.l.s8.bf16 %v579
        %v1244 = vunpack.c.h.s8.bf16 %v572
        %v1245 = vunpack.c.h.s8.bf16 %v573
        %v1246 = vunpack.c.h.s8.bf16 %v574
        %v1247 = vunpack.c.h.s8.bf16 %v575
        %v1248 = vunpack.c.h.s8.bf16 %v576
        %v1249 = vunpack.c.h.s8.bf16 %v577
        %v1250 = vunpack.c.h.s8.bf16 %v578
        %v1251 = vunpack.c.h.s8.bf16 %v579
        %v1252 = vunpack.c.l.s8.bf16 %v580
        %v1253 = vunpack.c.l.s8.bf16 %v581
        %v1254 = vunpack.c.l.s8.bf16 %v582
        %v1255 = vunpack.c.l.s8.bf16 %v583
        %v1256 = vunpack.c.l.s8.bf16 %v584
        %v1257 = vunpack.c.l.s8.bf16 %v585
        %v1258 = vunpack.c.l.s8.bf16 %v586
        %v1259 = vunpack.c.l.s8.bf16 %v587
        %v1260 = vunpack.c.h.s8.bf16 %v580
        %v1261 = vunpack.c.h.s8.bf16 %v581
        %v1262 = vunpack.c.h.s8.bf16 %v582
        %v1263 = vunpack.c.h.s8.bf16 %v583
        %v1264 = vunpack.c.h.s8.bf16 %v584
        %v1265 = vunpack.c.h.s8.bf16 %v585
        %v1266 = vunpack.c.h.s8.bf16 %v586
        %v1267 = vunpack.c.h.s8.bf16 %v587
        %v1268 = vunpack.c.l.s8.bf16 %v588
        %v1269 = vunpack.c.l.s8.bf16 %v589
        %v1270 = vunpack.c.l.s8.bf16 %v590
        %v1271 = vunpack.c.l.s8.bf16 %v591
        %v1272 = vunpack.c.l.s8.bf16 %v592
        %v1273 = vunpack.c.l.s8.bf16 %v593
        %v1274 = vunpack.c.l.s8.bf16 %v594
        %v1275 = vunpack.c.l.s8.bf16 %v595
        %v1276 = vunpack.c.h.s8.bf16 %v588
        %v1277 = vunpack.c.h.s8.bf16 %v589
        %v1278 = vunpack.c.h.s8.bf16 %v590
        %v1279 = vunpack.c.h.s8.bf16 %v591
        %v1280 = vunpack.c.h.s8.bf16 %v592
        %v1281 = vunpack.c.h.s8.bf16 %v593
        %v1282 = vunpack.c.h.s8.bf16 %v594
        %v1283 = vunpack.c.h.s8.bf16 %v595
        %v1284 = vunpack.c.l.s8.bf16 %v596
        %v1285 = vunpack.c.l.s8.bf16 %v597
        %v1286 = vunpack.c.l.s8.bf16 %v598
        %v1287 = vunpack.c.l.s8.bf16 %v599
        %v1288 = vunpack.c.l.s8.bf16 %v600
        %v1289 = vunpack.c.l.s8.bf16 %v601
        %v1290 = vunpack.c.l.s8.bf16 %v602
        %v1291 = vunpack.c.l.s8.bf16 %v603
        %v1292 = vunpack.c.h.s8.bf16 %v596
        %v1293 = vunpack.c.h.s8.bf16 %v597
        %v1294 = vunpack.c.h.s8.bf16 %v598
        %v1295 = vunpack.c.h.s8.bf16 %v599
        %v1296 = vunpack.c.h.s8.bf16 %v600
        %v1297 = vunpack.c.h.s8.bf16 %v601
        %v1298 = vunpack.c.h.s8.bf16 %v602
        %v1299 = vunpack.c.h.s8.bf16 %v603
        %v1300 = vunpack.c.l.s8.bf16 %v604
        %v1301 = vunpack.c.l.s8.bf16 %v605
        %v1302 = vunpack.c.l.s8.bf16 %v606
        %v1303 = vunpack.c.l.s8.bf16 %v607
        %v1304 = vunpack.c.l.s8.bf16 %v608
        %v1305 = vunpack.c.l.s8.bf16 %v609
        %v1306 = vunpack.c.l.s8.bf16 %v610
        %v1307 = vunpack.c.l.s8.bf16 %v611
        %v1308 = vunpack.c.h.s8.bf16 %v604
        %v1309 = vunpack.c.h.s8.bf16 %v605
        %v1310 = vunpack.c.h.s8.bf16 %v606
        %v1311 = vunpack.c.h.s8.bf16 %v607
        %v1312 = vunpack.c.h.s8.bf16 %v608
        %v1313 = vunpack.c.h.s8.bf16 %v609
        %v1314 = vunpack.c.h.s8.bf16 %v610
        %v1315 = vunpack.c.h.s8.bf16 %v611
        %v1316 = vunpack.c.l.s8.bf16 %v612
        %v1317 = vunpack.c.l.s8.bf16 %v613
        %v1318 = vunpack.c.l.s8.bf16 %v614
        %v1319 = vunpack.c.l.s8.bf16 %v615
        %v1320 = vunpack.c.l.s8.bf16 %v616
        %v1321 = vunpack.c.l.s8.bf16 %v617
        %v1322 = vunpack.c.l.s8.bf16 %v618
        %v1323 = vunpack.c.l.s8.bf16 %v619
        %v1324 = vunpack.c.h.s8.bf16 %v612
        %v1325 = vunpack.c.h.s8.bf16 %v613
        %v1326 = vunpack.c.h.s8.bf16 %v614
        %v1327 = vunpack.c.h.s8.bf16 %v615
        %v1328 = vunpack.c.h.s8.bf16 %v616
        %v1329 = vunpack.c.h.s8.bf16 %v617
        %v1330 = vunpack.c.h.s8.bf16 %v618
        %v1331 = vunpack.c.h.s8.bf16 %v619
        %v1332 = vunpack.c.l.s8.bf16 %v620
        %v1333 = vunpack.c.l.s8.bf16 %v621
        %v1334 = vunpack.c.l.s8.bf16 %v622
        %v1335 = vunpack.c.l.s8.bf16 %v623
        %v1336 = vunpack.c.l.s8.bf16 %v624
        %v1337 = vunpack.c.l.s8.bf16 %v625
        %v1338 = vunpack.c.l.s8.bf16 %v626
        %v1339 = vunpack.c.l.s8.bf16 %v627
        %v1340 = vunpack.c.h.s8.bf16 %v620
        %v1341 = vunpack.c.h.s8.bf16 %v621
        %v1342 = vunpack.c.h.s8.bf16 %v622
        %v1343 = vunpack.c.h.s8.bf16 %v623
        %v1344 = vunpack.c.h.s8.bf16 %v624
        %v1345 = vunpack.c.h.s8.bf16 %v625
        %v1346 = vunpack.c.h.s8.bf16 %v626
        %v1347 = vunpack.c.h.s8.bf16 %v627
        %v1348 = vunpack.c.l.s8.bf16 %v628
        %v1349 = vunpack.c.l.s8.bf16 %v629
        %v1350 = vunpack.c.l.s8.bf16 %v630
        %v1351 = vunpack.c.l.s8.bf16 %v631
        %v1352 = vunpack.c.l.s8.bf16 %v632
        %v1353 = vunpack.c.l.s8.bf16 %v633
        %v1354 = vunpack.c.l.s8.bf16 %v634
        %v1355 = vunpack.c.l.s8.bf16 %v635
        %v1356 = vunpack.c.h.s8.bf16 %v628
        %v1357 = vunpack.c.h.s8.bf16 %v629
        %v1358 = vunpack.c.h.s8.bf16 %v630
        %v1359 = vunpack.c.h.s8.bf16 %v631
        %v1360 = vunpack.c.h.s8.bf16 %v632
        %v1361 = vunpack.c.h.s8.bf16 %v633
        %v1362 = vunpack.c.h.s8.bf16 %v634
        %v1363 = vunpack.c.h.s8.bf16 %v635
        %v1364 = vunpack.c.l.s8.bf16 %v636
        %v1365 = vunpack.c.l.s8.bf16 %v637
        %v1366 = vunpack.c.l.s8.bf16 %v638
        %v1367 = vunpack.c.l.s8.bf16 %v639
        %v1368 = vunpack.c.l.s8.bf16 %v640
        %v1369 = vunpack.c.l.s8.bf16 %v641
        %v1370 = vunpack.c.l.s8.bf16 %v642
        %v1371 = vunpack.c.l.s8.bf16 %v643
        %v1372 = vunpack.c.h.s8.bf16 %v636
        %v1373 = vunpack.c.h.s8.bf16 %v637
        %v1374 = vunpack.c.h.s8.bf16 %v638
        %v1375 = vunpack.c.h.s8.bf16 %v639
        %v1376 = vunpack.c.h.s8.bf16 %v640
        %v1377 = vunpack.c.h.s8.bf16 %v641
        %v1378 = vunpack.c.h.s8.bf16 %v642
        %v1379 = vunpack.c.h.s8.bf16 %v643
        %v1380 = vunpack.c.l.s8.bf16 %v644
        %v1381 = vunpack.c.l.s8.bf16 %v645
        %v1382 = vunpack.c.l.s8.bf16 %v646
        %v1383 = vunpack.c.l.s8.bf16 %v647
        %v1384 = vunpack.c.l.s8.bf16 %v648
        %v1385 = vunpack.c.l.s8.bf16 %v649
        %v1386 = vunpack.c.l.s8.bf16 %v650
        %v1387 = vunpack.c.l.s8.bf16 %v651
        %v1388 = vunpack.c.h.s8.bf16 %v644
        %v1389 = vunpack.c.h.s8.bf16 %v645
        %v1390 = vunpack.c.h.s8.bf16 %v646
        %v1391 = vunpack.c.h.s8.bf16 %v647
        %v1392 = vunpack.c.h.s8.bf16 %v648
        %v1393 = vunpack.c.h.s8.bf16 %v649
        %v1394 = vunpack.c.h.s8.bf16 %v650
        %v1395 = vunpack.c.h.s8.bf16 %v651
        %v1396 = vunpack.c.l.s8.bf16 %v652
        %v1397 = vunpack.c.l.s8.bf16 %v653
        %v1398 = vunpack.c.l.s8.bf16 %v654
        %v1399 = vunpack.c.l.s8.bf16 %v655
        %v1400 = vunpack.c.l.s8.bf16 %v656
        %v1401 = vunpack.c.l.s8.bf16 %v657
        %v1402 = vunpack.c.l.s8.bf16 %v658
        %v1403 = vunpack.c.l.s8.bf16 %v659
        %v1404 = vunpack.c.h.s8.bf16 %v652
        %v1405 = vunpack.c.h.s8.bf16 %v653
        %v1406 = vunpack.c.h.s8.bf16 %v654
        %v1407 = vunpack.c.h.s8.bf16 %v655
        %v1408 = vunpack.c.h.s8.bf16 %v656
        %v1409 = vunpack.c.h.s8.bf16 %v657
        %v1410 = vunpack.c.h.s8.bf16 %v658
        %v1411 = vunpack.c.h.s8.bf16 %v659
        %v1412 = vunpack.c.l.s8.bf16 %v660
        %v1413 = vunpack.c.l.s8.bf16 %v661
        %v1414 = vunpack.c.l.s8.bf16 %v662
        %v1415 = vunpack.c.l.s8.bf16 %v663
        %v1416 = vunpack.c.l.s8.bf16 %v664
        %v1417 = vunpack.c.l.s8.bf16 %v665
        %v1418 = vunpack.c.l.s8.bf16 %v666
        %v1419 = vunpack.c.l.s8.bf16 %v667
        %v1420 = vunpack.c.h.s8.bf16 %v660
        %v1421 = vunpack.c.h.s8.bf16 %v661
        %v1422 = vunpack.c.h.s8.bf16 %v662
        %v1423 = vunpack.c.h.s8.bf16 %v663
        %v1424 = vunpack.c.h.s8.bf16 %v664
        %v1425 = vunpack.c.h.s8.bf16 %v665
        %v1426 = vunpack.c.h.s8.bf16 %v666
        %v1427 = vunpack.c.h.s8.bf16 %v667
        %v1428 = vunpack.c.l.s8.bf16 %v668
        %v1429 = vunpack.c.l.s8.bf16 %v669
        %v1430 = vunpack.c.l.s8.bf16 %v670
        %v1431 = vunpack.c.l.s8.bf16 %v671
        %v1432 = vunpack.c.l.s8.bf16 %v672
        %v1433 = vunpack.c.l.s8.bf16 %v673
        %v1434 = vunpack.c.l.s8.bf16 %v674
        %v1435 = vunpack.c.l.s8.bf16 %v675
        %v1436 = vunpack.c.h.s8.bf16 %v668
        %v1437 = vunpack.c.h.s8.bf16 %v669
        %v1438 = vunpack.c.h.s8.bf16 %v670
        %v1439 = vunpack.c.h.s8.bf16 %v671
        %v1440 = vunpack.c.h.s8.bf16 %v672
        %v1441 = vunpack.c.h.s8.bf16 %v673
        %v1442 = vunpack.c.h.s8.bf16 %v674
        %v1443 = vunpack.c.h.s8.bf16 %v675
        %v1444 = vunpack.c.l.s8.bf16 %v676
        %v1445 = vunpack.c.l.s8.bf16 %v677
        %v1446 = vunpack.c.l.s8.bf16 %v678
        %v1447 = vunpack.c.l.s8.bf16 %v679
        %v1448 = vunpack.c.l.s8.bf16 %v680
        %v1449 = vunpack.c.l.s8.bf16 %v681
        %v1450 = vunpack.c.l.s8.bf16 %v682
        %v1451 = vunpack.c.l.s8.bf16 %v683
        %v1452 = vunpack.c.h.s8.bf16 %v676
        %v1453 = vunpack.c.h.s8.bf16 %v677
        %v1454 = vunpack.c.h.s8.bf16 %v678
        %v1455 = vunpack.c.h.s8.bf16 %v679
        %v1456 = vunpack.c.h.s8.bf16 %v680
        %v1457 = vunpack.c.h.s8.bf16 %v681
        %v1458 = vunpack.c.h.s8.bf16 %v682
        %v1459 = vunpack.c.h.s8.bf16 %v683
        %v1460 = vunpack.c.l.s8.bf16 %v684
        %v1461 = vunpack.c.l.s8.bf16 %v685
        %v1462 = vunpack.c.l.s8.bf16 %v686
        %v1463 = vunpack.c.l.s8.bf16 %v687
        %v1464 = vunpack.c.l.s8.bf16 %v688
        %v1465 = vunpack.c.l.s8.bf16 %v689
        %v1466 = vunpack.c.l.s8.bf16 %v690
        %v1467 = vunpack.c.l.s8.bf16 %v691
        %v1468 = vunpack.c.h.s8.bf16 %v684
        %v1469 = vunpack.c.h.s8.bf16 %v685
        %v1470 = vunpack.c.h.s8.bf16 %v686
        %v1471 = vunpack.c.h.s8.bf16 %v687
        %v1472 = vunpack.c.h.s8.bf16 %v688
        %v1473 = vunpack.c.h.s8.bf16 %v689
        %v1474 = vunpack.c.h.s8.bf16 %v690
        %v1475 = vunpack.c.h.s8.bf16 %v691
        %v1476 = vunpack.c.l.s8.bf16 %v692
        %v1477 = vunpack.c.l.s8.bf16 %v693
        %v1478 = vunpack.c.l.s8.bf16 %v694
        %v1479 = vunpack.c.l.s8.bf16 %v695
        %v1480 = vunpack.c.l.s8.bf16 %v696
        %v1481 = vunpack.c.l.s8.bf16 %v697
        %v1482 = vunpack.c.l.s8.bf16 %v698
        %v1483 = vunpack.c.l.s8.bf16 %v699
        %v1484 = vunpack.c.h.s8.bf16 %v692
        %v1485 = vunpack.c.h.s8.bf16 %v693
        %v1486 = vunpack.c.h.s8.bf16 %v694
        %v1487 = vunpack.c.h.s8.bf16 %v695
        %v1488 = vunpack.c.h.s8.bf16 %v696
        %v1489 = vunpack.c.h.s8.bf16 %v697
        %v1490 = vunpack.c.h.s8.bf16 %v698
        %v1491 = vunpack.c.h.s8.bf16 %v699
        %v1492 = vunpack.c.l.s8.bf16 %v700
        %v1493 = vunpack.c.l.s8.bf16 %v701
        %v1494 = vunpack.c.l.s8.bf16 %v702
        %v1495 = vunpack.c.l.s8.bf16 %v703
        %v1496 = vunpack.c.l.s8.bf16 %v704
        %v1497 = vunpack.c.l.s8.bf16 %v705
        %v1498 = vunpack.c.l.s8.bf16 %v706
        %v1499 = vunpack.c.l.s8.bf16 %v707
        %v1500 = vunpack.c.h.s8.bf16 %v700
        %v1501 = vunpack.c.h.s8.bf16 %v701
        %v1502 = vunpack.c.h.s8.bf16 %v702
        %v1503 = vunpack.c.h.s8.bf16 %v703
        %v1504 = vunpack.c.h.s8.bf16 %v704
        %v1505 = vunpack.c.h.s8.bf16 %v705
        %v1506 = vunpack.c.h.s8.bf16 %v706
        %v1507 = vunpack.c.h.s8.bf16 %v707
        %v1508 = vunpack.c.l.s8.bf16 %v708
        %v1509 = vunpack.c.l.s8.bf16 %v709
        %v1510 = vunpack.c.l.s8.bf16 %v710
        %v1511 = vunpack.c.l.s8.bf16 %v711
        %v1512 = vunpack.c.l.s8.bf16 %v712
        %v1513 = vunpack.c.l.s8.bf16 %v713
        %v1514 = vunpack.c.l.s8.bf16 %v714
        %v1515 = vunpack.c.l.s8.bf16 %v715
        %v1516 = vunpack.c.h.s8.bf16 %v708
        %v1517 = vunpack.c.h.s8.bf16 %v709
        %v1518 = vunpack.c.h.s8.bf16 %v710
        %v1519 = vunpack.c.h.s8.bf16 %v711
        %v1520 = vunpack.c.h.s8.bf16 %v712
        %v1521 = vunpack.c.h.s8.bf16 %v713
        %v1522 = vunpack.c.h.s8.bf16 %v714
        %v1523 = vunpack.c.h.s8.bf16 %v715
        %v1524 = vunpack.c.l.s8.bf16 %v716
        %v1525 = vunpack.c.l.s8.bf16 %v717
        %v1526 = vunpack.c.l.s8.bf16 %v718
        %v1527 = vunpack.c.l.s8.bf16 %v719
        %v1528 = vunpack.c.l.s8.bf16 %v720
        %v1529 = vunpack.c.l.s8.bf16 %v721
        %v1530 = vunpack.c.l.s8.bf16 %v722
        %v1531 = vunpack.c.l.s8.bf16 %v723
        %v1532 = vunpack.c.h.s8.bf16 %v716
        %v1533 = vunpack.c.h.s8.bf16 %v717
        %v1534 = vunpack.c.h.s8.bf16 %v718
        %v1535 = vunpack.c.h.s8.bf16 %v719
        %v1536 = vunpack.c.h.s8.bf16 %v720
        %v1537 = vunpack.c.h.s8.bf16 %v721
        %v1538 = vunpack.c.h.s8.bf16 %v722
        %v1539 = vunpack.c.h.s8.bf16 %v723
        %v1540 = vunpack.c.l.s8.bf16 %v724
        %v1541 = vunpack.c.l.s8.bf16 %v725
        %v1542 = vunpack.c.l.s8.bf16 %v726
        %v1543 = vunpack.c.l.s8.bf16 %v727
        %v1544 = vunpack.c.l.s8.bf16 %v728
        %v1545 = vunpack.c.l.s8.bf16 %v729
        %v1546 = vunpack.c.l.s8.bf16 %v730
        %v1547 = vunpack.c.l.s8.bf16 %v731
        %v1548 = vunpack.c.h.s8.bf16 %v724
        %v1549 = vunpack.c.h.s8.bf16 %v725
        %v1550 = vunpack.c.h.s8.bf16 %v726
        %v1551 = vunpack.c.h.s8.bf16 %v727
        %v1552 = vunpack.c.h.s8.bf16 %v728
        %v1553 = vunpack.c.h.s8.bf16 %v729
        %v1554 = vunpack.c.h.s8.bf16 %v730
        %v1555 = vunpack.c.h.s8.bf16 %v731
        %v1556 = vunpack.c.l.s8.bf16 %v732
        %v1557 = vunpack.c.l.s8.bf16 %v733
        %v1558 = vunpack.c.l.s8.bf16 %v734
        %v1559 = vunpack.c.l.s8.bf16 %v735
        %v1560 = vunpack.c.l.s8.bf16 %v736
        %v1561 = vunpack.c.l.s8.bf16 %v737
        %v1562 = vunpack.c.l.s8.bf16 %v738
        %v1563 = vunpack.c.l.s8.bf16 %v739
        %v1564 = vunpack.c.h.s8.bf16 %v732
        %v1565 = vunpack.c.h.s8.bf16 %v733
        %v1566 = vunpack.c.h.s8.bf16 %v734
        %v1567 = vunpack.c.h.s8.bf16 %v735
        %v1568 = vunpack.c.h.s8.bf16 %v736
        %v1569 = vunpack.c.h.s8.bf16 %v737
        %v1570 = vunpack.c.h.s8.bf16 %v738
        %v1571 = vunpack.c.h.s8.bf16 %v739
        %v1572 = vunpack.c.l.s8.bf16 %v740
        %v1573 = vunpack.c.l.s8.bf16 %v741
        %v1574 = vunpack.c.l.s8.bf16 %v742
        %v1575 = vunpack.c.l.s8.bf16 %v743
        %v1576 = vunpack.c.l.s8.bf16 %v744
        %v1577 = vunpack.c.l.s8.bf16 %v745
        %v1578 = vunpack.c.l.s8.bf16 %v746
        %v1579 = vunpack.c.l.s8.bf16 %v747
        %v1580 = vunpack.c.h.s8.bf16 %v740
        %v1581 = vunpack.c.h.s8.bf16 %v741
        %v1582 = vunpack.c.h.s8.bf16 %v742
        %v1583 = vunpack.c.h.s8.bf16 %v743
        %v1584 = vunpack.c.h.s8.bf16 %v744
        %v1585 = vunpack.c.h.s8.bf16 %v745
        %v1586 = vunpack.c.h.s8.bf16 %v746
        %v1587 = vunpack.c.h.s8.bf16 %v747
        %v1588 = vunpack.c.l.s8.bf16 %v748
        %v1589 = vunpack.c.l.s8.bf16 %v749
        %v1590 = vunpack.c.l.s8.bf16 %v750
        %v1591 = vunpack.c.l.s8.bf16 %v751
        %v1592 = vunpack.c.l.s8.bf16 %v752
        %v1593 = vunpack.c.l.s8.bf16 %v753
        %v1594 = vunpack.c.l.s8.bf16 %v754
        %v1595 = vunpack.c.l.s8.bf16 %v755
        %v1596 = vunpack.c.h.s8.bf16 %v748
        %v1597 = vunpack.c.h.s8.bf16 %v749
        %v1598 = vunpack.c.h.s8.bf16 %v750
        %v1599 = vunpack.c.h.s8.bf16 %v751
        %v1600 = vunpack.c.h.s8.bf16 %v752
        %v1601 = vunpack.c.h.s8.bf16 %v753
        %v1602 = vunpack.c.h.s8.bf16 %v754
        %v1603 = vunpack.c.h.s8.bf16 %v755
        %v1604 = vunpack.c.l.s8.bf16 %v756
        %v1605 = vunpack.c.l.s8.bf16 %v757
        %v1606 = vunpack.c.l.s8.bf16 %v758
        %v1607 = vunpack.c.l.s8.bf16 %v759
        %v1608 = vunpack.c.l.s8.bf16 %v760
        %v1609 = vunpack.c.l.s8.bf16 %v761
        %v1610 = vunpack.c.l.s8.bf16 %v762
        %v1611 = vunpack.c.l.s8.bf16 %v763
        %v1612 = vunpack.c.h.s8.bf16 %v756
        %v1613 = vunpack.c.h.s8.bf16 %v757
        %v1614 = vunpack.c.h.s8.bf16 %v758
        %v1615 = vunpack.c.h.s8.bf16 %v759
        %v1616 = vunpack.c.h.s8.bf16 %v760
        %v1617 = vunpack.c.h.s8.bf16 %v761
        %v1618 = vunpack.c.h.s8.bf16 %v762
        %v1619 = vunpack.c.h.s8.bf16 %v763
        %v1620 = vunpack.c.l.s8.bf16 %v764
        %v1621 = vunpack.c.l.s8.bf16 %v765
        %v1622 = vunpack.c.l.s8.bf16 %v766
        %v1623 = vunpack.c.l.s8.bf16 %v767
        %v1624 = vunpack.c.l.s8.bf16 %v768
        %v1625 = vunpack.c.l.s8.bf16 %v769
        %v1626 = vunpack.c.l.s8.bf16 %v770
        %v1627 = vunpack.c.l.s8.bf16 %v771
        %v1628 = vunpack.c.h.s8.bf16 %v764
        %v1629 = vunpack.c.h.s8.bf16 %v765
        %v1630 = vunpack.c.h.s8.bf16 %v766
        %v1631 = vunpack.c.h.s8.bf16 %v767
        %v1632 = vunpack.c.h.s8.bf16 %v768
        %v1633 = vunpack.c.h.s8.bf16 %v769
        %v1634 = vunpack.c.h.s8.bf16 %v770
        %v1635 = vunpack.c.h.s8.bf16 %v771
        %v1636 = vunpack.c.l.s8.bf16 %v772
        %v1637 = vunpack.c.l.s8.bf16 %v773
        %v1638 = vunpack.c.l.s8.bf16 %v774
        %v1639 = vunpack.c.l.s8.bf16 %v775
        %v1640 = vunpack.c.l.s8.bf16 %v776
        %v1641 = vunpack.c.l.s8.bf16 %v777
        %v1642 = vunpack.c.l.s8.bf16 %v778
        %v1643 = vunpack.c.l.s8.bf16 %v779
        %v1644 = vunpack.c.h.s8.bf16 %v772
        %v1645 = vunpack.c.h.s8.bf16 %v773
        %v1646 = vunpack.c.h.s8.bf16 %v774
        %v1647 = vunpack.c.h.s8.bf16 %v775
        %v1648 = vunpack.c.h.s8.bf16 %v776
        %v1649 = vunpack.c.h.s8.bf16 %v777
        %v1650 = vunpack.c.h.s8.bf16 %v778
        %v1651 = vunpack.c.h.s8.bf16 %v779
        %v1652 = vunpack.c.l.s8.bf16 %v780
        %v1653 = vunpack.c.l.s8.bf16 %v781
        %v1654 = vunpack.c.l.s8.bf16 %v782
        %v1655 = vunpack.c.l.s8.bf16 %v783
        %v1656 = vunpack.c.l.s8.bf16 %v784
        %v1657 = vunpack.c.l.s8.bf16 %v785
        %v1658 = vunpack.c.l.s8.bf16 %v786
        %v1659 = vunpack.c.l.s8.bf16 %v787
        %v1660 = vunpack.c.h.s8.bf16 %v780
        %v1661 = vunpack.c.h.s8.bf16 %v781
        %v1662 = vunpack.c.h.s8.bf16 %v782
        %v1663 = vunpack.c.h.s8.bf16 %v783
        %v1664 = vunpack.c.h.s8.bf16 %v784
        %v1665 = vunpack.c.h.s8.bf16 %v785
        %v1666 = vunpack.c.h.s8.bf16 %v786
        %v1667 = vunpack.c.h.s8.bf16 %v787
        %v1668 = vunpack.c.l.s8.bf16 %v788
        %v1669 = vunpack.c.l.s8.bf16 %v789
        %v1670 = vunpack.c.l.s8.bf16 %v790
        %v1671 = vunpack.c.l.s8.bf16 %v791
        %v1672 = vunpack.c.l.s8.bf16 %v792
        %v1673 = vunpack.c.l.s8.bf16 %v793
        %v1674 = vunpack.c.l.s8.bf16 %v794
        %v1675 = vunpack.c.l.s8.bf16 %v795
        %v1676 = vunpack.c.h.s8.bf16 %v788
        %v1677 = vunpack.c.h.s8.bf16 %v789
        %v1678 = vunpack.c.h.s8.bf16 %v790
        %v1679 = vunpack.c.h.s8.bf16 %v791
        %v1680 = vunpack.c.h.s8.bf16 %v792
        %v1681 = vunpack.c.h.s8.bf16 %v793
        %v1682 = vunpack.c.h.s8.bf16 %v794
        %v1683 = vunpack.c.h.s8.bf16 %v795
        %v1684 = vunpack.c.l.s8.bf16 %v796
        %v1685 = vunpack.c.l.s8.bf16 %v797
        %v1686 = vunpack.c.l.s8.bf16 %v798
        %v1687 = vunpack.c.l.s8.bf16 %v799
        %v1688 = vunpack.c.l.s8.bf16 %v800
        %v1689 = vunpack.c.l.s8.bf16 %v801
        %v1690 = vunpack.c.l.s8.bf16 %v802
        %v1691 = vunpack.c.l.s8.bf16 %v803
        %v1692 = vunpack.c.h.s8.bf16 %v796
        %v1693 = vunpack.c.h.s8.bf16 %v797
        %v1694 = vunpack.c.h.s8.bf16 %v798
        %v1695 = vunpack.c.h.s8.bf16 %v799
        %v1696 = vunpack.c.h.s8.bf16 %v800
        %v1697 = vunpack.c.h.s8.bf16 %v801
        %v1698 = vunpack.c.h.s8.bf16 %v802
        %v1699 = vunpack.c.h.s8.bf16 %v803
        %v1700 = vld [vmem:[#allocation2] sm:$0xff]
        %v1701 = vld [vmem:[#allocation2 + $0x8] sm:$0x3f]
        %v1704 = vcombine.high %v1700, %v1700
        %v1706 = vunpack.c.l.s4 1966171168
        %v1707 = vunpack.c.0.s8 %v1706
        %v1708 = vlaneseq
        %v1709 = vshrl.u32 %v1708, 7
        %v1710 = vsub.s32 %v1707, %v1709
        %v1711 = vrot.slane %v1700, %v1710
        %v1713 = vunpack.c.l.s4 1966171168
        %v1714 = vunpack.c.0.s8 %v1713
        %v1715 = vlaneseq
        %v1716 = vshrl.u32 %v1715, 7
        %v1717 = vsub.s32 %v1714, %v1716
        %v1718 = vrot.slane %v1704, %v1717
        %v1719 = vcombine.high %v1711, %v1711
        %v1720 = vcombine.high %v1718, %v1718
        %v1722 = vunpack.c.l.s4 1966171168
        %v1723 = vunpack.c.0.s8 %v1722
        %v1724 = vlaneseq
        %v1725 = vshrl.u32 %v1724, 7
        %v1726 = vsub.s32 %v1723, %v1725
        %v1727 = vrot.slane %v1711, %v1726
        %v1729 = vunpack.c.l.s4 1966171168
        %v1730 = vunpack.c.0.s8 %v1729
        %v1731 = vlaneseq
        %v1732 = vshrl.u32 %v1731, 7
        %v1733 = vsub.s32 %v1730, %v1732
        %v1734 = vrot.slane %v1718, %v1733
        %v1736 = vunpack.c.l.s4 1966171168
        %v1737 = vunpack.c.0.s8 %v1736
        %v1738 = vlaneseq
        %v1739 = vshrl.u32 %v1738, 7
        %v1740 = vsub.s32 %v1737, %v1739
        %v1741 = vrot.slane %v1719, %v1740
        %v1743 = vunpack.c.l.s4 1966171168
        %v1744 = vunpack.c.0.s8 %v1743
        %v1745 = vlaneseq
        %v1746 = vshrl.u32 %v1745, 7
        %v1747 = vsub.s32 %v1744, %v1746
        %v1748 = vrot.slane %v1720, %v1747
        %v1749 = vcombine.high %v1727, %v1727
        %v1750 = vcombine.high %v1734, %v1734
        %v1751 = vcombine.high %v1741, %v1741
        %v1752 = vcombine.high %v1748, %v1748
        %v1753 = vcombine.high %v1701, %v1701
        %v1755 = vunpack.c.l.s4 1966171168
        %v1756 = vunpack.c.0.s8 %v1755
        %v1757 = vlaneseq
        %v1758 = vshrl.u32 %v1757, 7
        %v1759 = vsub.s32 %v1756, %v1758
        %v1760 = vrot.slane %v1701, %v1759
        %v1762 = vunpack.c.l.s4 1966171168
        %v1763 = vunpack.c.0.s8 %v1762
        %v1764 = vlaneseq
        %v1765 = vshrl.u32 %v1764, 7
        %v1766 = vsub.s32 %v1763, %v1765
        %v1767 = vrot.slane %v1753, %v1766
        %v1768 = vcombine.high %v1760, %v1760
        %v1769 = vcombine.high %v1767, %v1767
        %v1771 = vunpack.c.l.s4 1966171168
        %v1772 = vunpack.c.0.s8 %v1771
        %v1773 = vlaneseq
        %v1774 = vshrl.u32 %v1773, 7
        %v1775 = vsub.s32 %v1772, %v1774
        %v1776 = vrot.slane %v1760, %v1775
        %v1778 = vunpack.c.l.s4 1966171168
        %v1779 = vunpack.c.0.s8 %v1778
        %v1780 = vlaneseq
        %v1781 = vshrl.u32 %v1780, 7
        %v1782 = vsub.s32 %v1779, %v1781
        %v1783 = vrot.slane %v1767, %v1782
        %v1785 = vunpack.c.l.s4 1966171168
        %v1786 = vunpack.c.0.s8 %v1785
        %v1787 = vlaneseq
        %v1788 = vshrl.u32 %v1787, 7
        %v1789 = vsub.s32 %v1786, %v1788
        %v1790 = vrot.slane %v1768, %v1789
        %v1792 = vunpack.c.l.s4 1966171168
        %v1793 = vunpack.c.0.s8 %v1792
        %v1794 = vlaneseq
        %v1795 = vshrl.u32 %v1794, 7
        %v1796 = vsub.s32 %v1793, %v1795
        %v1797 = vrot.slane %v1769, %v1796
        %v1798 = vcombine.high %v1776, %v1776
        %v1799 = vcombine.high %v1790, %v1790
        %1814 = vmatprep.subr.bf16.mxu0 %v861
        %1815 = vmatpush1.bf16.msra.mxu0 %v860
        %1816 = vmatprep.subr.bf16.mxu0 %v853
        %1817 = vmatpush1.bf16.msra.mxu0 %v852
        %1818 = vmatprep.subr.bf16.mxu0 %v845
        %1819 = vmatpush1.bf16.msra.mxu0 %v844
        %1820 = vmatprep.subr.bf16.mxu0 %v837
        %1821 = vmatpush1.bf16.msra.mxu0 %v836
        %1822 = vmatprep.subr.bf16.mxu0 %v829
        %1823 = vmatpush1.bf16.msra.mxu0 %v828
        %1824 = vmatprep.subr.bf16.mxu0 %v821
        %1825 = vmatpush1.bf16.msra.mxu0 %v820
        %1826 = vmatprep.subr.bf16.mxu0 %v813
        %1827 = vmatpush1.bf16.msra.mxu0 %v812
        %1828 = vmatprep.subr.bf16.mxu0 %v805
        %1829 = vmatpush1.bf16.msra.mxu0 %v804
        %1830 = vmatprep.subr.bf16.mxu0 %v925
        %1831 = vmatpush2.bf16.msra.mxu0 %v924
        %1832 = vmatprep.subr.bf16.mxu0 %v917
        %1833 = vmatpush2.bf16.msra.mxu0 %v916
        %1834 = vmatprep.subr.bf16.mxu0 %v909
        %1835 = vmatpush2.bf16.msra.mxu0 %v908
        %1836 = vmatprep.subr.bf16.mxu0 %v901
        %1837 = vmatpush2.bf16.msra.mxu0 %v900
        %1838 = vmatprep.subr.bf16.mxu0 %v893
        %1839 = vmatpush2.bf16.msra.mxu0 %v892
        %1840 = vmatprep.subr.bf16.mxu0 %v885
        %1841 = vmatpush2.bf16.msra.mxu0 %v884
        %1842 = vmatprep.subr.bf16.mxu0 %v877
        %1843 = vmatpush2.bf16.msra.mxu0 %v876
        %1844 = vmatprep.subr.bf16.mxu0 %v869
        %1845 = vmatpush2.bf16.msra.mxu0 %v868
        %1846 = vmatprep.mubr.bf16.mxu0 %v1741
        %1847 = vmatmul.mubr.bf16.gmra.mxu0 %v1727
        %v1848 = vpop.f32.mrf.mxu0
        %v1849 = vadd.f32 0.0, %v1848
        %v1850 = vpop.f32.mrf.mxu0
        %v1851 = vadd.f32 0.0, %v1850
        %v1852 = vpop.f32.mrf.mxu0
        %v1853 = vpop.f32.mrf.mxu0
        %1854 = vdwg.mxu0
        %1855 = vmatprep.subr.bf16.mxu0 %v989
        %1856 = vmatpush1.bf16.msra.mxu0 %v988
        %1857 = vmatprep.subr.bf16.mxu0 %v981
        %1858 = vmatpush1.bf16.msra.mxu0 %v980
        %1859 = vmatprep.subr.bf16.mxu0 %v973
        %1860 = vmatpush1.bf16.msra.mxu0 %v972
        %1861 = vmatprep.subr.bf16.mxu0 %v965
        %1862 = vmatpush1.bf16.msra.mxu0 %v964
        %1863 = vmatprep.subr.bf16.mxu0 %v957
        %1864 = vmatpush1.bf16.msra.mxu0 %v956
        %1865 = vmatprep.subr.bf16.mxu0 %v949
        %1866 = vmatpush1.bf16.msra.mxu0 %v948
        %1867 = vmatprep.subr.bf16.mxu0 %v941
        %1868 = vmatpush1.bf16.msra.mxu0 %v940
        %1869 = vmatprep.subr.bf16.mxu0 %v933
        %1870 = vmatpush1.bf16.msra.mxu0 %v932
        %1871 = vmatprep.subr.bf16.mxu0 %v1053
        %1872 = vmatpush2.bf16.msra.mxu0 %v1052
        %1873 = vmatprep.subr.bf16.mxu0 %v1045
        %1874 = vmatpush2.bf16.msra.mxu0 %v1044
        %1875 = vmatprep.subr.bf16.mxu0 %v1037
        %1876 = vmatpush2.bf16.msra.mxu0 %v1036
        %1877 = vmatprep.subr.bf16.mxu0 %v1029
        %1878 = vmatpush2.bf16.msra.mxu0 %v1028
        %1879 = vmatprep.subr.bf16.mxu0 %v1021
        %1880 = vmatpush2.bf16.msra.mxu0 %v1020
        %1881 = vmatprep.subr.bf16.mxu0 %v1013
        %1882 = vmatpush2.bf16.msra.mxu0 %v1012
        %1883 = vmatprep.subr.bf16.mxu0 %v1005
        %1884 = vmatpush2.bf16.msra.mxu0 %v1004
        %1885 = vmatprep.subr.bf16.mxu0 %v997
        %1886 = vmatpush2.bf16.msra.mxu0 %v996
        %1887 = vmatprep.mubr.bf16.mxu0 %v1751
        %1888 = vmatmul.mubr.bf16.gmra.mxu0 %v1749
        %v1889 = vpop.f32.mrf.mxu0
        %v1890 = vadd.f32 %v1849, %v1889
        %v1891 = vpop.f32.mrf.mxu0
        %v1892 = vadd.f32 %v1851, %v1891
        %v1893 = vpop.f32.mrf.mxu0
        %v1894 = vpop.f32.mrf.mxu0
        %1895 = vdwg.mxu0
        %1896 = vmatprep.subr.bf16.mxu0 %v1117
        %1897 = vmatpush1.bf16.msra.mxu0 %v1116
        %1898 = vmatprep.subr.bf16.mxu0 %v1109
        %1899 = vmatpush1.bf16.msra.mxu0 %v1108
        %1900 = vmatprep.subr.bf16.mxu0 %v1101
        %1901 = vmatpush1.bf16.msra.mxu0 %v1100
        %1902 = vmatprep.subr.bf16.mxu0 %v1093
        %1903 = vmatpush1.bf16.msra.mxu0 %v1092
        %1904 = vmatprep.subr.bf16.mxu0 %v1085
        %1905 = vmatpush1.bf16.msra.mxu0 %v1084
        %1906 = vmatprep.subr.bf16.mxu0 %v1077
        %1907 = vmatpush1.bf16.msra.mxu0 %v1076
        %1908 = vmatprep.subr.bf16.mxu0 %v1069
        %1909 = vmatpush1.bf16.msra.mxu0 %v1068
        %1910 = vmatprep.subr.bf16.mxu0 %v1061
        %1911 = vmatpush1.bf16.msra.mxu0 %v1060
        %1912 = vmatprep.subr.bf16.mxu0 %v1181
        %1913 = vmatpush2.bf16.msra.mxu0 %v1180
        %1914 = vmatprep.subr.bf16.mxu0 %v1173
        %1915 = vmatpush2.bf16.msra.mxu0 %v1172
        %1916 = vmatprep.subr.bf16.mxu0 %v1165
        %1917 = vmatpush2.bf16.msra.mxu0 %v1164
        %1918 = vmatprep.subr.bf16.mxu0 %v1157
        %1919 = vmatpush2.bf16.msra.mxu0 %v1156
        %1920 = vmatprep.subr.bf16.mxu0 %v1149
        %1921 = vmatpush2.bf16.msra.mxu0 %v1148
        %1922 = vmatprep.subr.bf16.mxu0 %v1141
        %1923 = vmatpush2.bf16.msra.mxu0 %v1140
        %1924 = vmatprep.subr.bf16.mxu0 %v1133
        %1925 = vmatpush2.bf16.msra.mxu0 %v1132
        %1926 = vmatprep.subr.bf16.mxu0 %v1125
        %1927 = vmatpush2.bf16.msra.mxu0 %v1124
        %1928 = vmatprep.mubr.bf16.mxu0 %v1748
        %1929 = vmatmul.mubr.bf16.gmra.mxu0 %v1734
        %v1930 = vpop.f32.mrf.mxu0
        %v1931 = vadd.f32 %v1890, %v1930
        %v1932 = vpop.f32.mrf.mxu0
        %v1933 = vadd.f32 %v1892, %v1932
        %v1934 = vpop.f32.mrf.mxu0
        %v1935 = vpop.f32.mrf.mxu0
        %1936 = vdwg.mxu0
        %1937 = vmatprep.subr.bf16.mxu0 %v1245
        %1938 = vmatpush1.bf16.msra.mxu0 %v1244
        %1939 = vmatprep.subr.bf16.mxu0 %v1237
        %1940 = vmatpush1.bf16.msra.mxu0 %v1236
        %1941 = vmatprep.subr.bf16.mxu0 %v1229
        %1942 = vmatpush1.bf16.msra.mxu0 %v1228
        %1943 = vmatprep.subr.bf16.mxu0 %v1221
        %1944 = vmatpush1.bf16.msra.mxu0 %v1220
        %1945 = vmatprep.subr.bf16.mxu0 %v1213
        %1946 = vmatpush1.bf16.msra.mxu0 %v1212
        %1947 = vmatprep.subr.bf16.mxu0 %v1205
        %1948 = vmatpush1.bf16.msra.mxu0 %v1204
        %1949 = vmatprep.subr.bf16.mxu0 %v1197
        %1950 = vmatpush1.bf16.msra.mxu0 %v1196
        %1951 = vmatprep.subr.bf16.mxu0 %v1189
        %1952 = vmatpush1.bf16.msra.mxu0 %v1188
        %1953 = vmatprep.subr.bf16.mxu0 %v1309
        %1954 = vmatpush2.bf16.msra.mxu0 %v1308
        %1955 = vmatprep.subr.bf16.mxu0 %v1301
        %1956 = vmatpush2.bf16.msra.mxu0 %v1300
        %1957 = vmatprep.subr.bf16.mxu0 %v1293
        %1958 = vmatpush2.bf16.msra.mxu0 %v1292
        %1959 = vmatprep.subr.bf16.mxu0 %v1285
        %1960 = vmatpush2.bf16.msra.mxu0 %v1284
        %1961 = vmatprep.subr.bf16.mxu0 %v1277
        %1962 = vmatpush2.bf16.msra.mxu0 %v1276
        %1963 = vmatprep.subr.bf16.mxu0 %v1269
        %1964 = vmatpush2.bf16.msra.mxu0 %v1268
        %1965 = vmatprep.subr.bf16.mxu0 %v1261
        %1966 = vmatpush2.bf16.msra.mxu0 %v1260
        %1967 = vmatprep.subr.bf16.mxu0 %v1253
        %1968 = vmatpush2.bf16.msra.mxu0 %v1252
        %1969 = vmatprep.mubr.bf16.mxu0 %v1752
        %1970 = vmatmul.mubr.bf16.gmra.mxu0 %v1750
        %v1971 = vpop.f32.mrf.mxu0
        %v1972 = vadd.f32 %v1931, %v1971
        %v1973 = vpop.f32.mrf.mxu0
        %v1974 = vadd.f32 %v1933, %v1973
        %v1975 = vpop.f32.mrf.mxu0
        %v1976 = vpop.f32.mrf.mxu0
        %1977 = vdwg.mxu0
        %1978 = vmatprep.subr.bf16.mxu0 %v1373
        %1979 = vmatpush1.bf16.msra.mxu0 %v1372
        %1980 = vmatprep.subr.bf16.mxu0 %v1365
        %1981 = vmatpush1.bf16.msra.mxu0 %v1364
        %1982 = vmatprep.subr.bf16.mxu0 %v1357
        %1983 = vmatpush1.bf16.msra.mxu0 %v1356
        %1984 = vmatprep.subr.bf16.mxu0 %v1349
        %1985 = vmatpush1.bf16.msra.mxu0 %v1348
        %1986 = vmatprep.subr.bf16.mxu0 %v1341
        %1987 = vmatpush1.bf16.msra.mxu0 %v1340
        %1988 = vmatprep.subr.bf16.mxu0 %v1333
        %1989 = vmatpush1.bf16.msra.mxu0 %v1332
        %1990 = vmatprep.subr.bf16.mxu0 %v1325
        %1991 = vmatpush1.bf16.msra.mxu0 %v1324
        %1992 = vmatprep.subr.bf16.mxu0 %v1317
        %1993 = vmatpush1.bf16.msra.mxu0 %v1316
        %1994 = vmatprep.subr.bf16.mxu0 %v1437
        %1995 = vmatpush2.bf16.msra.mxu0 %v1436
        %1996 = vmatprep.subr.bf16.mxu0 %v1429
        %1997 = vmatpush2.bf16.msra.mxu0 %v1428
        %1998 = vmatprep.subr.bf16.mxu0 %v1421
        %1999 = vmatpush2.bf16.msra.mxu0 %v1420
        %2000 = vmatprep.subr.bf16.mxu0 %v1413
        %2001 = vmatpush2.bf16.msra.mxu0 %v1412
        %2002 = vmatprep.subr.bf16.mxu0 %v1405
        %2003 = vmatpush2.bf16.msra.mxu0 %v1404
        %2004 = vmatprep.subr.bf16.mxu0 %v1397
        %2005 = vmatpush2.bf16.msra.mxu0 %v1396
        %2006 = vmatprep.subr.bf16.mxu0 %v1389
        %2007 = vmatpush2.bf16.msra.mxu0 %v1388
        %2008 = vmatprep.subr.bf16.mxu0 %v1381
        %2009 = vmatpush2.bf16.msra.mxu0 %v1380
        %2010 = vmatprep.mubr.bf16.mxu0 %v1790
        %2011 = vmatmul.mubr.bf16.gmra.mxu0 %v1776
        %v2012 = vpop.f32.mrf.mxu0
        %v2013 = vadd.f32 %v1972, %v2012
        %v2014 = vpop.f32.mrf.mxu0
        %v2015 = vadd.f32 %v1974, %v2014
        %v2016 = vpop.f32.mrf.mxu0
        %v2017 = vpop.f32.mrf.mxu0
        %2018 = vdwg.mxu0
        %2019 = vmatprep.subr.bf16.mxu0 %v1501
        %2020 = vmatpush1.bf16.msra.mxu0 %v1500
        %2021 = vmatprep.subr.bf16.mxu0 %v1493
        %2022 = vmatpush1.bf16.msra.mxu0 %v1492
        %2023 = vmatprep.subr.bf16.mxu0 %v1485
        %2024 = vmatpush1.bf16.msra.mxu0 %v1484
        %2025 = vmatprep.subr.bf16.mxu0 %v1477
        %2026 = vmatpush1.bf16.msra.mxu0 %v1476
        %2027 = vmatprep.subr.bf16.mxu0 %v1469
        %2028 = vmatpush1.bf16.msra.mxu0 %v1468
        %2029 = vmatprep.subr.bf16.mxu0 %v1461
        %2030 = vmatpush1.bf16.msra.mxu0 %v1460
        %2031 = vmatprep.subr.bf16.mxu0 %v1453
        %2032 = vmatpush1.bf16.msra.mxu0 %v1452
        %2033 = vmatprep.subr.bf16.mxu0 %v1445
        %2034 = vmatpush1.bf16.msra.mxu0 %v1444
        %2035 = vmatprep.subr.bf16.mxu0 %v1565
        %2036 = vmatpush2.bf16.msra.mxu0 %v1564
        %2037 = vmatprep.subr.bf16.mxu0 %v1557
        %2038 = vmatpush2.bf16.msra.mxu0 %v1556
        %2039 = vmatprep.subr.bf16.mxu0 %v1549
        %2040 = vmatpush2.bf16.msra.mxu0 %v1548
        %2041 = vmatprep.subr.bf16.mxu0 %v1541
        %2042 = vmatpush2.bf16.msra.mxu0 %v1540
        %2043 = vmatprep.subr.bf16.mxu0 %v1533
        %2044 = vmatpush2.bf16.msra.mxu0 %v1532
        %2045 = vmatprep.subr.bf16.mxu0 %v1525
        %2046 = vmatpush2.bf16.msra.mxu0 %v1524
        %2047 = vmatprep.subr.bf16.mxu0 %v1517
        %2048 = vmatpush2.bf16.msra.mxu0 %v1516
        %2049 = vmatprep.subr.bf16.mxu0 %v1509
        %2050 = vmatpush2.bf16.msra.mxu0 %v1508
        %2051 = vmatprep.mubr.bf16.mxu0 %v1799
        %2052 = vmatmul.mubr.bf16.gmra.mxu0 %v1798
        %v2053 = vpop.f32.mrf.mxu0
        %v2054 = vadd.f32 %v2013, %v2053
        %v2055 = vpop.f32.mrf.mxu0
        %v2056 = vadd.f32 %v2015, %v2055
        %v2057 = vpop.f32.mrf.mxu0
        %v2058 = vpop.f32.mrf.mxu0
        %2059 = vdwg.mxu0
        %2060 = vmatprep.subr.bf16.mxu0 %v1629
        %2061 = vmatpush1.bf16.msra.mxu0 %v1628
        %2062 = vmatprep.subr.bf16.mxu0 %v1621
        %2063 = vmatpush1.bf16.msra.mxu0 %v1620
        %2064 = vmatprep.subr.bf16.mxu0 %v1613
        %2065 = vmatpush1.bf16.msra.mxu0 %v1612
        %2066 = vmatprep.subr.bf16.mxu0 %v1605
        %2067 = vmatpush1.bf16.msra.mxu0 %v1604
        %2068 = vmatprep.subr.bf16.mxu0 %v1597
        %2069 = vmatpush1.bf16.msra.mxu0 %v1596
        %2070 = vmatprep.subr.bf16.mxu0 %v1589
        %2071 = vmatpush1.bf16.msra.mxu0 %v1588
        %2072 = vmatprep.subr.bf16.mxu0 %v1581
        %2073 = vmatpush1.bf16.msra.mxu0 %v1580
        %2074 = vmatprep.subr.bf16.mxu0 %v1573
        %2075 = vmatpush1.bf16.msra.mxu0 %v1572
        %2076 = vmatprep.subr.bf16.mxu0 %v1693
        %2077 = vmatpush2.bf16.msra.mxu0 %v1692
        %2078 = vmatprep.subr.bf16.mxu0 %v1685
        %2079 = vmatpush2.bf16.msra.mxu0 %v1684
        %2080 = vmatprep.subr.bf16.mxu0 %v1677
        %2081 = vmatpush2.bf16.msra.mxu0 %v1676
        %2082 = vmatprep.subr.bf16.mxu0 %v1669
        %2083 = vmatpush2.bf16.msra.mxu0 %v1668
        %2084 = vmatprep.subr.bf16.mxu0 %v1661
        %2085 = vmatpush2.bf16.msra.mxu0 %v1660
        %2086 = vmatprep.subr.bf16.mxu0 %v1653
        %2087 = vmatpush2.bf16.msra.mxu0 %v1652
        %2088 = vmatprep.subr.bf16.mxu0 %v1645
        %2089 = vmatpush2.bf16.msra.mxu0 %v1644
        %2090 = vmatprep.subr.bf16.mxu0 %v1637
        %2091 = vmatpush2.bf16.msra.mxu0 %v1636
        %2092 = vmatprep.mubr.bf16.mxu0 %v1797
        %2093 = vmatmul.mubr.bf16.gmra.mxu0 %v1783
        %v2094 = vpop.f32.mrf.mxu0
        %v2095 = vadd.f32 %v2054, %v2094
        %v2096 = vpop.f32.mrf.mxu0
        %v2097 = vadd.f32 %v2056, %v2096
        %v2098 = vpop.f32.mrf.mxu0
        %v2099 = vpop.f32.mrf.mxu0
        %2100 = vdwg.mxu0
        %2101 = vmatprep.subr.bf16.mxu0 %v863
        %2102 = vmatpush1.bf16.msra.mxu0 %v862
        %2103 = vmatprep.subr.bf16.mxu0 %v855
        %2104 = vmatpush1.bf16.msra.mxu0 %v854
        %2105 = vmatprep.subr.bf16.mxu0 %v847
        %2106 = vmatpush1.bf16.msra.mxu0 %v846
        %2107 = vmatprep.subr.bf16.mxu0 %v839
        %2108 = vmatpush1.bf16.msra.mxu0 %v838
        %2109 = vmatprep.subr.bf16.mxu0 %v831
        %2110 = vmatpush1.bf16.msra.mxu0 %v830
        %2111 = vmatprep.subr.bf16.mxu0 %v823
        %2112 = vmatpush1.bf16.msra.mxu0 %v822
        %2113 = vmatprep.subr.bf16.mxu0 %v815
        %2114 = vmatpush1.bf16.msra.mxu0 %v814
        %2115 = vmatprep.subr.bf16.mxu0 %v807
        %2116 = vmatpush1.bf16.msra.mxu0 %v806
        %2117 = vmatprep.subr.bf16.mxu0 %v927
        %2118 = vmatpush2.bf16.msra.mxu0 %v926
        %2119 = vmatprep.subr.bf16.mxu0 %v919
        %2120 = vmatpush2.bf16.msra.mxu0 %v918
        %2121 = vmatprep.subr.bf16.mxu0 %v911
        %2122 = vmatpush2.bf16.msra.mxu0 %v910
        %2123 = vmatprep.subr.bf16.mxu0 %v903
        %2124 = vmatpush2.bf16.msra.mxu0 %v902
        %2125 = vmatprep.subr.bf16.mxu0 %v895
        %2126 = vmatpush2.bf16.msra.mxu0 %v894
        %2127 = vmatprep.subr.bf16.mxu0 %v887
        %2128 = vmatpush2.bf16.msra.mxu0 %v886
        %2129 = vmatprep.subr.bf16.mxu0 %v879
        %2130 = vmatpush2.bf16.msra.mxu0 %v878
        %2131 = vmatprep.subr.bf16.mxu0 %v871
        %2132 = vmatpush2.bf16.msra.mxu0 %v870
        %2133 = vmatprep.mubr.bf16.mxu0 %v1741
        %2134 = vmatmul.mubr.bf16.gmra.mxu0 %v1727
        %v2135 = vpop.f32.mrf.mxu0
        %v2136 = vadd.f32 0.0, %v2135
        %v2137 = vpop.f32.mrf.mxu0
        %v2138 = vadd.f32 0.0, %v2137
        %v2139 = vpop.f32.mrf.mxu0
        %v2140 = vpop.f32.mrf.mxu0
        %2141 = vdwg.mxu0
        %2142 = vmatprep.subr.bf16.mxu0 %v991
        %2143 = vmatpush1.bf16.msra.mxu0 %v990
        %2144 = vmatprep.subr.bf16.mxu0 %v983
        %2145 = vmatpush1.bf16.msra.mxu0 %v982
        %2146 = vmatprep.subr.bf16.mxu0 %v975
        %2147 = vmatpush1.bf16.msra.mxu0 %v974
        %2148 = vmatprep.subr.bf16.mxu0 %v967
        %2149 = vmatpush1.bf16.msra.mxu0 %v966
        %2150 = vmatprep.subr.bf16.mxu0 %v959
        %2151 = vmatpush1.bf16.msra.mxu0 %v958
        %2152 = vmatprep.subr.bf16.mxu0 %v951
        %2153 = vmatpush1.bf16.msra.mxu0 %v950
        %2154 = vmatprep.subr.bf16.mxu0 %v943
        %2155 = vmatpush1.bf16.msra.mxu0 %v942
        %2156 = vmatprep.subr.bf16.mxu0 %v935
        %2157 = vmatpush1.bf16.msra.mxu0 %v934
        %2158 = vmatprep.subr.bf16.mxu0 %v1055
        %2159 = vmatpush2.bf16.msra.mxu0 %v1054
        %2160 = vmatprep.subr.bf16.mxu0 %v1047
        %2161 = vmatpush2.bf16.msra.mxu0 %v1046
        %2162 = vmatprep.subr.bf16.mxu0 %v1039
        %2163 = vmatpush2.bf16.msra.mxu0 %v1038
        %2164 = vmatprep.subr.bf16.mxu0 %v1031
        %2165 = vmatpush2.bf16.msra.mxu0 %v1030
        %2166 = vmatprep.subr.bf16.mxu0 %v1023
        %2167 = vmatpush2.bf16.msra.mxu0 %v1022
        %2168 = vmatprep.subr.bf16.mxu0 %v1015
        %2169 = vmatpush2.bf16.msra.mxu0 %v1014
        %2170 = vmatprep.subr.bf16.mxu0 %v1007
        %2171 = vmatpush2.bf16.msra.mxu0 %v1006
        %2172 = vmatprep.subr.bf16.mxu0 %v999
        %2173 = vmatpush2.bf16.msra.mxu0 %v998
        %2174 = vmatprep.mubr.bf16.mxu0 %v1751
        %2175 = vmatmul.mubr.bf16.gmra.mxu0 %v1749
        %v2176 = vpop.f32.mrf.mxu0
        %v2177 = vadd.f32 %v2136, %v2176
        %v2178 = vpop.f32.mrf.mxu0
        %v2179 = vadd.f32 %v2138, %v2178
        %v2180 = vpop.f32.mrf.mxu0
        %v2181 = vpop.f32.mrf.mxu0
        %2182 = vdwg.mxu0
        %2183 = vmatprep.subr.bf16.mxu0 %v1119
        %2184 = vmatpush1.bf16.msra.mxu0 %v1118
        %2185 = vmatprep.subr.bf16.mxu0 %v1111
        %2186 = vmatpush1.bf16.msra.mxu0 %v1110
        %2187 = vmatprep.subr.bf16.mxu0 %v1103
        %2188 = vmatpush1.bf16.msra.mxu0 %v1102
        %2189 = vmatprep.subr.bf16.mxu0 %v1095
        %2190 = vmatpush1.bf16.msra.mxu0 %v1094
        %2191 = vmatprep.subr.bf16.mxu0 %v1087
        %2192 = vmatpush1.bf16.msra.mxu0 %v1086
        %2193 = vmatprep.subr.bf16.mxu0 %v1079
        %2194 = vmatpush1.bf16.msra.mxu0 %v1078
        %2195 = vmatprep.subr.bf16.mxu0 %v1071
        %2196 = vmatpush1.bf16.msra.mxu0 %v1070
        %2197 = vmatprep.subr.bf16.mxu0 %v1063
        %2198 = vmatpush1.bf16.msra.mxu0 %v1062
        %2199 = vmatprep.subr.bf16.mxu0 %v1183
        %2200 = vmatpush2.bf16.msra.mxu0 %v1182
        %2201 = vmatprep.subr.bf16.mxu0 %v1175
        %2202 = vmatpush2.bf16.msra.mxu0 %v1174
        %2203 = vmatprep.subr.bf16.mxu0 %v1167
        %2204 = vmatpush2.bf16.msra.mxu0 %v1166
        %2205 = vmatprep.subr.bf16.mxu0 %v1159
        %2206 = vmatpush2.bf16.msra.mxu0 %v1158
        %2207 = vmatprep.subr.bf16.mxu0 %v1151
        %2208 = vmatpush2.bf16.msra.mxu0 %v1150
        %2209 = vmatprep.subr.bf16.mxu0 %v1143
        %2210 = vmatpush2.bf16.msra.mxu0 %v1142
        %2211 = vmatprep.subr.bf16.mxu0 %v1135
        %2212 = vmatpush2.bf16.msra.mxu0 %v1134
        %2213 = vmatprep.subr.bf16.mxu0 %v1127
        %2214 = vmatpush2.bf16.msra.mxu0 %v1126
        %2215 = vmatprep.mubr.bf16.mxu0 %v1748
        %2216 = vmatmul.mubr.bf16.gmra.mxu0 %v1734
        %v2217 = vpop.f32.mrf.mxu0
        %v2218 = vadd.f32 %v2177, %v2217
        %v2219 = vpop.f32.mrf.mxu0
        %v2220 = vadd.f32 %v2179, %v2219
        %v2221 = vpop.f32.mrf.mxu0
        %v2222 = vpop.f32.mrf.mxu0
        %2223 = vdwg.mxu0
        %2224 = vmatprep.subr.bf16.mxu0 %v1247
        %2225 = vmatpush1.bf16.msra.mxu0 %v1246
        %2226 = vmatprep.subr.bf16.mxu0 %v1239
        %2227 = vmatpush1.bf16.msra.mxu0 %v1238
        %2228 = vmatprep.subr.bf16.mxu0 %v1231
        %2229 = vmatpush1.bf16.msra.mxu0 %v1230
        %2230 = vmatprep.subr.bf16.mxu0 %v1223
        %2231 = vmatpush1.bf16.msra.mxu0 %v1222
        %2232 = vmatprep.subr.bf16.mxu0 %v1215
        %2233 = vmatpush1.bf16.msra.mxu0 %v1214
        %2234 = vmatprep.subr.bf16.mxu0 %v1207
        %2235 = vmatpush1.bf16.msra.mxu0 %v1206
        %2236 = vmatprep.subr.bf16.mxu0 %v1199
        %2237 = vmatpush1.bf16.msra.mxu0 %v1198
        %2238 = vmatprep.subr.bf16.mxu0 %v1191
        %2239 = vmatpush1.bf16.msra.mxu0 %v1190
        %2240 = vmatprep.subr.bf16.mxu0 %v1311
        %2241 = vmatpush2.bf16.msra.mxu0 %v1310
        %2242 = vmatprep.subr.bf16.mxu0 %v1303
        %2243 = vmatpush2.bf16.msra.mxu0 %v1302
        %2244 = vmatprep.subr.bf16.mxu0 %v1295
        %2245 = vmatpush2.bf16.msra.mxu0 %v1294
        %2246 = vmatprep.subr.bf16.mxu0 %v1287
        %2247 = vmatpush2.bf16.msra.mxu0 %v1286
        %2248 = vmatprep.subr.bf16.mxu0 %v1279
        %2249 = vmatpush2.bf16.msra.mxu0 %v1278
        %2250 = vmatprep.subr.bf16.mxu0 %v1271
        %2251 = vmatpush2.bf16.msra.mxu0 %v1270
        %2252 = vmatprep.subr.bf16.mxu0 %v1263
        %2253 = vmatpush2.bf16.msra.mxu0 %v1262
        %2254 = vmatprep.subr.bf16.mxu0 %v1255
        %2255 = vmatpush2.bf16.msra.mxu0 %v1254
        %2256 = vmatprep.mubr.bf16.mxu0 %v1752
        %2257 = vmatmul.mubr.bf16.gmra.mxu0 %v1750
        %v2258 = vpop.f32.mrf.mxu0
        %v2259 = vadd.f32 %v2218, %v2258
        %v2260 = vpop.f32.mrf.mxu0
        %v2261 = vadd.f32 %v2220, %v2260
        %v2262 = vpop.f32.mrf.mxu0
        %v2263 = vpop.f32.mrf.mxu0
        %2264 = vdwg.mxu0
        %2265 = vmatprep.subr.bf16.mxu0 %v1375
        %2266 = vmatpush1.bf16.msra.mxu0 %v1374
        %2267 = vmatprep.subr.bf16.mxu0 %v1367
        %2268 = vmatpush1.bf16.msra.mxu0 %v1366
        %2269 = vmatprep.subr.bf16.mxu0 %v1359
        %2270 = vmatpush1.bf16.msra.mxu0 %v1358
        %2271 = vmatprep.subr.bf16.mxu0 %v1351
        %2272 = vmatpush1.bf16.msra.mxu0 %v1350
        %2273 = vmatprep.subr.bf16.mxu0 %v1343
        %2274 = vmatpush1.bf16.msra.mxu0 %v1342
        %2275 = vmatprep.subr.bf16.mxu0 %v1335
        %2276 = vmatpush1.bf16.msra.mxu0 %v1334
        %2277 = vmatprep.subr.bf16.mxu0 %v1327
        %2278 = vmatpush1.bf16.msra.mxu0 %v1326
        %2279 = vmatprep.subr.bf16.mxu0 %v1319
        %2280 = vmatpush1.bf16.msra.mxu0 %v1318
        %2281 = vmatprep.subr.bf16.mxu0 %v1439
        %2282 = vmatpush2.bf16.msra.mxu0 %v1438
        %2283 = vmatprep.subr.bf16.mxu0 %v1431
        %2284 = vmatpush2.bf16.msra.mxu0 %v1430
        %2285 = vmatprep.subr.bf16.mxu0 %v1423
        %2286 = vmatpush2.bf16.msra.mxu0 %v1422
        %2287 = vmatprep.subr.bf16.mxu0 %v1415
        %2288 = vmatpush2.bf16.msra.mxu0 %v1414
        %2289 = vmatprep.subr.bf16.mxu0 %v1407
        %2290 = vmatpush2.bf16.msra.mxu0 %v1406
        %2291 = vmatprep.subr.bf16.mxu0 %v1399
        %2292 = vmatpush2.bf16.msra.mxu0 %v1398
        %2293 = vmatprep.subr.bf16.mxu0 %v1391
        %2294 = vmatpush2.bf16.msra.mxu0 %v1390
        %2295 = vmatprep.subr.bf16.mxu0 %v1383
        %2296 = vmatpush2.bf16.msra.mxu0 %v1382
        %2297 = vmatprep.mubr.bf16.mxu0 %v1790
        %2298 = vmatmul.mubr.bf16.gmra.mxu0 %v1776
        %v2299 = vpop.f32.mrf.mxu0
        %v2300 = vadd.f32 %v2259, %v2299
        %v2301 = vpop.f32.mrf.mxu0
        %v2302 = vadd.f32 %v2261, %v2301
        %v2303 = vpop.f32.mrf.mxu0
        %v2304 = vpop.f32.mrf.mxu0
        %2305 = vdwg.mxu0
        %2306 = vmatprep.subr.bf16.mxu0 %v1503
        %2307 = vmatpush1.bf16.msra.mxu0 %v1502
        %2308 = vmatprep.subr.bf16.mxu0 %v1495
        %2309 = vmatpush1.bf16.msra.mxu0 %v1494
        %2310 = vmatprep.subr.bf16.mxu0 %v1487
        %2311 = vmatpush1.bf16.msra.mxu0 %v1486
        %2312 = vmatprep.subr.bf16.mxu0 %v1479
        %2313 = vmatpush1.bf16.msra.mxu0 %v1478
        %2314 = vmatprep.subr.bf16.mxu0 %v1471
        %2315 = vmatpush1.bf16.msra.mxu0 %v1470
        %2316 = vmatprep.subr.bf16.mxu0 %v1463
        %2317 = vmatpush1.bf16.msra.mxu0 %v1462
        %2318 = vmatprep.subr.bf16.mxu0 %v1455
        %2319 = vmatpush1.bf16.msra.mxu0 %v1454
        %2320 = vmatprep.subr.bf16.mxu0 %v1447
        %2321 = vmatpush1.bf16.msra.mxu0 %v1446
        %2322 = vmatprep.subr.bf16.mxu0 %v1567
        %2323 = vmatpush2.bf16.msra.mxu0 %v1566
        %2324 = vmatprep.subr.bf16.mxu0 %v1559
        %2325 = vmatpush2.bf16.msra.mxu0 %v1558
        %2326 = vmatprep.subr.bf16.mxu0 %v1551
        %2327 = vmatpush2.bf16.msra.mxu0 %v1550
        %2328 = vmatprep.subr.bf16.mxu0 %v1543
        %2329 = vmatpush2.bf16.msra.mxu0 %v1542
        %2330 = vmatprep.subr.bf16.mxu0 %v1535
        %2331 = vmatpush2.bf16.msra.mxu0 %v1534
        %2332 = vmatprep.subr.bf16.mxu0 %v1527
        %2333 = vmatpush2.bf16.msra.mxu0 %v1526
        %2334 = vmatprep.subr.bf16.mxu0 %v1519
        %2335 = vmatpush2.bf16.msra.mxu0 %v1518
        %2336 = vmatprep.subr.bf16.mxu0 %v1511
        %2337 = vmatpush2.bf16.msra.mxu0 %v1510
        %2338 = vmatprep.mubr.bf16.mxu0 %v1799
        %2339 = vmatmul.mubr.bf16.gmra.mxu0 %v1798
        %v2340 = vpop.f32.mrf.mxu0
        %v2341 = vadd.f32 %v2300, %v2340
        %v2342 = vpop.f32.mrf.mxu0
        %v2343 = vadd.f32 %v2302, %v2342
        %v2344 = vpop.f32.mrf.mxu0
        %v2345 = vpop.f32.mrf.mxu0
        %2346 = vdwg.mxu0
        %2347 = vmatprep.subr.bf16.mxu0 %v1631
        %2348 = vmatpush1.bf16.msra.mxu0 %v1630
        %2349 = vmatprep.subr.bf16.mxu0 %v1623
        %2350 = vmatpush1.bf16.msra.mxu0 %v1622
        %2351 = vmatprep.subr.bf16.mxu0 %v1615
        %2352 = vmatpush1.bf16.msra.mxu0 %v1614
        %2353 = vmatprep.subr.bf16.mxu0 %v1607
        %2354 = vmatpush1.bf16.msra.mxu0 %v1606
        %2355 = vmatprep.subr.bf16.mxu0 %v1599
        %2356 = vmatpush1.bf16.msra.mxu0 %v1598
        %2357 = vmatprep.subr.bf16.mxu0 %v1591
        %2358 = vmatpush1.bf16.msra.mxu0 %v1590
        %2359 = vmatprep.subr.bf16.mxu0 %v1583
        %2360 = vmatpush1.bf16.msra.mxu0 %v1582
        %2361 = vmatprep.subr.bf16.mxu0 %v1575
        %2362 = vmatpush1.bf16.msra.mxu0 %v1574
        %2363 = vmatprep.subr.bf16.mxu0 %v1695
        %2364 = vmatpush2.bf16.msra.mxu0 %v1694
        %2365 = vmatprep.subr.bf16.mxu0 %v1687
        %2366 = vmatpush2.bf16.msra.mxu0 %v1686
        %2367 = vmatprep.subr.bf16.mxu0 %v1679
        %2368 = vmatpush2.bf16.msra.mxu0 %v1678
        %2369 = vmatprep.subr.bf16.mxu0 %v1671
        %2370 = vmatpush2.bf16.msra.mxu0 %v1670
        %2371 = vmatprep.subr.bf16.mxu0 %v1663
        %2372 = vmatpush2.bf16.msra.mxu0 %v1662
        %2373 = vmatprep.subr.bf16.mxu0 %v1655
        %2374 = vmatpush2.bf16.msra.mxu0 %v1654
        %2375 = vmatprep.subr.bf16.mxu0 %v1647
        %2376 = vmatpush2.bf16.msra.mxu0 %v1646
        %2377 = vmatprep.subr.bf16.mxu0 %v1639
        %2378 = vmatpush2.bf16.msra.mxu0 %v1638
        %2379 = vmatprep.mubr.bf16.mxu0 %v1797
        %2380 = vmatmul.mubr.bf16.gmra.mxu0 %v1783
        %v2381 = vpop.f32.mrf.mxu0
        %v2382 = vadd.f32 %v2341, %v2381
        %v2383 = vpop.f32.mrf.mxu0
        %v2384 = vadd.f32 %v2343, %v2383
        %v2385 = vpop.f32.mrf.mxu0
        %v2386 = vpop.f32.mrf.mxu0
        %2387 = vdwg.mxu0
        %2388 = vmatprep.subr.bf16.mxu0 %v865
        %2389 = vmatpush1.bf16.msra.mxu0 %v864
        %2390 = vmatprep.subr.bf16.mxu0 %v857
        %2391 = vmatpush1.bf16.msra.mxu0 %v856
        %2392 = vmatprep.subr.bf16.mxu0 %v849
        %2393 = vmatpush1.bf16.msra.mxu0 %v848
        %2394 = vmatprep.subr.bf16.mxu0 %v841
        %2395 = vmatpush1.bf16.msra.mxu0 %v840
        %2396 = vmatprep.subr.bf16.mxu0 %v833
        %2397 = vmatpush1.bf16.msra.mxu0 %v832
        %2398 = vmatprep.subr.bf16.mxu0 %v825
        %2399 = vmatpush1.bf16.msra.mxu0 %v824
        %2400 = vmatprep.subr.bf16.mxu0 %v817
        %2401 = vmatpush1.bf16.msra.mxu0 %v816
        %2402 = vmatprep.subr.bf16.mxu0 %v809
        %2403 = vmatpush1.bf16.msra.mxu0 %v808
        %2404 = vmatprep.subr.bf16.mxu0 %v929
        %2405 = vmatpush2.bf16.msra.mxu0 %v928
        %2406 = vmatprep.subr.bf16.mxu0 %v921
        %2407 = vmatpush2.bf16.msra.mxu0 %v920
        %2408 = vmatprep.subr.bf16.mxu0 %v913
        %2409 = vmatpush2.bf16.msra.mxu0 %v912
        %2410 = vmatprep.subr.bf16.mxu0 %v905
        %2411 = vmatpush2.bf16.msra.mxu0 %v904
        %2412 = vmatprep.subr.bf16.mxu0 %v897
        %2413 = vmatpush2.bf16.msra.mxu0 %v896
        %2414 = vmatprep.subr.bf16.mxu0 %v889
        %2415 = vmatpush2.bf16.msra.mxu0 %v888
        %2416 = vmatprep.subr.bf16.mxu0 %v881
        %2417 = vmatpush2.bf16.msra.mxu0 %v880
        %2418 = vmatprep.subr.bf16.mxu0 %v873
        %2419 = vmatpush2.bf16.msra.mxu0 %v872
        %2420 = vmatprep.mubr.bf16.mxu0 %v1741
        %2421 = vmatmul.mubr.bf16.gmra.mxu0 %v1727
        %v2422 = vpop.f32.mrf.mxu0
        %v2423 = vadd.f32 0.0, %v2422
        %v2424 = vpop.f32.mrf.mxu0
        %v2425 = vadd.f32 0.0, %v2424
        %v2426 = vpop.f32.mrf.mxu0
        %v2427 = vpop.f32.mrf.mxu0
        %2428 = vdwg.mxu0
        %2429 = vmatprep.subr.bf16.mxu0 %v993
        %2430 = vmatpush1.bf16.msra.mxu0 %v992
        %2431 = vmatprep.subr.bf16.mxu0 %v985
        %2432 = vmatpush1.bf16.msra.mxu0 %v984
        %2433 = vmatprep.subr.bf16.mxu0 %v977
        %2434 = vmatpush1.bf16.msra.mxu0 %v976
        %2435 = vmatprep.subr.bf16.mxu0 %v969
        %2436 = vmatpush1.bf16.msra.mxu0 %v968
        %2437 = vmatprep.subr.bf16.mxu0 %v961
        %2438 = vmatpush1.bf16.msra.mxu0 %v960
        %2439 = vmatprep.subr.bf16.mxu0 %v953
        %2440 = vmatpush1.bf16.msra.mxu0 %v952
        %2441 = vmatprep.subr.bf16.mxu0 %v945
        %2442 = vmatpush1.bf16.msra.mxu0 %v944
        %2443 = vmatprep.subr.bf16.mxu0 %v937
        %2444 = vmatpush1.bf16.msra.mxu0 %v936
        %2445 = vmatprep.subr.bf16.mxu0 %v1057
        %2446 = vmatpush2.bf16.msra.mxu0 %v1056
        %2447 = vmatprep.subr.bf16.mxu0 %v1049
        %2448 = vmatpush2.bf16.msra.mxu0 %v1048
        %2449 = vmatprep.subr.bf16.mxu0 %v1041
        %2450 = vmatpush2.bf16.msra.mxu0 %v1040
        %2451 = vmatprep.subr.bf16.mxu0 %v1033
        %2452 = vmatpush2.bf16.msra.mxu0 %v1032
        %2453 = vmatprep.subr.bf16.mxu0 %v1025
        %2454 = vmatpush2.bf16.msra.mxu0 %v1024
        %2455 = vmatprep.subr.bf16.mxu0 %v1017
        %2456 = vmatpush2.bf16.msra.mxu0 %v1016
        %2457 = vmatprep.subr.bf16.mxu0 %v1009
        %2458 = vmatpush2.bf16.msra.mxu0 %v1008
        %2459 = vmatprep.subr.bf16.mxu0 %v1001
        %2460 = vmatpush2.bf16.msra.mxu0 %v1000
        %2461 = vmatprep.mubr.bf16.mxu0 %v1751
        %2462 = vmatmul.mubr.bf16.gmra.mxu0 %v1749
        %v2463 = vpop.f32.mrf.mxu0
        %v2464 = vadd.f32 %v2423, %v2463
        %v2465 = vpop.f32.mrf.mxu0
        %v2466 = vadd.f32 %v2425, %v2465
        %v2467 = vpop.f32.mrf.mxu0
        %v2468 = vpop.f32.mrf.mxu0
        %2469 = vdwg.mxu0
        %2470 = vmatprep.subr.bf16.mxu0 %v1121
        %2471 = vmatpush1.bf16.msra.mxu0 %v1120
        %2472 = vmatprep.subr.bf16.mxu0 %v1113
        %2473 = vmatpush1.bf16.msra.mxu0 %v1112
        %2474 = vmatprep.subr.bf16.mxu0 %v1105
        %2475 = vmatpush1.bf16.msra.mxu0 %v1104
        %2476 = vmatprep.subr.bf16.mxu0 %v1097
        %2477 = vmatpush1.bf16.msra.mxu0 %v1096
        %2478 = vmatprep.subr.bf16.mxu0 %v1089
        %2479 = vmatpush1.bf16.msra.mxu0 %v1088
        %2480 = vmatprep.subr.bf16.mxu0 %v1081
        %2481 = vmatpush1.bf16.msra.mxu0 %v1080
        %2482 = vmatprep.subr.bf16.mxu0 %v1073
        %2483 = vmatpush1.bf16.msra.mxu0 %v1072
        %2484 = vmatprep.subr.bf16.mxu0 %v1065
        %2485 = vmatpush1.bf16.msra.mxu0 %v1064
        %2486 = vmatprep.subr.bf16.mxu0 %v1185
        %2487 = vmatpush2.bf16.msra.mxu0 %v1184
        %2488 = vmatprep.subr.bf16.mxu0 %v1177
        %2489 = vmatpush2.bf16.msra.mxu0 %v1176
        %2490 = vmatprep.subr.bf16.mxu0 %v1169
        %2491 = vmatpush2.bf16.msra.mxu0 %v1168
        %2492 = vmatprep.subr.bf16.mxu0 %v1161
        %2493 = vmatpush2.bf16.msra.mxu0 %v1160
        %2494 = vmatprep.subr.bf16.mxu0 %v1153
        %2495 = vmatpush2.bf16.msra.mxu0 %v1152
        %2496 = vmatprep.subr.bf16.mxu0 %v1145
        %2497 = vmatpush2.bf16.msra.mxu0 %v1144
        %2498 = vmatprep.subr.bf16.mxu0 %v1137
        %2499 = vmatpush2.bf16.msra.mxu0 %v1136
        %2500 = vmatprep.subr.bf16.mxu0 %v1129
        %2501 = vmatpush2.bf16.msra.mxu0 %v1128
        %2502 = vmatprep.mubr.bf16.mxu0 %v1748
        %2503 = vmatmul.mubr.bf16.gmra.mxu0 %v1734
        %v2504 = vpop.f32.mrf.mxu0
        %v2505 = vadd.f32 %v2464, %v2504
        %v2506 = vpop.f32.mrf.mxu0
        %v2507 = vadd.f32 %v2466, %v2506
        %v2508 = vpop.f32.mrf.mxu0
        %v2509 = vpop.f32.mrf.mxu0
        %2510 = vdwg.mxu0
        %2511 = vmatprep.subr.bf16.mxu0 %v1249
        %2512 = vmatpush1.bf16.msra.mxu0 %v1248
        %2513 = vmatprep.subr.bf16.mxu0 %v1241
        %2514 = vmatpush1.bf16.msra.mxu0 %v1240
        %2515 = vmatprep.subr.bf16.mxu0 %v1233
        %2516 = vmatpush1.bf16.msra.mxu0 %v1232
        %2517 = vmatprep.subr.bf16.mxu0 %v1225
        %2518 = vmatpush1.bf16.msra.mxu0 %v1224
        %2519 = vmatprep.subr.bf16.mxu0 %v1217
        %2520 = vmatpush1.bf16.msra.mxu0 %v1216
        %2521 = vmatprep.subr.bf16.mxu0 %v1209
        %2522 = vmatpush1.bf16.msra.mxu0 %v1208
        %2523 = vmatprep.subr.bf16.mxu0 %v1201
        %2524 = vmatpush1.bf16.msra.mxu0 %v1200
        %2525 = vmatprep.subr.bf16.mxu0 %v1193
        %2526 = vmatpush1.bf16.msra.mxu0 %v1192
        %2527 = vmatprep.subr.bf16.mxu0 %v1313
        %2528 = vmatpush2.bf16.msra.mxu0 %v1312
        %2529 = vmatprep.subr.bf16.mxu0 %v1305
        %2530 = vmatpush2.bf16.msra.mxu0 %v1304
        %2531 = vmatprep.subr.bf16.mxu0 %v1297
        %2532 = vmatpush2.bf16.msra.mxu0 %v1296
        %2533 = vmatprep.subr.bf16.mxu0 %v1289
        %2534 = vmatpush2.bf16.msra.mxu0 %v1288
        %2535 = vmatprep.subr.bf16.mxu0 %v1281
        %2536 = vmatpush2.bf16.msra.mxu0 %v1280
        %2537 = vmatprep.subr.bf16.mxu0 %v1273
        %2538 = vmatpush2.bf16.msra.mxu0 %v1272
        %2539 = vmatprep.subr.bf16.mxu0 %v1265
        %2540 = vmatpush2.bf16.msra.mxu0 %v1264
        %2541 = vmatprep.subr.bf16.mxu0 %v1257
        %2542 = vmatpush2.bf16.msra.mxu0 %v1256
        %2543 = vmatprep.mubr.bf16.mxu0 %v1752
        %2544 = vmatmul.mubr.bf16.gmra.mxu0 %v1750
        %v2545 = vpop.f32.mrf.mxu0
        %v2546 = vadd.f32 %v2505, %v2545
        %v2547 = vpop.f32.mrf.mxu0
        %v2548 = vadd.f32 %v2507, %v2547
        %v2549 = vpop.f32.mrf.mxu0
        %v2550 = vpop.f32.mrf.mxu0
        %2551 = vdwg.mxu0
        %2552 = vmatprep.subr.bf16.mxu0 %v1377
        %2553 = vmatpush1.bf16.msra.mxu0 %v1376
        %2554 = vmatprep.subr.bf16.mxu0 %v1369
        %2555 = vmatpush1.bf16.msra.mxu0 %v1368
        %2556 = vmatprep.subr.bf16.mxu0 %v1361
        %2557 = vmatpush1.bf16.msra.mxu0 %v1360
        %2558 = vmatprep.subr.bf16.mxu0 %v1353
        %2559 = vmatpush1.bf16.msra.mxu0 %v1352
        %2560 = vmatprep.subr.bf16.mxu0 %v1345
        %2561 = vmatpush1.bf16.msra.mxu0 %v1344
        %2562 = vmatprep.subr.bf16.mxu0 %v1337
        %2563 = vmatpush1.bf16.msra.mxu0 %v1336
        %2564 = vmatprep.subr.bf16.mxu0 %v1329
        %2565 = vmatpush1.bf16.msra.mxu0 %v1328
        %2566 = vmatprep.subr.bf16.mxu0 %v1321
        %2567 = vmatpush1.bf16.msra.mxu0 %v1320
        %2568 = vmatprep.subr.bf16.mxu0 %v1441
        %2569 = vmatpush2.bf16.msra.mxu0 %v1440
        %2570 = vmatprep.subr.bf16.mxu0 %v1433
        %2571 = vmatpush2.bf16.msra.mxu0 %v1432
        %2572 = vmatprep.subr.bf16.mxu0 %v1425
        %2573 = vmatpush2.bf16.msra.mxu0 %v1424
        %2574 = vmatprep.subr.bf16.mxu0 %v1417
        %2575 = vmatpush2.bf16.msra.mxu0 %v1416
        %2576 = vmatprep.subr.bf16.mxu0 %v1409
        %2577 = vmatpush2.bf16.msra.mxu0 %v1408
        %2578 = vmatprep.subr.bf16.mxu0 %v1401
        %2579 = vmatpush2.bf16.msra.mxu0 %v1400
        %2580 = vmatprep.subr.bf16.mxu0 %v1393
        %2581 = vmatpush2.bf16.msra.mxu0 %v1392
        %2582 = vmatprep.subr.bf16.mxu0 %v1385
        %2583 = vmatpush2.bf16.msra.mxu0 %v1384
        %2584 = vmatprep.mubr.bf16.mxu0 %v1790
        %2585 = vmatmul.mubr.bf16.gmra.mxu0 %v1776
        %v2586 = vpop.f32.mrf.mxu0
        %v2587 = vadd.f32 %v2546, %v2586
        %v2588 = vpop.f32.mrf.mxu0
        %v2589 = vadd.f32 %v2548, %v2588
        %v2590 = vpop.f32.mrf.mxu0
        %v2591 = vpop.f32.mrf.mxu0
        %2592 = vdwg.mxu0
        %2593 = vmatprep.subr.bf16.mxu0 %v1505
        %2594 = vmatpush1.bf16.msra.mxu0 %v1504
        %2595 = vmatprep.subr.bf16.mxu0 %v1497
        %2596 = vmatpush1.bf16.msra.mxu0 %v1496
        %2597 = vmatprep.subr.bf16.mxu0 %v1489
        %2598 = vmatpush1.bf16.msra.mxu0 %v1488
        %2599 = vmatprep.subr.bf16.mxu0 %v1481
        %2600 = vmatpush1.bf16.msra.mxu0 %v1480
        %2601 = vmatprep.subr.bf16.mxu0 %v1473
        %2602 = vmatpush1.bf16.msra.mxu0 %v1472
        %2603 = vmatprep.subr.bf16.mxu0 %v1465
        %2604 = vmatpush1.bf16.msra.mxu0 %v1464
        %2605 = vmatprep.subr.bf16.mxu0 %v1457
        %2606 = vmatpush1.bf16.msra.mxu0 %v1456
        %2607 = vmatprep.subr.bf16.mxu0 %v1449
        %2608 = vmatpush1.bf16.msra.mxu0 %v1448
        %2609 = vmatprep.subr.bf16.mxu0 %v1569
        %2610 = vmatpush2.bf16.msra.mxu0 %v1568
        %2611 = vmatprep.subr.bf16.mxu0 %v1561
        %2612 = vmatpush2.bf16.msra.mxu0 %v1560
        %2613 = vmatprep.subr.bf16.mxu0 %v1553
        %2614 = vmatpush2.bf16.msra.mxu0 %v1552
        %2615 = vmatprep.subr.bf16.mxu0 %v1545
        %2616 = vmatpush2.bf16.msra.mxu0 %v1544
        %2617 = vmatprep.subr.bf16.mxu0 %v1537
        %2618 = vmatpush2.bf16.msra.mxu0 %v1536
        %2619 = vmatprep.subr.bf16.mxu0 %v1529
        %2620 = vmatpush2.bf16.msra.mxu0 %v1528
        %2621 = vmatprep.subr.bf16.mxu0 %v1521
        %2622 = vmatpush2.bf16.msra.mxu0 %v1520
        %2623 = vmatprep.subr.bf16.mxu0 %v1513
        %2624 = vmatpush2.bf16.msra.mxu0 %v1512
        %2625 = vmatprep.mubr.bf16.mxu0 %v1799
        %2626 = vmatmul.mubr.bf16.gmra.mxu0 %v1798
        %v2627 = vpop.f32.mrf.mxu0
        %v2628 = vadd.f32 %v2587, %v2627
        %v2629 = vpop.f32.mrf.mxu0
        %v2630 = vadd.f32 %v2589, %v2629
        %v2631 = vpop.f32.mrf.mxu0
        %v2632 = vpop.f32.mrf.mxu0
        %2633 = vdwg.mxu0
        %2634 = vmatprep.subr.bf16.mxu0 %v1633
        %2635 = vmatpush1.bf16.msra.mxu0 %v1632
        %2636 = vmatprep.subr.bf16.mxu0 %v1625
        %2637 = vmatpush1.bf16.msra.mxu0 %v1624
        %2638 = vmatprep.subr.bf16.mxu0 %v1617
        %2639 = vmatpush1.bf16.msra.mxu0 %v1616
        %2640 = vmatprep.subr.bf16.mxu0 %v1609
        %2641 = vmatpush1.bf16.msra.mxu0 %v1608
        %2642 = vmatprep.subr.bf16.mxu0 %v1601
        %2643 = vmatpush1.bf16.msra.mxu0 %v1600
        %2644 = vmatprep.subr.bf16.mxu0 %v1593
        %2645 = vmatpush1.bf16.msra.mxu0 %v1592
        %2646 = vmatprep.subr.bf16.mxu0 %v1585
        %2647 = vmatpush1.bf16.msra.mxu0 %v1584
        %2648 = vmatprep.subr.bf16.mxu0 %v1577
        %2649 = vmatpush1.bf16.msra.mxu0 %v1576
        %2650 = vmatprep.subr.bf16.mxu0 %v1697
        %2651 = vmatpush2.bf16.msra.mxu0 %v1696
        %2652 = vmatprep.subr.bf16.mxu0 %v1689
        %2653 = vmatpush2.bf16.msra.mxu0 %v1688
        %2654 = vmatprep.subr.bf16.mxu0 %v1681
        %2655 = vmatpush2.bf16.msra.mxu0 %v1680
        %2656 = vmatprep.subr.bf16.mxu0 %v1673
        %2657 = vmatpush2.bf16.msra.mxu0 %v1672
        %2658 = vmatprep.subr.bf16.mxu0 %v1665
        %2659 = vmatpush2.bf16.msra.mxu0 %v1664
        %2660 = vmatprep.subr.bf16.mxu0 %v1657
        %2661 = vmatpush2.bf16.msra.mxu0 %v1656
        %2662 = vmatprep.subr.bf16.mxu0 %v1649
        %2663 = vmatpush2.bf16.msra.mxu0 %v1648
        %2664 = vmatprep.subr.bf16.mxu0 %v1641
        %2665 = vmatpush2.bf16.msra.mxu0 %v1640
        %2666 = vmatprep.mubr.bf16.mxu0 %v1797
        %2667 = vmatmul.mubr.bf16.gmra.mxu0 %v1783
        %v2668 = vpop.f32.mrf.mxu0
        %v2669 = vadd.f32 %v2628, %v2668
        %v2670 = vpop.f32.mrf.mxu0
        %v2671 = vadd.f32 %v2630, %v2670
        %v2672 = vpop.f32.mrf.mxu0
        %v2673 = vpop.f32.mrf.mxu0
        %2674 = vdwg.mxu0
        %2675 = vmatprep.subr.bf16.mxu0 %v867
        %2676 = vmatpush1.bf16.msra.mxu0 %v866
        %2677 = vmatprep.subr.bf16.mxu0 %v859
        %2678 = vmatpush1.bf16.msra.mxu0 %v858
        %2679 = vmatprep.subr.bf16.mxu0 %v851
        %2680 = vmatpush1.bf16.msra.mxu0 %v850
        %2681 = vmatprep.subr.bf16.mxu0 %v843
        %2682 = vmatpush1.bf16.msra.mxu0 %v842
        %2683 = vmatprep.subr.bf16.mxu0 %v835
        %2684 = vmatpush1.bf16.msra.mxu0 %v834
        %2685 = vmatprep.subr.bf16.mxu0 %v827
        %2686 = vmatpush1.bf16.msra.mxu0 %v826
        %2687 = vmatprep.subr.bf16.mxu0 %v819
        %2688 = vmatpush1.bf16.msra.mxu0 %v818
        %2689 = vmatprep.subr.bf16.mxu0 %v811
        %2690 = vmatpush1.bf16.msra.mxu0 %v810
        %2691 = vmatprep.subr.bf16.mxu0 %v931
        %2692 = vmatpush2.bf16.msra.mxu0 %v930
        %2693 = vmatprep.subr.bf16.mxu0 %v923
        %2694 = vmatpush2.bf16.msra.mxu0 %v922
        %2695 = vmatprep.subr.bf16.mxu0 %v915
        %2696 = vmatpush2.bf16.msra.mxu0 %v914
        %2697 = vmatprep.subr.bf16.mxu0 %v907
        %2698 = vmatpush2.bf16.msra.mxu0 %v906
        %2699 = vmatprep.subr.bf16.mxu0 %v899
        %2700 = vmatpush2.bf16.msra.mxu0 %v898
        %2701 = vmatprep.subr.bf16.mxu0 %v891
        %2702 = vmatpush2.bf16.msra.mxu0 %v890
        %2703 = vmatprep.subr.bf16.mxu0 %v883
        %2704 = vmatpush2.bf16.msra.mxu0 %v882
        %2705 = vmatprep.subr.bf16.mxu0 %v875
        %2706 = vmatpush2.bf16.msra.mxu0 %v874
        %2707 = vmatprep.mubr.bf16.mxu0 %v1741
        %2708 = vmatmul.mubr.bf16.gmra.mxu0 %v1727
        %v2709 = vpop.f32.mrf.mxu0
        %v2710 = vadd.f32 0.0, %v2709
        %v2711 = vpop.f32.mrf.mxu0
        %v2712 = vadd.f32 0.0, %v2711
        %v2713 = vpop.f32.mrf.mxu0
        %v2714 = vpop.f32.mrf.mxu0
        %2715 = vdwg.mxu0
        %2716 = vmatprep.subr.bf16.mxu0 %v995
        %2717 = vmatpush1.bf16.msra.mxu0 %v994
        %2718 = vmatprep.subr.bf16.mxu0 %v987
        %2719 = vmatpush1.bf16.msra.mxu0 %v986
        %2720 = vmatprep.subr.bf16.mxu0 %v979
        %2721 = vmatpush1.bf16.msra.mxu0 %v978
        %2722 = vmatprep.subr.bf16.mxu0 %v971
        %2723 = vmatpush1.bf16.msra.mxu0 %v970
        %2724 = vmatprep.subr.bf16.mxu0 %v963
        %2725 = vmatpush1.bf16.msra.mxu0 %v962
        %2726 = vmatprep.subr.bf16.mxu0 %v955
        %2727 = vmatpush1.bf16.msra.mxu0 %v954
        %2728 = vmatprep.subr.bf16.mxu0 %v947
        %2729 = vmatpush1.bf16.msra.mxu0 %v946
        %2730 = vmatprep.subr.bf16.mxu0 %v939
        %2731 = vmatpush1.bf16.msra.mxu0 %v938
        %2732 = vmatprep.subr.bf16.mxu0 %v1059
        %2733 = vmatpush2.bf16.msra.mxu0 %v1058
        %2734 = vmatprep.subr.bf16.mxu0 %v1051
        %2735 = vmatpush2.bf16.msra.mxu0 %v1050
        %2736 = vmatprep.subr.bf16.mxu0 %v1043
        %2737 = vmatpush2.bf16.msra.mxu0 %v1042
        %2738 = vmatprep.subr.bf16.mxu0 %v1035
        %2739 = vmatpush2.bf16.msra.mxu0 %v1034
        %2740 = vmatprep.subr.bf16.mxu0 %v1027
        %2741 = vmatpush2.bf16.msra.mxu0 %v1026
        %2742 = vmatprep.subr.bf16.mxu0 %v1019
        %2743 = vmatpush2.bf16.msra.mxu0 %v1018
        %2744 = vmatprep.subr.bf16.mxu0 %v1011
        %2745 = vmatpush2.bf16.msra.mxu0 %v1010
        %2746 = vmatprep.subr.bf16.mxu0 %v1003
        %2747 = vmatpush2.bf16.msra.mxu0 %v1002
        %2748 = vmatprep.mubr.bf16.mxu0 %v1751
        %2749 = vmatmul.mubr.bf16.gmra.mxu0 %v1749
        %v2750 = vpop.f32.mrf.mxu0
        %v2751 = vadd.f32 %v2710, %v2750
        %v2752 = vpop.f32.mrf.mxu0
        %v2753 = vadd.f32 %v2712, %v2752
        %v2754 = vpop.f32.mrf.mxu0
        %v2755 = vpop.f32.mrf.mxu0
        %2756 = vdwg.mxu0
        %2757 = vmatprep.subr.bf16.mxu0 %v1123
        %2758 = vmatpush1.bf16.msra.mxu0 %v1122
        %2759 = vmatprep.subr.bf16.mxu0 %v1115
        %2760 = vmatpush1.bf16.msra.mxu0 %v1114
        %2761 = vmatprep.subr.bf16.mxu0 %v1107
        %2762 = vmatpush1.bf16.msra.mxu0 %v1106
        %2763 = vmatprep.subr.bf16.mxu0 %v1099
        %2764 = vmatpush1.bf16.msra.mxu0 %v1098
        %2765 = vmatprep.subr.bf16.mxu0 %v1091
        %2766 = vmatpush1.bf16.msra.mxu0 %v1090
        %2767 = vmatprep.subr.bf16.mxu0 %v1083
        %2768 = vmatpush1.bf16.msra.mxu0 %v1082
        %2769 = vmatprep.subr.bf16.mxu0 %v1075
        %2770 = vmatpush1.bf16.msra.mxu0 %v1074
        %2771 = vmatprep.subr.bf16.mxu0 %v1067
        %2772 = vmatpush1.bf16.msra.mxu0 %v1066
        %2773 = vmatprep.subr.bf16.mxu0 %v1187
        %2774 = vmatpush2.bf16.msra.mxu0 %v1186
        %2775 = vmatprep.subr.bf16.mxu0 %v1179
        %2776 = vmatpush2.bf16.msra.mxu0 %v1178
        %2777 = vmatprep.subr.bf16.mxu0 %v1171
        %2778 = vmatpush2.bf16.msra.mxu0 %v1170
        %2779 = vmatprep.subr.bf16.mxu0 %v1163
        %2780 = vmatpush2.bf16.msra.mxu0 %v1162
        %2781 = vmatprep.subr.bf16.mxu0 %v1155
        %2782 = vmatpush2.bf16.msra.mxu0 %v1154
        %2783 = vmatprep.subr.bf16.mxu0 %v1147
        %2784 = vmatpush2.bf16.msra.mxu0 %v1146
        %2785 = vmatprep.subr.bf16.mxu0 %v1139
        %2786 = vmatpush2.bf16.msra.mxu0 %v1138
        %2787 = vmatprep.subr.bf16.mxu0 %v1131
        %2788 = vmatpush2.bf16.msra.mxu0 %v1130
        %2789 = vmatprep.mubr.bf16.mxu0 %v1748
        %2790 = vmatmul.mubr.bf16.gmra.mxu0 %v1734
        %v2791 = vpop.f32.mrf.mxu0
        %v2792 = vadd.f32 %v2751, %v2791
        %v2793 = vpop.f32.mrf.mxu0
        %v2794 = vadd.f32 %v2753, %v2793
        %v2795 = vpop.f32.mrf.mxu0
        %v2796 = vpop.f32.mrf.mxu0
        %2797 = vdwg.mxu0
        %2798 = vmatprep.subr.bf16.mxu0 %v1251
        %2799 = vmatpush1.bf16.msra.mxu0 %v1250
        %2800 = vmatprep.subr.bf16.mxu0 %v1243
        %2801 = vmatpush1.bf16.msra.mxu0 %v1242
        %2802 = vmatprep.subr.bf16.mxu0 %v1235
        %2803 = vmatpush1.bf16.msra.mxu0 %v1234
        %2804 = vmatprep.subr.bf16.mxu0 %v1227
        %2805 = vmatpush1.bf16.msra.mxu0 %v1226
        %2806 = vmatprep.subr.bf16.mxu0 %v1219
        %2807 = vmatpush1.bf16.msra.mxu0 %v1218
        %2808 = vmatprep.subr.bf16.mxu0 %v1211
        %2809 = vmatpush1.bf16.msra.mxu0 %v1210
        %2810 = vmatprep.subr.bf16.mxu0 %v1203
        %2811 = vmatpush1.bf16.msra.mxu0 %v1202
        %2812 = vmatprep.subr.bf16.mxu0 %v1195
        %2813 = vmatpush1.bf16.msra.mxu0 %v1194
        %2814 = vmatprep.subr.bf16.mxu0 %v1315
        %2815 = vmatpush2.bf16.msra.mxu0 %v1314
        %2816 = vmatprep.subr.bf16.mxu0 %v1307
        %2817 = vmatpush2.bf16.msra.mxu0 %v1306
        %2818 = vmatprep.subr.bf16.mxu0 %v1299
        %2819 = vmatpush2.bf16.msra.mxu0 %v1298
        %2820 = vmatprep.subr.bf16.mxu0 %v1291
        %2821 = vmatpush2.bf16.msra.mxu0 %v1290
        %2822 = vmatprep.subr.bf16.mxu0 %v1283
        %2823 = vmatpush2.bf16.msra.mxu0 %v1282
        %2824 = vmatprep.subr.bf16.mxu0 %v1275
        %2825 = vmatpush2.bf16.msra.mxu0 %v1274
        %2826 = vmatprep.subr.bf16.mxu0 %v1267
        %2827 = vmatpush2.bf16.msra.mxu0 %v1266
        %2828 = vmatprep.subr.bf16.mxu0 %v1259
        %2829 = vmatpush2.bf16.msra.mxu0 %v1258
        %2830 = vmatprep.mubr.bf16.mxu0 %v1752
        %2831 = vmatmul.mubr.bf16.gmra.mxu0 %v1750
        %v2832 = vpop.f32.mrf.mxu0
        %v2833 = vadd.f32 %v2792, %v2832
        %v2834 = vpop.f32.mrf.mxu0
        %v2835 = vadd.f32 %v2794, %v2834
        %v2836 = vpop.f32.mrf.mxu0
        %v2837 = vpop.f32.mrf.mxu0
        %2838 = vdwg.mxu0
        %2839 = vmatprep.subr.bf16.mxu0 %v1379
        %2840 = vmatpush1.bf16.msra.mxu0 %v1378
        %2841 = vmatprep.subr.bf16.mxu0 %v1371
        %2842 = vmatpush1.bf16.msra.mxu0 %v1370
        %2843 = vmatprep.subr.bf16.mxu0 %v1363
        %2844 = vmatpush1.bf16.msra.mxu0 %v1362
        %2845 = vmatprep.subr.bf16.mxu0 %v1355
        %2846 = vmatpush1.bf16.msra.mxu0 %v1354
        %2847 = vmatprep.subr.bf16.mxu0 %v1347
        %2848 = vmatpush1.bf16.msra.mxu0 %v1346
        %2849 = vmatprep.subr.bf16.mxu0 %v1339
        %2850 = vmatpush1.bf16.msra.mxu0 %v1338
        %2851 = vmatprep.subr.bf16.mxu0 %v1331
        %2852 = vmatpush1.bf16.msra.mxu0 %v1330
        %2853 = vmatprep.subr.bf16.mxu0 %v1323
        %2854 = vmatpush1.bf16.msra.mxu0 %v1322
        %2855 = vmatprep.subr.bf16.mxu0 %v1443
        %2856 = vmatpush2.bf16.msra.mxu0 %v1442
        %2857 = vmatprep.subr.bf16.mxu0 %v1435
        %2858 = vmatpush2.bf16.msra.mxu0 %v1434
        %2859 = vmatprep.subr.bf16.mxu0 %v1427
        %2860 = vmatpush2.bf16.msra.mxu0 %v1426
        %2861 = vmatprep.subr.bf16.mxu0 %v1419
        %2862 = vmatpush2.bf16.msra.mxu0 %v1418
        %2863 = vmatprep.subr.bf16.mxu0 %v1411
        %2864 = vmatpush2.bf16.msra.mxu0 %v1410
        %2865 = vmatprep.subr.bf16.mxu0 %v1403
        %2866 = vmatpush2.bf16.msra.mxu0 %v1402
        %2867 = vmatprep.subr.bf16.mxu0 %v1395
        %2868 = vmatpush2.bf16.msra.mxu0 %v1394
        %2869 = vmatprep.subr.bf16.mxu0 %v1387
        %2870 = vmatpush2.bf16.msra.mxu0 %v1386
        %2871 = vmatprep.mubr.bf16.mxu0 %v1790
        %2872 = vmatmul.mubr.bf16.gmra.mxu0 %v1776
        %v2873 = vpop.f32.mrf.mxu0
        %v2874 = vadd.f32 %v2833, %v2873
        %v2875 = vpop.f32.mrf.mxu0
        %v2876 = vadd.f32 %v2835, %v2875
        %v2877 = vpop.f32.mrf.mxu0
        %v2878 = vpop.f32.mrf.mxu0
        %2879 = vdwg.mxu0
        %2880 = vmatprep.subr.bf16.mxu0 %v1507
        %2881 = vmatpush1.bf16.msra.mxu0 %v1506
        %2882 = vmatprep.subr.bf16.mxu0 %v1499
        %2883 = vmatpush1.bf16.msra.mxu0 %v1498
        %2884 = vmatprep.subr.bf16.mxu0 %v1491
        %2885 = vmatpush1.bf16.msra.mxu0 %v1490
        %2886 = vmatprep.subr.bf16.mxu0 %v1483
        %2887 = vmatpush1.bf16.msra.mxu0 %v1482
        %2888 = vmatprep.subr.bf16.mxu0 %v1475
        %2889 = vmatpush1.bf16.msra.mxu0 %v1474
        %2890 = vmatprep.subr.bf16.mxu0 %v1467
        %2891 = vmatpush1.bf16.msra.mxu0 %v1466
        %2892 = vmatprep.subr.bf16.mxu0 %v1459
        %2893 = vmatpush1.bf16.msra.mxu0 %v1458
        %2894 = vmatprep.subr.bf16.mxu0 %v1451
        %2895 = vmatpush1.bf16.msra.mxu0 %v1450
        %2896 = vmatprep.subr.bf16.mxu0 %v1571
        %2897 = vmatpush2.bf16.msra.mxu0 %v1570
        %2898 = vmatprep.subr.bf16.mxu0 %v1563
        %2899 = vmatpush2.bf16.msra.mxu0 %v1562
        %2900 = vmatprep.subr.bf16.mxu0 %v1555
        %2901 = vmatpush2.bf16.msra.mxu0 %v1554
        %2902 = vmatprep.subr.bf16.mxu0 %v1547
        %2903 = vmatpush2.bf16.msra.mxu0 %v1546
        %2904 = vmatprep.subr.bf16.mxu0 %v1539
        %2905 = vmatpush2.bf16.msra.mxu0 %v1538
        %2906 = vmatprep.subr.bf16.mxu0 %v1531
        %2907 = vmatpush2.bf16.msra.mxu0 %v1530
        %2908 = vmatprep.subr.bf16.mxu0 %v1523
        %2909 = vmatpush2.bf16.msra.mxu0 %v1522
        %2910 = vmatprep.subr.bf16.mxu0 %v1515
        %2911 = vmatpush2.bf16.msra.mxu0 %v1514
        %2912 = vmatprep.mubr.bf16.mxu0 %v1799
        %2913 = vmatmul.mubr.bf16.gmra.mxu0 %v1798
        %v2914 = vpop.f32.mrf.mxu0
        %v2915 = vadd.f32 %v2874, %v2914
        %v2916 = vpop.f32.mrf.mxu0
        %v2917 = vadd.f32 %v2876, %v2916
        %v2918 = vpop.f32.mrf.mxu0
        %v2919 = vpop.f32.mrf.mxu0
        %2920 = vdwg.mxu0
        %2921 = vmatprep.subr.bf16.mxu0 %v1635
        %2922 = vmatpush1.bf16.msra.mxu0 %v1634
        %2923 = vmatprep.subr.bf16.mxu0 %v1627
        %2924 = vmatpush1.bf16.msra.mxu0 %v1626
        %2925 = vmatprep.subr.bf16.mxu0 %v1619
        %2926 = vmatpush1.bf16.msra.mxu0 %v1618
        %2927 = vmatprep.subr.bf16.mxu0 %v1611
        %2928 = vmatpush1.bf16.msra.mxu0 %v1610
        %2929 = vmatprep.subr.bf16.mxu0 %v1603
        %2930 = vmatpush1.bf16.msra.mxu0 %v1602
        %2931 = vmatprep.subr.bf16.mxu0 %v1595
        %2932 = vmatpush1.bf16.msra.mxu0 %v1594
        %2933 = vmatprep.subr.bf16.mxu0 %v1587
        %2934 = vmatpush1.bf16.msra.mxu0 %v1586
        %2935 = vmatprep.subr.bf16.mxu0 %v1579
        %2936 = vmatpush1.bf16.msra.mxu0 %v1578
        %2937 = vmatprep.subr.bf16.mxu0 %v1699
        %2938 = vmatpush2.bf16.msra.mxu0 %v1698
        %2939 = vmatprep.subr.bf16.mxu0 %v1691
        %2940 = vmatpush2.bf16.msra.mxu0 %v1690
        %2941 = vmatprep.subr.bf16.mxu0 %v1683
        %2942 = vmatpush2.bf16.msra.mxu0 %v1682
        %2943 = vmatprep.subr.bf16.mxu0 %v1675
        %2944 = vmatpush2.bf16.msra.mxu0 %v1674
        %2945 = vmatprep.subr.bf16.mxu0 %v1667
        %2946 = vmatpush2.bf16.msra.mxu0 %v1666
        %2947 = vmatprep.subr.bf16.mxu0 %v1659
        %2948 = vmatpush2.bf16.msra.mxu0 %v1658
        %2949 = vmatprep.subr.bf16.mxu0 %v1651
        %2950 = vmatpush2.bf16.msra.mxu0 %v1650
        %2951 = vmatprep.subr.bf16.mxu0 %v1643
        %2952 = vmatpush2.bf16.msra.mxu0 %v1642
        %2953 = vmatprep.mubr.bf16.mxu0 %v1797
        %2954 = vmatmul.mubr.bf16.gmra.mxu0 %v1783
        %v2955 = vpop.f32.mrf.mxu0
        %v2956 = vadd.f32 %v2915, %v2955
        %v2957 = vpop.f32.mrf.mxu0
        %v2958 = vadd.f32 %v2917, %v2957
        %v2959 = vpop.f32.mrf.mxu0
        %v2960 = vpop.f32.mrf.mxu0
        %2961 = vdwg.mxu0
        %v2962 = vld [vmem:[%s305] sm:$0xff]
        %v2964 = vlaneseq
        %v2965 = vshrl.u32 %v2964, 7
        %v2966 = vsub.s32 0, %v2965
        %v2967 = vrot.slane %v2962, %v2966
        %v2968 = vlaneseq
        %v2969 = vshrl.u32 %v2968, 7
        %v2970 = vsub.s32 1, %v2969
        %v2971 = vrot.slane %v2962, %v2970
        %v2972 = vlaneseq
        %v2973 = vshrl.u32 %v2972, 7
        %v2974 = vsub.s32 2, %v2973
        %v2975 = vrot.slane %v2962, %v2974
        %v2976 = vlaneseq
        %v2977 = vshrl.u32 %v2976, 7
        %v2978 = vsub.s32 3, %v2977
        %v2979 = vrot.slane %v2962, %v2978
        %v2980 = vlaneseq
        %v2981 = vshrl.u32 %v2980, 7
        %v2982 = vsub.s32 4, %v2981
        %v2983 = vrot.slane %v2962, %v2982
        %v2984 = vlaneseq
        %v2985 = vshrl.u32 %v2984, 7
        %v2986 = vsub.s32 5, %v2985
        %v2987 = vrot.slane %v2962, %v2986
        %v2988 = vlaneseq
        %v2989 = vshrl.u32 %v2988, 7
        %v2990 = vsub.s32 6, %v2989
        %v2991 = vrot.slane %v2962, %v2990
        %v2992 = vlaneseq
        %v2993 = vshrl.u32 %v2992, 7
        %v2994 = vsub.s32 7, %v2993
        %v2995 = vrot.slane %v2962, %v2994
        %v3004 = vmul.f32 %v2095, %v2967
        %v3005 = vmul.f32 %v2097, %v2971
        %v3006 = vmul.f32 %v2382, %v2975
        %v3007 = vmul.f32 %v2384, %v2979
        %v3008 = vmul.f32 %v2669, %v2983
        %v3009 = vmul.f32 %v2671, %v2987
        %v3010 = vmul.f32 %v2956, %v2991
        %v3011 = vmul.f32 %v2958, %v2995
        %v3012 = vld [vmem:[%s314] sm:$0xff]
        %v3014 = vlaneseq
        %v3015 = vshrl.u32 %v3014, 7
        %v3016 = vsub.s32 0, %v3015
        %v3017 = vrot.slane %v3012, %v3016
        %v3018 = vlaneseq
        %v3019 = vshrl.u32 %v3018, 7
        %v3020 = vsub.s32 1, %v3019
        %v3021 = vrot.slane %v3012, %v3020
        %v3022 = vlaneseq
        %v3023 = vshrl.u32 %v3022, 7
        %v3024 = vsub.s32 2, %v3023
        %v3025 = vrot.slane %v3012, %v3024
        %v3026 = vlaneseq
        %v3027 = vshrl.u32 %v3026, 7
        %v3028 = vsub.s32 3, %v3027
        %v3029 = vrot.slane %v3012, %v3028
        %v3030 = vlaneseq
        %v3031 = vshrl.u32 %v3030, 7
        %v3032 = vsub.s32 4, %v3031
        %v3033 = vrot.slane %v3012, %v3032
        %v3034 = vlaneseq
        %v3035 = vshrl.u32 %v3034, 7
        %v3036 = vsub.s32 5, %v3035
        %v3037 = vrot.slane %v3012, %v3036
        %v3038 = vlaneseq
        %v3039 = vshrl.u32 %v3038, 7
        %v3040 = vsub.s32 6, %v3039
        %v3041 = vrot.slane %v3012, %v3040
        %v3042 = vlaneseq
        %v3043 = vshrl.u32 %v3042, 7
        %v3044 = vsub.s32 7, %v3043
        %v3045 = vrot.slane %v3012, %v3044
        %v3054 = vadd.f32 %v3004, %v3017
        %v3055 = vadd.f32 %v3005, %v3021
        %v3056 = vadd.f32 %v3006, %v3025
        %v3057 = vadd.f32 %v3007, %v3029
        %v3058 = vadd.f32 %v3008, %v3033
        %v3059 = vadd.f32 %v3009, %v3037
        %v3060 = vadd.f32 %v3010, %v3041
        %v3061 = vadd.f32 %v3011, %v3045
        %v3070 = vcombine.low %v3054, %v3055
        %v3071 = vcombine.low %v3056, %v3057
        %v3072 = vcombine.low %v3058, %v3059
        %v3073 = vcombine.low %v3060, %v3061
        %v3075 = vunpack.c.l.s4 1966171168
        %v3076 = vunpack.c.0.s8 %v3075
        %v3077 = vlaneseq
        %v3078 = vshrl.u32 %v3077, 7
        %v3079 = vsub.s32 %v3076, %v3078
        %v3080 = vrot.slane %v3070, %v3079
        %v3082 = vunpack.c.l.s4 1966171168
        %v3083 = vunpack.c.0.s8 %v3082
        %v3084 = vlaneseq
        %v3085 = vshrl.u32 %v3084, 7
        %v3086 = vsub.s32 %v3083, %v3085
        %v3087 = vrot.slane %v3071, %v3086
        %v3089 = vunpack.c.l.s4 1966171168
        %v3090 = vunpack.c.0.s8 %v3089
        %v3091 = vlaneseq
        %v3092 = vshrl.u32 %v3091, 7
        %v3093 = vsub.s32 %v3090, %v3092
        %v3094 = vrot.slane %v3072, %v3093
        %v3096 = vunpack.c.l.s4 1966171168
        %v3097 = vunpack.c.0.s8 %v3096
        %v3098 = vlaneseq
        %v3099 = vshrl.u32 %v3098, 7
        %v3100 = vsub.s32 %v3097, %v3099
        %v3101 = vrot.slane %v3073, %v3100
        %v3102 = vcombine.low %v3080, %v3087
        %v3103 = vcombine.high %v3080, %v3087
        %v3104 = vcombine.low %v3094, %v3101
        %v3105 = vcombine.high %v3094, %v3101
        %v3107 = vunpack.c.l.s4 1966171168
        %v3108 = vunpack.c.0.s8 %v3107
        %v3109 = vlaneseq
        %v3110 = vshrl.u32 %v3109, 7
        %v3111 = vsub.s32 %v3108, %v3110
        %v3112 = vrot.slane %v3102, %v3111
        %v3114 = vunpack.c.l.s4 1966171168
        %v3115 = vunpack.c.0.s8 %v3114
        %v3116 = vlaneseq
        %v3117 = vshrl.u32 %v3116, 7
        %v3118 = vsub.s32 %v3115, %v3117
        %v3119 = vrot.slane %v3103, %v3118
        %v3121 = vunpack.c.l.s4 1966171168
        %v3122 = vunpack.c.0.s8 %v3121
        %v3123 = vlaneseq
        %v3124 = vshrl.u32 %v3123, 7
        %v3125 = vsub.s32 %v3122, %v3124
        %v3126 = vrot.slane %v3104, %v3125
        %v3128 = vunpack.c.l.s4 1966171168
        %v3129 = vunpack.c.0.s8 %v3128
        %v3130 = vlaneseq
        %v3131 = vshrl.u32 %v3130, 7
        %v3132 = vsub.s32 %v3129, %v3131
        %v3133 = vrot.slane %v3105, %v3132
        %v3134 = vcombine.low %v3112, %v3126
        %v3135 = vcombine.low %v3119, %v3133
        %v3136 = vld [vmem:[%s4] sm:$0xff]
        %v3137 = vld [vmem:[%s4 + $0x8] sm:$0xff]
        %v3138 = vld [vmem:[%s4 + $0x10] sm:$0xff]
        %v3139 = vld [vmem:[%s4 + $0x18] sm:$0xff]
        %v3140 = vld [vmem:[%s4 + $0x20] sm:$0xff]
        %v3141 = vld [vmem:[%s4 + $0x28] sm:$0xff]
        %v3142 = vld [vmem:[%s4 + $0x30] sm:$0xff]
        %v3143 = vld [vmem:[%s4 + $0x38] sm:$0xff]
        %v3144 = vld [vmem:[%s4 + $0x40] sm:$0xff]
        %v3145 = vld [vmem:[%s4 + $0x48] sm:$0xff]
        %v3146 = vld [vmem:[%s4 + $0x50] sm:$0xff]
        %v3147 = vld [vmem:[%s4 + $0x58] sm:$0xff]
        %v3148 = vld [vmem:[%s4 + $0x60] sm:$0xf]
        %v3149 = vlaneseq
        %v3150 = vshrl.u32 %v3149, 7
        %v3151 = vsub.s32 0, %v3150
        %v3152 = vrot.slane %v3134, %v3151
        %v3153 = vlaneseq
        %v3154 = vshrl.u32 %v3153, 7
        %v3155 = vsub.s32 1, %v3154
        %v3156 = vrot.slane %v3134, %v3155
        %v3157 = vlaneseq
        %v3158 = vshrl.u32 %v3157, 7
        %v3159 = vsub.s32 2, %v3158
        %v3160 = vrot.slane %v3134, %v3159
        %v3161 = vlaneseq
        %v3162 = vshrl.u32 %v3161, 7
        %v3163 = vsub.s32 3, %v3162
        %v3164 = vrot.slane %v3134, %v3163
        %v3165 = vlaneseq
        %v3166 = vshrl.u32 %v3165, 7
        %v3167 = vsub.s32 4, %v3166
        %v3168 = vrot.slane %v3134, %v3167
        %v3169 = vlaneseq
        %v3170 = vshrl.u32 %v3169, 7
        %v3171 = vsub.s32 5, %v3170
        %v3172 = vrot.slane %v3134, %v3171
        %v3173 = vlaneseq
        %v3174 = vshrl.u32 %v3173, 7
        %v3175 = vsub.s32 6, %v3174
        %v3176 = vrot.slane %v3134, %v3175
        %v3177 = vlaneseq
        %v3178 = vshrl.u32 %v3177, 7
        %v3179 = vsub.s32 7, %v3178
        %v3180 = vrot.slane %v3134, %v3179
        %v3181 = vlaneseq
        %v3182 = vshrl.u32 %v3181, 7
        %v3183 = vsub.s32 0, %v3182
        %v3184 = vrot.slane %v3135, %v3183
        %v3185 = vlaneseq
        %v3186 = vshrl.u32 %v3185, 7
        %v3187 = vsub.s32 1, %v3186
        %v3188 = vrot.slane %v3135, %v3187
        %v3189 = vlaneseq
        %v3190 = vshrl.u32 %v3189, 7
        %v3191 = vsub.s32 2, %v3190
        %v3192 = vrot.slane %v3135, %v3191
        %v3193 = vlaneseq
        %v3194 = vshrl.u32 %v3193, 7
        %v3195 = vsub.s32 3, %v3194
        %v3196 = vrot.slane %v3135, %v3195
        %v3197 = vlaneseq
        %v3198 = vshrl.u32 %v3197, 7
        %v3199 = vsub.s32 4, %v3198
        %v3200 = vrot.slane %v3135, %v3199
        %v3201 = vlaneseq
        %v3202 = vshrl.u32 %v3201, 7
        %v3203 = vsub.s32 5, %v3202
        %v3204 = vrot.slane %v3135, %v3203
        %v3205 = vlaneseq
        %v3206 = vshrl.u32 %v3205, 7
        %v3207 = vsub.s32 6, %v3206
        %v3208 = vrot.slane %v3135, %v3207
        %v3209 = vlaneseq
        %v3210 = vshrl.u32 %v3209, 7
        %v3211 = vsub.s32 7, %v3210
        %v3212 = vrot.slane %v3135, %v3211
        %3230 = vset.pattern.permute.xlu0 0
        %3231 = vperm.xlu0 %3230, %v3136
        %v3232 = vpop.permute.xlu0 %3231
        %3235 = vset.pattern.permute.xlu0 0
        %3236 = vperm.xlu0 %3235, %v3137
        %v3237 = vpop.permute.xlu0 %3236
        %3240 = vset.pattern.permute.xlu0 0
        %3241 = vperm.xlu0 %3240, %v3138
        %v3242 = vpop.permute.xlu0 %3241
        %3245 = vset.pattern.permute.xlu0 0
        %3246 = vperm.xlu0 %3245, %v3139
        %v3247 = vpop.permute.xlu0 %3246
        %3250 = vset.pattern.permute.xlu0 0
        %3251 = vperm.xlu0 %3250, %v3140
        %v3252 = vpop.permute.xlu0 %3251
        %3255 = vset.pattern.permute.xlu0 0
        %3256 = vperm.xlu0 %3255, %v3141
        %v3257 = vpop.permute.xlu0 %3256
        %3260 = vset.pattern.permute.xlu0 0
        %3261 = vperm.xlu0 %3260, %v3142
        %v3262 = vpop.permute.xlu0 %3261
        %3265 = vset.pattern.permute.xlu0 0
        %3266 = vperm.xlu0 %3265, %v3143
        %v3267 = vpop.permute.xlu0 %3266
        %3270 = vset.pattern.permute.xlu0 0
        %3271 = vperm.xlu0 %3270, %v3144
        %v3272 = vpop.permute.xlu0 %3271
        %3275 = vset.pattern.permute.xlu0 0
        %3276 = vperm.xlu0 %3275, %v3145
        %v3277 = vpop.permute.xlu0 %3276
        %3280 = vset.pattern.permute.xlu0 0
        %3281 = vperm.xlu0 %3280, %v3146
        %v3282 = vpop.permute.xlu0 %3281
        %3285 = vset.pattern.permute.xlu0 0
        %3286 = vperm.xlu0 %3285, %v3147
        %v3287 = vpop.permute.xlu0 %3286
        %3290 = vset.pattern.permute.xlu0 0
        %3291 = vperm.xlu0 %3290, %v3148
        %v3292 = vpop.permute.xlu0 %3291
        %v3294 = vmul.f32 %v3152, %v3232
        %v3295 = vmul.f32 %v3156, %v3232
        %v3296 = vmul.f32 %v3160, %v3232
        %v3297 = vmul.f32 %v3164, %v3232
        %v3298 = vmul.f32 %v3168, %v3232
        %v3299 = vmul.f32 %v3172, %v3232
        %v3300 = vmul.f32 %v3176, %v3232
        %v3301 = vmul.f32 %v3180, %v3232
        %v3302 = vmul.f32 %v3152, %v3237
        %v3303 = vmul.f32 %v3156, %v3237
        %v3304 = vmul.f32 %v3160, %v3237
        %v3305 = vmul.f32 %v3164, %v3237
        %v3306 = vmul.f32 %v3168, %v3237
        %v3307 = vmul.f32 %v3172, %v3237
        %v3308 = vmul.f32 %v3176, %v3237
        %v3309 = vmul.f32 %v3180, %v3237
        %v3310 = vmul.f32 %v3152, %v3242
        %v3311 = vmul.f32 %v3156, %v3242
        %v3312 = vmul.f32 %v3160, %v3242
        %v3313 = vmul.f32 %v3164, %v3242
        %v3314 = vmul.f32 %v3168, %v3242
        %v3315 = vmul.f32 %v3172, %v3242
        %v3316 = vmul.f32 %v3176, %v3242
        %v3317 = vmul.f32 %v3180, %v3242
        %v3318 = vmul.f32 %v3152, %v3247
        %v3319 = vmul.f32 %v3156, %v3247
        %v3320 = vmul.f32 %v3160, %v3247
        %v3321 = vmul.f32 %v3164, %v3247
        %v3322 = vmul.f32 %v3168, %v3247
        %v3323 = vmul.f32 %v3172, %v3247
        %v3324 = vmul.f32 %v3176, %v3247
        %v3325 = vmul.f32 %v3180, %v3247
        %v3326 = vmul.f32 %v3152, %v3252
        %v3327 = vmul.f32 %v3156, %v3252
        %v3328 = vmul.f32 %v3160, %v3252
        %v3329 = vmul.f32 %v3164, %v3252
        %v3330 = vmul.f32 %v3168, %v3252
        %v3331 = vmul.f32 %v3172, %v3252
        %v3332 = vmul.f32 %v3176, %v3252
        %v3333 = vmul.f32 %v3180, %v3252
        %v3334 = vmul.f32 %v3152, %v3257
        %v3335 = vmul.f32 %v3156, %v3257
        %v3336 = vmul.f32 %v3160, %v3257
        %v3337 = vmul.f32 %v3164, %v3257
        %v3338 = vmul.f32 %v3168, %v3257
        %v3339 = vmul.f32 %v3172, %v3257
        %v3340 = vmul.f32 %v3176, %v3257
        %v3341 = vmul.f32 %v3180, %v3257
        %v3342 = vmul.f32 %v3152, %v3262
        %v3343 = vmul.f32 %v3156, %v3262
        %v3344 = vmul.f32 %v3160, %v3262
        %v3345 = vmul.f32 %v3164, %v3262
        %v3346 = vmul.f32 %v3168, %v3262
        %v3347 = vmul.f32 %v3172, %v3262
        %v3348 = vmul.f32 %v3176, %v3262
        %v3349 = vmul.f32 %v3180, %v3262
        %v3350 = vmul.f32 %v3152, %v3267
        %v3351 = vmul.f32 %v3156, %v3267
        %v3352 = vmul.f32 %v3160, %v3267
        %v3353 = vmul.f32 %v3164, %v3267
        %v3354 = vmul.f32 %v3168, %v3267
        %v3355 = vmul.f32 %v3172, %v3267
        %v3356 = vmul.f32 %v3176, %v3267
        %v3357 = vmul.f32 %v3180, %v3267
        %v3358 = vmul.f32 %v3152, %v3272
        %v3359 = vmul.f32 %v3156, %v3272
        %v3360 = vmul.f32 %v3160, %v3272
        %v3361 = vmul.f32 %v3164, %v3272
        %v3362 = vmul.f32 %v3168, %v3272
        %v3363 = vmul.f32 %v3172, %v3272
        %v3364 = vmul.f32 %v3176, %v3272
        %v3365 = vmul.f32 %v3180, %v3272
        %v3366 = vmul.f32 %v3152, %v3277
        %v3367 = vmul.f32 %v3156, %v3277
        %v3368 = vmul.f32 %v3160, %v3277
        %v3369 = vmul.f32 %v3164, %v3277
        %v3370 = vmul.f32 %v3168, %v3277
        %v3371 = vmul.f32 %v3172, %v3277
        %v3372 = vmul.f32 %v3176, %v3277
        %v3373 = vmul.f32 %v3180, %v3277
        %v3374 = vmul.f32 %v3152, %v3282
        %v3375 = vmul.f32 %v3156, %v3282
        %v3376 = vmul.f32 %v3160, %v3282
        %v3377 = vmul.f32 %v3164, %v3282
        %v3378 = vmul.f32 %v3168, %v3282
        %v3379 = vmul.f32 %v3172, %v3282
        %v3380 = vmul.f32 %v3176, %v3282
        %v3381 = vmul.f32 %v3180, %v3282
        %v3382 = vmul.f32 %v3152, %v3287
        %v3383 = vmul.f32 %v3156, %v3287
        %v3384 = vmul.f32 %v3160, %v3287
        %v3385 = vmul.f32 %v3164, %v3287
        %v3386 = vmul.f32 %v3168, %v3287
        %v3387 = vmul.f32 %v3172, %v3287
        %v3388 = vmul.f32 %v3176, %v3287
        %v3389 = vmul.f32 %v3180, %v3287
        %v3390 = vmul.f32 %v3152, %v3292
        %v3391 = vmul.f32 %v3156, %v3292
        %v3392 = vmul.f32 %v3160, %v3292
        %v3393 = vmul.f32 %v3164, %v3292
        %v3394 = vmul.f32 %v3168, %v3292
        %v3395 = vmul.f32 %v3172, %v3292
        %v3396 = vmul.f32 %v3176, %v3292
        %v3397 = vmul.f32 %v3180, %v3292
        %v3398 = vmul.f32 %v3184, %v3232
        %v3399 = vmul.f32 %v3188, %v3232
        %v3400 = vmul.f32 %v3192, %v3232
        %v3401 = vmul.f32 %v3196, %v3232
        %v3402 = vmul.f32 %v3200, %v3232
        %v3403 = vmul.f32 %v3204, %v3232
        %v3404 = vmul.f32 %v3208, %v3232
        %v3405 = vmul.f32 %v3212, %v3232
        %v3406 = vmul.f32 %v3184, %v3237
        %v3407 = vmul.f32 %v3188, %v3237
        %v3408 = vmul.f32 %v3192, %v3237
        %v3409 = vmul.f32 %v3196, %v3237
        %v3410 = vmul.f32 %v3200, %v3237
        %v3411 = vmul.f32 %v3204, %v3237
        %v3412 = vmul.f32 %v3208, %v3237
        %v3413 = vmul.f32 %v3212, %v3237
        %v3414 = vmul.f32 %v3184, %v3242
        %v3415 = vmul.f32 %v3188, %v3242
        %v3416 = vmul.f32 %v3192, %v3242
        %v3417 = vmul.f32 %v3196, %v3242
        %v3418 = vmul.f32 %v3200, %v3242
        %v3419 = vmul.f32 %v3204, %v3242
        %v3420 = vmul.f32 %v3208, %v3242
        %v3421 = vmul.f32 %v3212, %v3242
        %v3422 = vmul.f32 %v3184, %v3247
        %v3423 = vmul.f32 %v3188, %v3247
        %v3424 = vmul.f32 %v3192, %v3247
        %v3425 = vmul.f32 %v3196, %v3247
        %v3426 = vmul.f32 %v3200, %v3247
        %v3427 = vmul.f32 %v3204, %v3247
        %v3428 = vmul.f32 %v3208, %v3247
        %v3429 = vmul.f32 %v3212, %v3247
        %v3430 = vmul.f32 %v3184, %v3252
        %v3431 = vmul.f32 %v3188, %v3252
        %v3432 = vmul.f32 %v3192, %v3252
        %v3433 = vmul.f32 %v3196, %v3252
        %v3434 = vmul.f32 %v3200, %v3252
        %v3435 = vmul.f32 %v3204, %v3252
        %v3436 = vmul.f32 %v3208, %v3252
        %v3437 = vmul.f32 %v3212, %v3252
        %v3438 = vmul.f32 %v3184, %v3257
        %v3439 = vmul.f32 %v3188, %v3257
        %v3440 = vmul.f32 %v3192, %v3257
        %v3441 = vmul.f32 %v3196, %v3257
        %v3442 = vmul.f32 %v3200, %v3257
        %v3443 = vmul.f32 %v3204, %v3257
        %v3444 = vmul.f32 %v3208, %v3257
        %v3445 = vmul.f32 %v3212, %v3257
        %v3446 = vmul.f32 %v3184, %v3262
        %v3447 = vmul.f32 %v3188, %v3262
        %v3448 = vmul.f32 %v3192, %v3262
        %v3449 = vmul.f32 %v3196, %v3262
        %v3450 = vmul.f32 %v3200, %v3262
        %v3451 = vmul.f32 %v3204, %v3262
        %v3452 = vmul.f32 %v3208, %v3262
        %v3453 = vmul.f32 %v3212, %v3262
        %v3454 = vmul.f32 %v3184, %v3267
        %v3455 = vmul.f32 %v3188, %v3267
        %v3456 = vmul.f32 %v3192, %v3267
        %v3457 = vmul.f32 %v3196, %v3267
        %v3458 = vmul.f32 %v3200, %v3267
        %v3459 = vmul.f32 %v3204, %v3267
        %v3460 = vmul.f32 %v3208, %v3267
        %v3461 = vmul.f32 %v3212, %v3267
        %v3462 = vmul.f32 %v3184, %v3272
        %v3463 = vmul.f32 %v3188, %v3272
        %v3464 = vmul.f32 %v3192, %v3272
        %v3465 = vmul.f32 %v3196, %v3272
        %v3466 = vmul.f32 %v3200, %v3272
        %v3467 = vmul.f32 %v3204, %v3272
        %v3468 = vmul.f32 %v3208, %v3272
        %v3469 = vmul.f32 %v3212, %v3272
        %v3470 = vmul.f32 %v3184, %v3277
        %v3471 = vmul.f32 %v3188, %v3277
        %v3472 = vmul.f32 %v3192, %v3277
        %v3473 = vmul.f32 %v3196, %v3277
        %v3474 = vmul.f32 %v3200, %v3277
        %v3475 = vmul.f32 %v3204, %v3277
        %v3476 = vmul.f32 %v3208, %v3277
        %v3477 = vmul.f32 %v3212, %v3277
        %v3478 = vmul.f32 %v3184, %v3282
        %v3479 = vmul.f32 %v3188, %v3282
        %v3480 = vmul.f32 %v3192, %v3282
        %v3481 = vmul.f32 %v3196, %v3282
        %v3482 = vmul.f32 %v3200, %v3282
        %v3483 = vmul.f32 %v3204, %v3282
        %v3484 = vmul.f32 %v3208, %v3282
        %v3485 = vmul.f32 %v3212, %v3282
        %v3486 = vmul.f32 %v3184, %v3287
        %v3487 = vmul.f32 %v3188, %v3287
        %v3488 = vmul.f32 %v3192, %v3287
        %v3489 = vmul.f32 %v3196, %v3287
        %v3490 = vmul.f32 %v3200, %v3287
        %v3491 = vmul.f32 %v3204, %v3287
        %v3492 = vmul.f32 %v3208, %v3287
        %v3493 = vmul.f32 %v3212, %v3287
        %v3494 = vmul.f32 %v3184, %v3292
        %v3495 = vmul.f32 %v3188, %v3292
        %v3496 = vmul.f32 %v3192, %v3292
        %v3497 = vmul.f32 %v3196, %v3292
        %v3498 = vmul.f32 %v3200, %v3292
        %v3499 = vmul.f32 %v3204, %v3292
        %v3500 = vmul.f32 %v3208, %v3292
        %v3501 = vmul.f32 %v3212, %v3292
        %v3502 = vld [vmem:[%s5] sm:$0xff]
        %v3503 = vld [vmem:[%s5 + $0x8] sm:$0xff]
        %v3504 = vld [vmem:[%s5 + $0x10] sm:$0xff]
        %v3505 = vld [vmem:[%s5 + $0x18] sm:$0xff]
        %v3506 = vld [vmem:[%s5 + $0x20] sm:$0xff]
        %v3507 = vld [vmem:[%s5 + $0x28] sm:$0xff]
        %v3508 = vld [vmem:[%s5 + $0x30] sm:$0xff]
        %v3509 = vld [vmem:[%s5 + $0x38] sm:$0xff]
        %v3510 = vld [vmem:[%s5 + $0x40] sm:$0xff]
        %v3511 = vld [vmem:[%s5 + $0x48] sm:$0xff]
        %v3512 = vld [vmem:[%s5 + $0x50] sm:$0xff]
        %v3513 = vld [vmem:[%s5 + $0x58] sm:$0xff]
        %v3514 = vld [vmem:[%s5 + $0x60] sm:$0xf]
        %3516 = vset.pattern.permute.xlu0 0
        %3517 = vperm.xlu0 %3516, %v3502
        %v3518 = vpop.permute.xlu0 %3517
        %3521 = vset.pattern.permute.xlu0 0
        %3522 = vperm.xlu0 %3521, %v3503
        %v3523 = vpop.permute.xlu0 %3522
        %3526 = vset.pattern.permute.xlu0 0
        %3527 = vperm.xlu0 %3526, %v3504
        %v3528 = vpop.permute.xlu0 %3527
        %3531 = vset.pattern.permute.xlu0 0
        %3532 = vperm.xlu0 %3531, %v3505
        %v3533 = vpop.permute.xlu0 %3532
        %3536 = vset.pattern.permute.xlu0 0
        %3537 = vperm.xlu0 %3536, %v3506
        %v3538 = vpop.permute.xlu0 %3537
        %3541 = vset.pattern.permute.xlu0 0
        %3542 = vperm.xlu0 %3541, %v3507
        %v3543 = vpop.permute.xlu0 %3542
        %3546 = vset.pattern.permute.xlu0 0
        %3547 = vperm.xlu0 %3546, %v3508
        %v3548 = vpop.permute.xlu0 %3547
        %3551 = vset.pattern.permute.xlu0 0
        %3552 = vperm.xlu0 %3551, %v3509
        %v3553 = vpop.permute.xlu0 %3552
        %3556 = vset.pattern.permute.xlu0 0
        %3557 = vperm.xlu0 %3556, %v3510
        %v3558 = vpop.permute.xlu0 %3557
        %3561 = vset.pattern.permute.xlu0 0
        %3562 = vperm.xlu0 %3561, %v3511
        %v3563 = vpop.permute.xlu0 %3562
        %3566 = vset.pattern.permute.xlu0 0
        %3567 = vperm.xlu0 %3566, %v3512
        %v3568 = vpop.permute.xlu0 %3567
        %3571 = vset.pattern.permute.xlu0 0
        %3572 = vperm.xlu0 %3571, %v3513
        %v3573 = vpop.permute.xlu0 %3572
        %3576 = vset.pattern.permute.xlu0 0
        %3577 = vperm.xlu0 %3576, %v3514
        %v3578 = vpop.permute.xlu0 %3577
        %v3580 = vadd.f32 %v3294, %v3518
        %v3581 = vadd.f32 %v3295, %v3518
        %v3582 = vadd.f32 %v3296, %v3518
        %v3583 = vadd.f32 %v3297, %v3518
        %v3584 = vadd.f32 %v3298, %v3518
        %v3585 = vadd.f32 %v3299, %v3518
        %v3586 = vadd.f32 %v3300, %v3518
        %v3587 = vadd.f32 %v3301, %v3518
        %v3588 = vadd.f32 %v3302, %v3523
        %v3589 = vadd.f32 %v3303, %v3523
        %v3590 = vadd.f32 %v3304, %v3523
        %v3591 = vadd.f32 %v3305, %v3523
        %v3592 = vadd.f32 %v3306, %v3523
        %v3593 = vadd.f32 %v3307, %v3523
        %v3594 = vadd.f32 %v3308, %v3523
        %v3595 = vadd.f32 %v3309, %v3523
        %v3596 = vadd.f32 %v3310, %v3528
        %v3597 = vadd.f32 %v3311, %v3528
        %v3598 = vadd.f32 %v3312, %v3528
        %v3599 = vadd.f32 %v3313, %v3528
        %v3600 = vadd.f32 %v3314, %v3528
        %v3601 = vadd.f32 %v3315, %v3528
        %v3602 = vadd.f32 %v3316, %v3528
        %v3603 = vadd.f32 %v3317, %v3528
        %v3604 = vadd.f32 %v3318, %v3533
        %v3605 = vadd.f32 %v3319, %v3533
        %v3606 = vadd.f32 %v3320, %v3533
        %v3607 = vadd.f32 %v3321, %v3533
        %v3608 = vadd.f32 %v3322, %v3533
        %v3609 = vadd.f32 %v3323, %v3533
        %v3610 = vadd.f32 %v3324, %v3533
        %v3611 = vadd.f32 %v3325, %v3533
        %v3612 = vadd.f32 %v3326, %v3538
        %v3613 = vadd.f32 %v3327, %v3538
        %v3614 = vadd.f32 %v3328, %v3538
        %v3615 = vadd.f32 %v3329, %v3538
        %v3616 = vadd.f32 %v3330, %v3538
        %v3617 = vadd.f32 %v3331, %v3538
        %v3618 = vadd.f32 %v3332, %v3538
        %v3619 = vadd.f32 %v3333, %v3538
        %v3620 = vadd.f32 %v3334, %v3543
        %v3621 = vadd.f32 %v3335, %v3543
        %v3622 = vadd.f32 %v3336, %v3543
        %v3623 = vadd.f32 %v3337, %v3543
        %v3624 = vadd.f32 %v3338, %v3543
        %v3625 = vadd.f32 %v3339, %v3543
        %v3626 = vadd.f32 %v3340, %v3543
        %v3627 = vadd.f32 %v3341, %v3543
        %v3628 = vadd.f32 %v3342, %v3548
        %v3629 = vadd.f32 %v3343, %v3548
        %v3630 = vadd.f32 %v3344, %v3548
        %v3631 = vadd.f32 %v3345, %v3548
        %v3632 = vadd.f32 %v3346, %v3548
        %v3633 = vadd.f32 %v3347, %v3548
        %v3634 = vadd.f32 %v3348, %v3548
        %v3635 = vadd.f32 %v3349, %v3548
        %v3636 = vadd.f32 %v3350, %v3553
        %v3637 = vadd.f32 %v3351, %v3553
        %v3638 = vadd.f32 %v3352, %v3553
        %v3639 = vadd.f32 %v3353, %v3553
        %v3640 = vadd.f32 %v3354, %v3553
        %v3641 = vadd.f32 %v3355, %v3553
        %v3642 = vadd.f32 %v3356, %v3553
        %v3643 = vadd.f32 %v3357, %v3553
        %v3644 = vadd.f32 %v3358, %v3558
        %v3645 = vadd.f32 %v3359, %v3558
        %v3646 = vadd.f32 %v3360, %v3558
        %v3647 = vadd.f32 %v3361, %v3558
        %v3648 = vadd.f32 %v3362, %v3558
        %v3649 = vadd.f32 %v3363, %v3558
        %v3650 = vadd.f32 %v3364, %v3558
        %v3651 = vadd.f32 %v3365, %v3558
        %v3652 = vadd.f32 %v3366, %v3563
        %v3653 = vadd.f32 %v3367, %v3563
        %v3654 = vadd.f32 %v3368, %v3563
        %v3655 = vadd.f32 %v3369, %v3563
        %v3656 = vadd.f32 %v3370, %v3563
        %v3657 = vadd.f32 %v3371, %v3563
        %v3658 = vadd.f32 %v3372, %v3563
        %v3659 = vadd.f32 %v3373, %v3563
        %v3660 = vadd.f32 %v3374, %v3568
        %v3661 = vadd.f32 %v3375, %v3568
        %v3662 = vadd.f32 %v3376, %v3568
        %v3663 = vadd.f32 %v3377, %v3568
        %v3664 = vadd.f32 %v3378, %v3568
        %v3665 = vadd.f32 %v3379, %v3568
        %v3666 = vadd.f32 %v3380, %v3568
        %v3667 = vadd.f32 %v3381, %v3568
        %v3668 = vadd.f32 %v3382, %v3573
        %v3669 = vadd.f32 %v3383, %v3573
        %v3670 = vadd.f32 %v3384, %v3573
        %v3671 = vadd.f32 %v3385, %v3573
        %v3672 = vadd.f32 %v3386, %v3573
        %v3673 = vadd.f32 %v3387, %v3573
        %v3674 = vadd.f32 %v3388, %v3573
        %v3675 = vadd.f32 %v3389, %v3573
        %v3676 = vadd.f32 %v3390, %v3578
        %v3677 = vadd.f32 %v3391, %v3578
        %v3678 = vadd.f32 %v3392, %v3578
        %v3679 = vadd.f32 %v3393, %v3578
        %v3680 = vadd.f32 %v3394, %v3578
        %v3681 = vadd.f32 %v3395, %v3578
        %v3682 = vadd.f32 %v3396, %v3578
        %v3683 = vadd.f32 %v3397, %v3578
        %v3684 = vadd.f32 %v3398, %v3518
        %v3685 = vadd.f32 %v3399, %v3518
        %v3686 = vadd.f32 %v3400, %v3518
        %v3687 = vadd.f32 %v3401, %v3518
        %v3688 = vadd.f32 %v3402, %v3518
        %v3689 = vadd.f32 %v3403, %v3518
        %v3690 = vadd.f32 %v3404, %v3518
        %v3691 = vadd.f32 %v3405, %v3518
        %v3692 = vadd.f32 %v3406, %v3523
        %v3693 = vadd.f32 %v3407, %v3523
        %v3694 = vadd.f32 %v3408, %v3523
        %v3695 = vadd.f32 %v3409, %v3523
        %v3696 = vadd.f32 %v3410, %v3523
        %v3697 = vadd.f32 %v3411, %v3523
        %v3698 = vadd.f32 %v3412, %v3523
        %v3699 = vadd.f32 %v3413, %v3523
        %v3700 = vadd.f32 %v3414, %v3528
        %v3701 = vadd.f32 %v3415, %v3528
        %v3702 = vadd.f32 %v3416, %v3528
        %v3703 = vadd.f32 %v3417, %v3528
        %v3704 = vadd.f32 %v3418, %v3528
        %v3705 = vadd.f32 %v3419, %v3528
        %v3706 = vadd.f32 %v3420, %v3528
        %v3707 = vadd.f32 %v3421, %v3528
        %v3708 = vadd.f32 %v3422, %v3533
        %v3709 = vadd.f32 %v3423, %v3533
        %v3710 = vadd.f32 %v3424, %v3533
        %v3711 = vadd.f32 %v3425, %v3533
        %v3712 = vadd.f32 %v3426, %v3533
        %v3713 = vadd.f32 %v3427, %v3533
        %v3714 = vadd.f32 %v3428, %v3533
        %v3715 = vadd.f32 %v3429, %v3533
        %v3716 = vadd.f32 %v3430, %v3538
        %v3717 = vadd.f32 %v3431, %v3538
        %v3718 = vadd.f32 %v3432, %v3538
        %v3719 = vadd.f32 %v3433, %v3538
        %v3720 = vadd.f32 %v3434, %v3538
        %v3721 = vadd.f32 %v3435, %v3538
        %v3722 = vadd.f32 %v3436, %v3538
        %v3723 = vadd.f32 %v3437, %v3538
        %v3724 = vadd.f32 %v3438, %v3543
        %v3725 = vadd.f32 %v3439, %v3543
        %v3726 = vadd.f32 %v3440, %v3543
        %v3727 = vadd.f32 %v3441, %v3543
        %v3728 = vadd.f32 %v3442, %v3543
        %v3729 = vadd.f32 %v3443, %v3543
        %v3730 = vadd.f32 %v3444, %v3543
        %v3731 = vadd.f32 %v3445, %v3543
        %v3732 = vadd.f32 %v3446, %v3548
        %v3733 = vadd.f32 %v3447, %v3548
        %v3734 = vadd.f32 %v3448, %v3548
        %v3735 = vadd.f32 %v3449, %v3548
        %v3736 = vadd.f32 %v3450, %v3548
        %v3737 = vadd.f32 %v3451, %v3548
        %v3738 = vadd.f32 %v3452, %v3548
        %v3739 = vadd.f32 %v3453, %v3548
        %v3740 = vadd.f32 %v3454, %v3553
        %v3741 = vadd.f32 %v3455, %v3553
        %v3742 = vadd.f32 %v3456, %v3553
        %v3743 = vadd.f32 %v3457, %v3553
        %v3744 = vadd.f32 %v3458, %v3553
        %v3745 = vadd.f32 %v3459, %v3553
        %v3746 = vadd.f32 %v3460, %v3553
        %v3747 = vadd.f32 %v3461, %v3553
        %v3748 = vadd.f32 %v3462, %v3558
        %v3749 = vadd.f32 %v3463, %v3558
        %v3750 = vadd.f32 %v3464, %v3558
        %v3751 = vadd.f32 %v3465, %v3558
        %v3752 = vadd.f32 %v3466, %v3558
        %v3753 = vadd.f32 %v3467, %v3558
        %v3754 = vadd.f32 %v3468, %v3558
        %v3755 = vadd.f32 %v3469, %v3558
        %v3756 = vadd.f32 %v3470, %v3563
        %v3757 = vadd.f32 %v3471, %v3563
        %v3758 = vadd.f32 %v3472, %v3563
        %v3759 = vadd.f32 %v3473, %v3563
        %v3760 = vadd.f32 %v3474, %v3563
        %v3761 = vadd.f32 %v3475, %v3563
        %v3762 = vadd.f32 %v3476, %v3563
        %v3763 = vadd.f32 %v3477, %v3563
        %v3764 = vadd.f32 %v3478, %v3568
        %v3765 = vadd.f32 %v3479, %v3568
        %v3766 = vadd.f32 %v3480, %v3568
        %v3767 = vadd.f32 %v3481, %v3568
        %v3768 = vadd.f32 %v3482, %v3568
        %v3769 = vadd.f32 %v3483, %v3568
        %v3770 = vadd.f32 %v3484, %v3568
        %v3771 = vadd.f32 %v3485, %v3568
        %v3772 = vadd.f32 %v3486, %v3573
        %v3773 = vadd.f32 %v3487, %v3573
        %v3774 = vadd.f32 %v3488, %v3573
        %v3775 = vadd.f32 %v3489, %v3573
        %v3776 = vadd.f32 %v3490, %v3573
        %v3777 = vadd.f32 %v3491, %v3573
        %v3778 = vadd.f32 %v3492, %v3573
        %v3779 = vadd.f32 %v3493, %v3573
        %v3780 = vadd.f32 %v3494, %v3578
        %v3781 = vadd.f32 %v3495, %v3578
        %v3782 = vadd.f32 %v3496, %v3578
        %v3783 = vadd.f32 %v3497, %v3578
        %v3784 = vadd.f32 %v3498, %v3578
        %v3785 = vadd.f32 %v3499, %v3578
        %v3786 = vadd.f32 %v3500, %v3578
        %v3787 = vadd.f32 %v3501, %v3578
        %v3788 = vpack.c.bf16 %v3588, %v3580
        %v3789 = vpack.c.bf16 %v3589, %v3581
        %v3790 = vpack.c.bf16 %v3590, %v3582
        %v3791 = vpack.c.bf16 %v3591, %v3583
        %v3792 = vpack.c.bf16 %v3592, %v3584
        %v3793 = vpack.c.bf16 %v3593, %v3585
        %v3794 = vpack.c.bf16 %v3594, %v3586
        %v3795 = vpack.c.bf16 %v3595, %v3587
        %v3796 = vpack.c.bf16 %v3604, %v3596
        %v3797 = vpack.c.bf16 %v3605, %v3597
        %v3798 = vpack.c.bf16 %v3606, %v3598
        %v3799 = vpack.c.bf16 %v3607, %v3599
        %v3800 = vpack.c.bf16 %v3608, %v3600
        %v3801 = vpack.c.bf16 %v3609, %v3601
        %v3802 = vpack.c.bf16 %v3610, %v3602
        %v3803 = vpack.c.bf16 %v3611, %v3603
        %v3804 = vpack.c.bf16 %v3620, %v3612
        %v3805 = vpack.c.bf16 %v3621, %v3613
        %v3806 = vpack.c.bf16 %v3622, %v3614
        %v3807 = vpack.c.bf16 %v3623, %v3615
        %v3808 = vpack.c.bf16 %v3624, %v3616
        %v3809 = vpack.c.bf16 %v3625, %v3617
        %v3810 = vpack.c.bf16 %v3626, %v3618
        %v3811 = vpack.c.bf16 %v3627, %v3619
        %v3812 = vpack.c.bf16 %v3636, %v3628
        %v3813 = vpack.c.bf16 %v3637, %v3629
        %v3814 = vpack.c.bf16 %v3638, %v3630
        %v3815 = vpack.c.bf16 %v3639, %v3631
        %v3816 = vpack.c.bf16 %v3640, %v3632
        %v3817 = vpack.c.bf16 %v3641, %v3633
        %v3818 = vpack.c.bf16 %v3642, %v3634
        %v3819 = vpack.c.bf16 %v3643, %v3635
        %v3820 = vpack.c.bf16 %v3652, %v3644
        %v3821 = vpack.c.bf16 %v3653, %v3645
        %v3822 = vpack.c.bf16 %v3654, %v3646
        %v3823 = vpack.c.bf16 %v3655, %v3647
        %v3824 = vpack.c.bf16 %v3656, %v3648
        %v3825 = vpack.c.bf16 %v3657, %v3649
        %v3826 = vpack.c.bf16 %v3658, %v3650
        %v3827 = vpack.c.bf16 %v3659, %v3651
        %v3828 = vpack.c.bf16 %v3668, %v3660
        %v3829 = vpack.c.bf16 %v3669, %v3661
        %v3830 = vpack.c.bf16 %v3670, %v3662
        %v3831 = vpack.c.bf16 %v3671, %v3663
        %v3832 = vpack.c.bf16 %v3672, %v3664
        %v3833 = vpack.c.bf16 %v3673, %v3665
        %v3834 = vpack.c.bf16 %v3674, %v3666
        %v3835 = vpack.c.bf16 %v3675, %v3667
        %v3836 = vpack.c.bf16 %v3676, %v3676
        %v3837 = vpack.c.bf16 %v3677, %v3677
        %v3838 = vpack.c.bf16 %v3678, %v3678
        %v3839 = vpack.c.bf16 %v3679, %v3679
        %v3840 = vpack.c.bf16 %v3680, %v3680
        %v3841 = vpack.c.bf16 %v3681, %v3681
        %v3842 = vpack.c.bf16 %v3682, %v3682
        %v3843 = vpack.c.bf16 %v3683, %v3683
        %v3844 = vpack.c.bf16 %v3692, %v3684
        %v3845 = vpack.c.bf16 %v3693, %v3685
        %v3846 = vpack.c.bf16 %v3694, %v3686
        %v3847 = vpack.c.bf16 %v3695, %v3687
        %v3848 = vpack.c.bf16 %v3696, %v3688
        %v3849 = vpack.c.bf16 %v3697, %v3689
        %v3850 = vpack.c.bf16 %v3698, %v3690
        %v3851 = vpack.c.bf16 %v3699, %v3691
        %v3852 = vpack.c.bf16 %v3708, %v3700
        %v3853 = vpack.c.bf16 %v3709, %v3701
        %v3854 = vpack.c.bf16 %v3710, %v3702
        %v3855 = vpack.c.bf16 %v3711, %v3703
        %v3856 = vpack.c.bf16 %v3712, %v3704
        %v3857 = vpack.c.bf16 %v3713, %v3705
        %v3858 = vpack.c.bf16 %v3714, %v3706
        %v3859 = vpack.c.bf16 %v3715, %v3707
        %v3860 = vpack.c.bf16 %v3724, %v3716
        %v3861 = vpack.c.bf16 %v3725, %v3717
        %v3862 = vpack.c.bf16 %v3726, %v3718
        %v3863 = vpack.c.bf16 %v3727, %v3719
        %v3864 = vpack.c.bf16 %v3728, %v3720
        %v3865 = vpack.c.bf16 %v3729, %v3721
        %v3866 = vpack.c.bf16 %v3730, %v3722
        %v3867 = vpack.c.bf16 %v3731, %v3723
        %v3868 = vpack.c.bf16 %v3740, %v3732
        %v3869 = vpack.c.bf16 %v3741, %v3733
        %v3870 = vpack.c.bf16 %v3742, %v3734
        %v3871 = vpack.c.bf16 %v3743, %v3735
        %v3872 = vpack.c.bf16 %v3744, %v3736
        %v3873 = vpack.c.bf16 %v3745, %v3737
        %v3874 = vpack.c.bf16 %v3746, %v3738
        %v3875 = vpack.c.bf16 %v3747, %v3739
        %v3876 = vpack.c.bf16 %v3756, %v3748
        %v3877 = vpack.c.bf16 %v3757, %v3749
        %v3878 = vpack.c.bf16 %v3758, %v3750
        %v3879 = vpack.c.bf16 %v3759, %v3751
        %v3880 = vpack.c.bf16 %v3760, %v3752
        %v3881 = vpack.c.bf16 %v3761, %v3753
        %v3882 = vpack.c.bf16 %v3762, %v3754
        %v3883 = vpack.c.bf16 %v3763, %v3755
        %v3884 = vpack.c.bf16 %v3772, %v3764
        %v3885 = vpack.c.bf16 %v3773, %v3765
        %v3886 = vpack.c.bf16 %v3774, %v3766
        %v3887 = vpack.c.bf16 %v3775, %v3767
        %v3888 = vpack.c.bf16 %v3776, %v3768
        %v3889 = vpack.c.bf16 %v3777, %v3769
        %v3890 = vpack.c.bf16 %v3778, %v3770
        %v3891 = vpack.c.bf16 %v3779, %v3771
        %v3892 = vpack.c.bf16 %v3780, %v3780
        %v3893 = vpack.c.bf16 %v3781, %v3781
        %v3894 = vpack.c.bf16 %v3782, %v3782
        %v3895 = vpack.c.bf16 %v3783, %v3783
        %v3896 = vpack.c.bf16 %v3784, %v3784
        %v3897 = vpack.c.bf16 %v3785, %v3785
        %v3898 = vpack.c.bf16 %v3786, %v3786
        %v3899 = vpack.c.bf16 %v3787, %v3787
        %v4012 = vunpack.c.l.b16 %v3788
        %v4013 = vunpack.c.l.b16 %v3789
        %v4014 = vunpack.c.l.b16 %v3790
        %v4015 = vunpack.c.l.b16 %v3791
        %v4016 = vunpack.c.l.b16 %v3792
        %v4017 = vunpack.c.l.b16 %v3793
        %v4018 = vunpack.c.l.b16 %v3794
        %v4019 = vunpack.c.l.b16 %v3795
        %v4020 = vunpack.c.h.b16 %v3788
        %v4021 = vunpack.c.h.b16 %v3789
        %v4022 = vunpack.c.h.b16 %v3790
        %v4023 = vunpack.c.h.b16 %v3791
        %v4024 = vunpack.c.h.b16 %v3792
        %v4025 = vunpack.c.h.b16 %v3793
        %v4026 = vunpack.c.h.b16 %v3794
        %v4027 = vunpack.c.h.b16 %v3795
        %v4028 = vunpack.c.l.b16 %v3796
        %v4029 = vunpack.c.l.b16 %v3797
        %v4030 = vunpack.c.l.b16 %v3798
        %v4031 = vunpack.c.l.b16 %v3799
        %v4032 = vunpack.c.l.b16 %v3800
        %v4033 = vunpack.c.l.b16 %v3801
        %v4034 = vunpack.c.l.b16 %v3802
        %v4035 = vunpack.c.l.b16 %v3803
        %v4036 = vunpack.c.h.b16 %v3796
        %v4037 = vunpack.c.h.b16 %v3797
        %v4038 = vunpack.c.h.b16 %v3798
        %v4039 = vunpack.c.h.b16 %v3799
        %v4040 = vunpack.c.h.b16 %v3800
        %v4041 = vunpack.c.h.b16 %v3801
        %v4042 = vunpack.c.h.b16 %v3802
        %v4043 = vunpack.c.h.b16 %v3803
        %v4044 = vunpack.c.l.b16 %v3804
        %v4045 = vunpack.c.l.b16 %v3805
        %v4046 = vunpack.c.l.b16 %v3806
        %v4047 = vunpack.c.l.b16 %v3807
        %v4048 = vunpack.c.l.b16 %v3808
        %v4049 = vunpack.c.l.b16 %v3809
        %v4050 = vunpack.c.l.b16 %v3810
        %v4051 = vunpack.c.l.b16 %v3811
        %v4052 = vunpack.c.h.b16 %v3804
        %v4053 = vunpack.c.h.b16 %v3805
        %v4054 = vunpack.c.h.b16 %v3806
        %v4055 = vunpack.c.h.b16 %v3807
        %v4056 = vunpack.c.h.b16 %v3808
        %v4057 = vunpack.c.h.b16 %v3809
        %v4058 = vunpack.c.h.b16 %v3810
        %v4059 = vunpack.c.h.b16 %v3811
        %v4060 = vunpack.c.l.b16 %v3812
        %v4061 = vunpack.c.l.b16 %v3813
        %v4062 = vunpack.c.l.b16 %v3814
        %v4063 = vunpack.c.l.b16 %v3815
        %v4064 = vunpack.c.l.b16 %v3816
        %v4065 = vunpack.c.l.b16 %v3817
        %v4066 = vunpack.c.l.b16 %v3818
        %v4067 = vunpack.c.l.b16 %v3819
        %v4068 = vunpack.c.h.b16 %v3812
        %v4069 = vunpack.c.h.b16 %v3813
        %v4070 = vunpack.c.h.b16 %v3814
        %v4071 = vunpack.c.h.b16 %v3815
        %v4072 = vunpack.c.h.b16 %v3816
        %v4073 = vunpack.c.h.b16 %v3817
        %v4074 = vunpack.c.h.b16 %v3818
        %v4075 = vunpack.c.h.b16 %v3819
        %v4076 = vunpack.c.l.b16 %v3820
        %v4077 = vunpack.c.l.b16 %v3821
        %v4078 = vunpack.c.l.b16 %v3822
        %v4079 = vunpack.c.l.b16 %v3823
        %v4080 = vunpack.c.l.b16 %v3824
        %v4081 = vunpack.c.l.b16 %v3825
        %v4082 = vunpack.c.l.b16 %v3826
        %v4083 = vunpack.c.l.b16 %v3827
        %v4084 = vunpack.c.h.b16 %v3820
        %v4085 = vunpack.c.h.b16 %v3821
        %v4086 = vunpack.c.h.b16 %v3822
        %v4087 = vunpack.c.h.b16 %v3823
        %v4088 = vunpack.c.h.b16 %v3824
        %v4089 = vunpack.c.h.b16 %v3825
        %v4090 = vunpack.c.h.b16 %v3826
        %v4091 = vunpack.c.h.b16 %v3827
        %v4092 = vunpack.c.l.b16 %v3828
        %v4093 = vunpack.c.l.b16 %v3829
        %v4094 = vunpack.c.l.b16 %v3830
        %v4095 = vunpack.c.l.b16 %v3831
        %v4096 = vunpack.c.l.b16 %v3832
        %v4097 = vunpack.c.l.b16 %v3833
        %v4098 = vunpack.c.l.b16 %v3834
        %v4099 = vunpack.c.l.b16 %v3835
        %v4100 = vunpack.c.h.b16 %v3828
        %v4101 = vunpack.c.h.b16 %v3829
        %v4102 = vunpack.c.h.b16 %v3830
        %v4103 = vunpack.c.h.b16 %v3831
        %v4104 = vunpack.c.h.b16 %v3832
        %v4105 = vunpack.c.h.b16 %v3833
        %v4106 = vunpack.c.h.b16 %v3834
        %v4107 = vunpack.c.h.b16 %v3835
        %v4108 = vunpack.c.l.b16 %v3836
        %v4109 = vunpack.c.l.b16 %v3837
        %v4110 = vunpack.c.l.b16 %v3838
        %v4111 = vunpack.c.l.b16 %v3839
        %v4112 = vunpack.c.l.b16 %v3840
        %v4113 = vunpack.c.l.b16 %v3841
        %v4114 = vunpack.c.l.b16 %v3842
        %v4115 = vunpack.c.l.b16 %v3843
        %v4116 = vunpack.c.l.b16 %v3844
        %v4117 = vunpack.c.l.b16 %v3845
        %v4118 = vunpack.c.l.b16 %v3846
        %v4119 = vunpack.c.l.b16 %v3847
        %v4120 = vunpack.c.l.b16 %v3848
        %v4121 = vunpack.c.l.b16 %v3849
        %v4122 = vunpack.c.l.b16 %v3850
        %v4123 = vunpack.c.l.b16 %v3851
        %v4124 = vunpack.c.h.b16 %v3844
        %v4125 = vunpack.c.h.b16 %v3845
        %v4126 = vunpack.c.h.b16 %v3846
        %v4127 = vunpack.c.h.b16 %v3847
        %v4128 = vunpack.c.h.b16 %v3848
        %v4129 = vunpack.c.h.b16 %v3849
        %v4130 = vunpack.c.h.b16 %v3850
        %v4131 = vunpack.c.h.b16 %v3851
        %v4132 = vunpack.c.l.b16 %v3852
        %v4133 = vunpack.c.l.b16 %v3853
        %v4134 = vunpack.c.l.b16 %v3854
        %v4135 = vunpack.c.l.b16 %v3855
        %v4136 = vunpack.c.l.b16 %v3856
        %v4137 = vunpack.c.l.b16 %v3857
        %v4138 = vunpack.c.l.b16 %v3858
        %v4139 = vunpack.c.l.b16 %v3859
        %v4140 = vunpack.c.h.b16 %v3852
        %v4141 = vunpack.c.h.b16 %v3853
        %v4142 = vunpack.c.h.b16 %v3854
        %v4143 = vunpack.c.h.b16 %v3855
        %v4144 = vunpack.c.h.b16 %v3856
        %v4145 = vunpack.c.h.b16 %v3857
        %v4146 = vunpack.c.h.b16 %v3858
        %v4147 = vunpack.c.h.b16 %v3859
        %v4148 = vunpack.c.l.b16 %v3860
        %v4149 = vunpack.c.l.b16 %v3861
        %v4150 = vunpack.c.l.b16 %v3862
        %v4151 = vunpack.c.l.b16 %v3863
        %v4152 = vunpack.c.l.b16 %v3864
        %v4153 = vunpack.c.l.b16 %v3865
        %v4154 = vunpack.c.l.b16 %v3866
        %v4155 = vunpack.c.l.b16 %v3867
        %v4156 = vunpack.c.h.b16 %v3860
        %v4157 = vunpack.c.h.b16 %v3861
        %v4158 = vunpack.c.h.b16 %v3862
        %v4159 = vunpack.c.h.b16 %v3863
        %v4160 = vunpack.c.h.b16 %v3864
        %v4161 = vunpack.c.h.b16 %v3865
        %v4162 = vunpack.c.h.b16 %v3866
        %v4163 = vunpack.c.h.b16 %v3867
        %v4164 = vunpack.c.l.b16 %v3868
        %v4165 = vunpack.c.l.b16 %v3869
        %v4166 = vunpack.c.l.b16 %v3870
        %v4167 = vunpack.c.l.b16 %v3871
        %v4168 = vunpack.c.l.b16 %v3872
        %v4169 = vunpack.c.l.b16 %v3873
        %v4170 = vunpack.c.l.b16 %v3874
        %v4171 = vunpack.c.l.b16 %v3875
        %v4172 = vunpack.c.h.b16 %v3868
        %v4173 = vunpack.c.h.b16 %v3869
        %v4174 = vunpack.c.h.b16 %v3870
        %v4175 = vunpack.c.h.b16 %v3871
        %v4176 = vunpack.c.h.b16 %v3872
        %v4177 = vunpack.c.h.b16 %v3873
        %v4178 = vunpack.c.h.b16 %v3874
        %v4179 = vunpack.c.h.b16 %v3875
        %v4180 = vunpack.c.l.b16 %v3876
        %v4181 = vunpack.c.l.b16 %v3877
        %v4182 = vunpack.c.l.b16 %v3878
        %v4183 = vunpack.c.l.b16 %v3879
        %v4184 = vunpack.c.l.b16 %v3880
        %v4185 = vunpack.c.l.b16 %v3881
        %v4186 = vunpack.c.l.b16 %v3882
        %v4187 = vunpack.c.l.b16 %v3883
        %v4188 = vunpack.c.h.b16 %v3876
        %v4189 = vunpack.c.h.b16 %v3877
        %v4190 = vunpack.c.h.b16 %v3878
        %v4191 = vunpack.c.h.b16 %v3879
        %v4192 = vunpack.c.h.b16 %v3880
        %v4193 = vunpack.c.h.b16 %v3881
        %v4194 = vunpack.c.h.b16 %v3882
        %v4195 = vunpack.c.h.b16 %v3883
        %v4196 = vunpack.c.l.b16 %v3884
        %v4197 = vunpack.c.l.b16 %v3885
        %v4198 = vunpack.c.l.b16 %v3886
        %v4199 = vunpack.c.l.b16 %v3887
        %v4200 = vunpack.c.l.b16 %v3888
        %v4201 = vunpack.c.l.b16 %v3889
        %v4202 = vunpack.c.l.b16 %v3890
        %v4203 = vunpack.c.l.b16 %v3891
        %v4204 = vunpack.c.h.b16 %v3884
        %v4205 = vunpack.c.h.b16 %v3885
        %v4206 = vunpack.c.h.b16 %v3886
        %v4207 = vunpack.c.h.b16 %v3887
        %v4208 = vunpack.c.h.b16 %v3888
        %v4209 = vunpack.c.h.b16 %v3889
        %v4210 = vunpack.c.h.b16 %v3890
        %v4211 = vunpack.c.h.b16 %v3891
        %v4212 = vunpack.c.l.b16 %v3892
        %v4213 = vunpack.c.l.b16 %v3893
        %v4214 = vunpack.c.l.b16 %v3894
        %v4215 = vunpack.c.l.b16 %v3895
        %v4216 = vunpack.c.l.b16 %v3896
        %v4217 = vunpack.c.l.b16 %v3897
        %v4218 = vunpack.c.l.b16 %v3898
        %v4219 = vunpack.c.l.b16 %v3899
        %v4220 = vpack.c.b16 %v4013, %v4012
        %v4221 = vpack.c.b16 %v4015, %v4014
        %v4222 = vpack.c.b16 %v4017, %v4016
        %v4223 = vpack.c.b16 %v4019, %v4018
        %v4224 = vpack.c.b16 %v4021, %v4020
        %v4225 = vpack.c.b16 %v4023, %v4022
        %v4226 = vpack.c.b16 %v4025, %v4024
        %v4227 = vpack.c.b16 %v4027, %v4026
        %v4228 = vpack.c.b16 %v4029, %v4028
        %v4229 = vpack.c.b16 %v4031, %v4030
        %v4230 = vpack.c.b16 %v4033, %v4032
        %v4231 = vpack.c.b16 %v4035, %v4034
        %v4232 = vpack.c.b16 %v4037, %v4036
        %v4233 = vpack.c.b16 %v4039, %v4038
        %v4234 = vpack.c.b16 %v4041, %v4040
        %v4235 = vpack.c.b16 %v4043, %v4042
        %v4236 = vpack.c.b16 %v4045, %v4044
        %v4237 = vpack.c.b16 %v4047, %v4046
        %v4238 = vpack.c.b16 %v4049, %v4048
        %v4239 = vpack.c.b16 %v4051, %v4050
        %v4240 = vpack.c.b16 %v4053, %v4052
        %v4241 = vpack.c.b16 %v4055, %v4054
        %v4242 = vpack.c.b16 %v4057, %v4056
        %v4243 = vpack.c.b16 %v4059, %v4058
        %v4244 = vpack.c.b16 %v4061, %v4060
        %v4245 = vpack.c.b16 %v4063, %v4062
        %v4246 = vpack.c.b16 %v4065, %v4064
        %v4247 = vpack.c.b16 %v4067, %v4066
        %v4248 = vpack.c.b16 %v4069, %v4068
        %v4249 = vpack.c.b16 %v4071, %v4070
        %v4250 = vpack.c.b16 %v4073, %v4072
        %v4251 = vpack.c.b16 %v4075, %v4074
        %v4252 = vpack.c.b16 %v4077, %v4076
        %v4253 = vpack.c.b16 %v4079, %v4078
        %v4254 = vpack.c.b16 %v4081, %v4080
        %v4255 = vpack.c.b16 %v4083, %v4082
        %v4256 = vpack.c.b16 %v4085, %v4084
        %v4257 = vpack.c.b16 %v4087, %v4086
        %v4258 = vpack.c.b16 %v4089, %v4088
        %v4259 = vpack.c.b16 %v4091, %v4090
        %v4260 = vpack.c.b16 %v4093, %v4092
        %v4261 = vpack.c.b16 %v4095, %v4094
        %v4262 = vpack.c.b16 %v4097, %v4096
        %v4263 = vpack.c.b16 %v4099, %v4098
        %v4264 = vpack.c.b16 %v4101, %v4100
        %v4265 = vpack.c.b16 %v4103, %v4102
        %v4266 = vpack.c.b16 %v4105, %v4104
        %v4267 = vpack.c.b16 %v4107, %v4106
        %v4268 = vpack.c.b16 %v4109, %v4108
        %v4269 = vpack.c.b16 %v4111, %v4110
        %v4270 = vpack.c.b16 %v4113, %v4112
        %v4271 = vpack.c.b16 %v4115, %v4114
        %v4272 = vpack.c.b16 %v4117, %v4116
        %v4273 = vpack.c.b16 %v4119, %v4118
        %v4274 = vpack.c.b16 %v4121, %v4120
        %v4275 = vpack.c.b16 %v4123, %v4122
        %v4276 = vpack.c.b16 %v4125, %v4124
        %v4277 = vpack.c.b16 %v4127, %v4126
        %v4278 = vpack.c.b16 %v4129, %v4128
        %v4279 = vpack.c.b16 %v4131, %v4130
        %v4280 = vpack.c.b16 %v4133, %v4132
        %v4281 = vpack.c.b16 %v4135, %v4134
        %v4282 = vpack.c.b16 %v4137, %v4136
        %v4283 = vpack.c.b16 %v4139, %v4138
        %v4284 = vpack.c.b16 %v4141, %v4140
        %v4285 = vpack.c.b16 %v4143, %v4142
        %v4286 = vpack.c.b16 %v4145, %v4144
        %v4287 = vpack.c.b16 %v4147, %v4146
        %v4288 = vpack.c.b16 %v4149, %v4148
        %v4289 = vpack.c.b16 %v4151, %v4150
        %v4290 = vpack.c.b16 %v4153, %v4152
        %v4291 = vpack.c.b16 %v4155, %v4154
        %v4292 = vpack.c.b16 %v4157, %v4156
        %v4293 = vpack.c.b16 %v4159, %v4158
        %v4294 = vpack.c.b16 %v4161, %v4160
        %v4295 = vpack.c.b16 %v4163, %v4162
        %v4296 = vpack.c.b16 %v4165, %v4164
        %v4297 = vpack.c.b16 %v4167, %v4166
        %v4298 = vpack.c.b16 %v4169, %v4168
        %v4299 = vpack.c.b16 %v4171, %v4170
        %v4300 = vpack.c.b16 %v4173, %v4172
        %v4301 = vpack.c.b16 %v4175, %v4174
        %v4302 = vpack.c.b16 %v4177, %v4176
        %v4303 = vpack.c.b16 %v4179, %v4178
        %v4304 = vpack.c.b16 %v4181, %v4180
        %v4305 = vpack.c.b16 %v4183, %v4182
        %v4306 = vpack.c.b16 %v4185, %v4184
        %v4307 = vpack.c.b16 %v4187, %v4186
        %v4308 = vpack.c.b16 %v4189, %v4188
        %v4309 = vpack.c.b16 %v4191, %v4190
        %v4310 = vpack.c.b16 %v4193, %v4192
        %v4311 = vpack.c.b16 %v4195, %v4194
        %v4312 = vpack.c.b16 %v4197, %v4196
        %v4313 = vpack.c.b16 %v4199, %v4198
        %v4314 = vpack.c.b16 %v4201, %v4200
        %v4315 = vpack.c.b16 %v4203, %v4202
        %v4316 = vpack.c.b16 %v4205, %v4204
        %v4317 = vpack.c.b16 %v4207, %v4206
        %v4318 = vpack.c.b16 %v4209, %v4208
        %v4319 = vpack.c.b16 %v4211, %v4210
        %v4320 = vpack.c.b16 %v4213, %v4212
        %v4321 = vpack.c.b16 %v4215, %v4214
        %v4322 = vpack.c.b16 %v4217, %v4216
        %v4323 = vpack.c.b16 %v4219, %v4218
        %4428 = vst [vmem:[%s351] sm:$0xff] %v4220
        %4429 = vst [vmem:[%s351 + $0x8] sm:$0xff] %v4221
        %4430 = vst [vmem:[%s351 + $0x10] sm:$0xff] %v4222
        %4431 = vst [vmem:[%s351 + $0x18] sm:$0xff] %v4223
        %4432 = vst [vmem:[%s351 + $0x20] sm:$0xff] %v4224
        %4433 = vst [vmem:[%s351 + $0x28] sm:$0xff] %v4225
        %4434 = vst [vmem:[%s351 + $0x30] sm:$0xff] %v4226
        %4435 = vst [vmem:[%s351 + $0x38] sm:$0xff] %v4227
        %4436 = vst [vmem:[%s351 + $0x40] sm:$0xff] %v4228
        %4437 = vst [vmem:[%s351 + $0x48] sm:$0xff] %v4229
        %4438 = vst [vmem:[%s351 + $0x50] sm:$0xff] %v4230
        %4439 = vst [vmem:[%s351 + $0x58] sm:$0xff] %v4231
        %4440 = vst [vmem:[%s351 + $0x60] sm:$0xff] %v4232
        %4441 = vst [vmem:[%s351 + $0x68] sm:$0xff] %v4233
        %4442 = vst [vmem:[%s351 + $0x70] sm:$0xff] %v4234
        %4443 = vst [vmem:[%s351 + $0x78] sm:$0xff] %v4235
        %4444 = vst [vmem:[%s351 + $0x80] sm:$0xff] %v4236
        %4445 = vst [vmem:[%s351 + $0x88] sm:$0xff] %v4237
        %4446 = vst [vmem:[%s351 + $0x90] sm:$0xff] %v4238
        %4447 = vst [vmem:[%s351 + $0x98] sm:$0xff] %v4239
        %4448 = vst [vmem:[%s351 + $0xa0] sm:$0xff] %v4240
        %4449 = vst [vmem:[%s351 + $0xa8] sm:$0xff] %v4241
        %4450 = vst [vmem:[%s351 + $0xb0] sm:$0xff] %v4242
        %4451 = vst [vmem:[%s351 + $0xb8] sm:$0xff] %v4243
        %4452 = vst [vmem:[%s351 + $0xc0] sm:$0xff] %v4244
        %4453 = vst [vmem:[%s351 + $0xc8] sm:$0xff] %v4245
        %4454 = vst [vmem:[%s351 + $0xd0] sm:$0xff] %v4246
        %4455 = vst [vmem:[%s351 + $0xd8] sm:$0xff] %v4247
        %4456 = vst [vmem:[%s351 + $0xe0] sm:$0xff] %v4248
        %4457 = vst [vmem:[%s351 + $0xe8] sm:$0xff] %v4249
        %4458 = vst [vmem:[%s351 + $0xf0] sm:$0xff] %v4250
        %4459 = vst [vmem:[%s351 + $0xf8] sm:$0xff] %v4251
        %4460 = vst [vmem:[%s351 + $0x100] sm:$0xff] %v4252
        %4461 = vst [vmem:[%s351 + $0x108] sm:$0xff] %v4253
        %4462 = vst [vmem:[%s351 + $0x110] sm:$0xff] %v4254
        %4463 = vst [vmem:[%s351 + $0x118] sm:$0xff] %v4255
        %4464 = vst [vmem:[%s351 + $0x120] sm:$0xff] %v4256
        %4465 = vst [vmem:[%s351 + $0x128] sm:$0xff] %v4257
        %4466 = vst [vmem:[%s351 + $0x130] sm:$0xff] %v4258
        %4467 = vst [vmem:[%s351 + $0x138] sm:$0xff] %v4259
        %4468 = vst [vmem:[%s351 + $0x140] sm:$0xff] %v4260
        %4469 = vst [vmem:[%s351 + $0x148] sm:$0xff] %v4261
        %4470 = vst [vmem:[%s351 + $0x150] sm:$0xff] %v4262
        %4471 = vst [vmem:[%s351 + $0x158] sm:$0xff] %v4263
        %4472 = vst [vmem:[%s351 + $0x160] sm:$0xff] %v4264
        %4473 = vst [vmem:[%s351 + $0x168] sm:$0xff] %v4265
        %4474 = vst [vmem:[%s351 + $0x170] sm:$0xff] %v4266
        %4475 = vst [vmem:[%s351 + $0x178] sm:$0xff] %v4267
        %4476 = vst [vmem:[%s351 + $0x180] sm:$0x33] %v4268
        %4477 = vst [vmem:[%s351 + $0x188] sm:$0x33] %v4269
        %4478 = vst [vmem:[%s351 + $0x190] sm:$0x33] %v4270
        %4479 = vst [vmem:[%s351 + $0x198] sm:$0x33] %v4271
        %4480 = vst [vmem:[%s351 + $0x1a0] sm:$0xff] %v4272
        %4481 = vst [vmem:[%s351 + $0x1a8] sm:$0xff] %v4273
        %4482 = vst [vmem:[%s351 + $0x1b0] sm:$0xff] %v4274
        %4483 = vst [vmem:[%s351 + $0x1b8] sm:$0xff] %v4275
        %4484 = vst [vmem:[%s351 + $0x1c0] sm:$0xff] %v4276
        %4485 = vst [vmem:[%s351 + $0x1c8] sm:$0xff] %v4277
        %4486 = vst [vmem:[%s351 + $0x1d0] sm:$0xff] %v4278
        %4487 = vst [vmem:[%s351 + $0x1d8] sm:$0xff] %v4279
        %4488 = vst [vmem:[%s351 + $0x1e0] sm:$0xff] %v4280
        %4489 = vst [vmem:[%s351 + $0x1e8] sm:$0xff] %v4281
        %4490 = vst [vmem:[%s351 + $0x1f0] sm:$0xff] %v4282
        %4491 = vst [vmem:[%s351 + $0x1f8] sm:$0xff] %v4283
        %4492 = vst [vmem:[%s351 + $0x200] sm:$0xff] %v4284
        %4493 = vst [vmem:[%s351 + $0x208] sm:$0xff] %v4285
        %4494 = vst [vmem:[%s351 + $0x210] sm:$0xff] %v4286
        %4495 = vst [vmem:[%s351 + $0x218] sm:$0xff] %v4287
        %4496 = vst [vmem:[%s351 + $0x220] sm:$0xff] %v4288
        %4497 = vst [vmem:[%s351 + $0x228] sm:$0xff] %v4289
        %4498 = vst [vmem:[%s351 + $0x230] sm:$0xff] %v4290
        %4499 = vst [vmem:[%s351 + $0x238] sm:$0xff] %v4291
        %4500 = vst [vmem:[%s351 + $0x240] sm:$0xff] %v4292
        %4501 = vst [vmem:[%s351 + $0x248] sm:$0xff] %v4293
        %4502 = vst [vmem:[%s351 + $0x250] sm:$0xff] %v4294
        %4503 = vst [vmem:[%s351 + $0x258] sm:$0xff] %v4295
        %4504 = vst [vmem:[%s351 + $0x260] sm:$0xff] %v4296
        %4505 = vst [vmem:[%s351 + $0x268] sm:$0xff] %v4297
        %4506 = vst [vmem:[%s351 + $0x270] sm:$0xff] %v4298
        %4507 = vst [vmem:[%s351 + $0x278] sm:$0xff] %v4299
        %4508 = vst [vmem:[%s351 + $0x280] sm:$0xff] %v4300
        %4509 = vst [vmem:[%s351 + $0x288] sm:$0xff] %v4301
        %4510 = vst [vmem:[%s351 + $0x290] sm:$0xff] %v4302
        %4511 = vst [vmem:[%s351 + $0x298] sm:$0xff] %v4303
        %4512 = vst [vmem:[%s351 + $0x2a0] sm:$0xff] %v4304
        %4513 = vst [vmem:[%s351 + $0x2a8] sm:$0xff] %v4305
        %4514 = vst [vmem:[%s351 + $0x2b0] sm:$0xff] %v4306
        %4515 = vst [vmem:[%s351 + $0x2b8] sm:$0xff] %v4307
        %4516 = vst [vmem:[%s351 + $0x2c0] sm:$0xff] %v4308
        %4517 = vst [vmem:[%s351 + $0x2c8] sm:$0xff] %v4309
        %4518 = vst [vmem:[%s351 + $0x2d0] sm:$0xff] %v4310
        %4519 = vst [vmem:[%s351 + $0x2d8] sm:$0xff] %v4311
        %4520 = vst [vmem:[%s351 + $0x2e0] sm:$0xff] %v4312
        %4521 = vst [vmem:[%s351 + $0x2e8] sm:$0xff] %v4313
        %4522 = vst [vmem:[%s351 + $0x2f0] sm:$0xff] %v4314
        %4523 = vst [vmem:[%s351 + $0x2f8] sm:$0xff] %v4315
        %4524 = vst [vmem:[%s351 + $0x300] sm:$0xff] %v4316
        %4525 = vst [vmem:[%s351 + $0x308] sm:$0xff] %v4317
        %4526 = vst [vmem:[%s351 + $0x310] sm:$0xff] %v4318
        %4527 = vst [vmem:[%s351 + $0x318] sm:$0xff] %v4319
        %4528 = vst [vmem:[%s351 + $0x320] sm:$0x33] %v4320
        %4529 = vst [vmem:[%s351 + $0x328] sm:$0x33] %v4321
        %4530 = vst [vmem:[%s351 + $0x330] sm:$0x33] %v4322
        %4531 = vst [vmem:[%s351 + $0x338] sm:$0x33] %v4323
        %s4532 = sand.u32 %s173, 1
        %s4533 = sand.u32 %s173, 1
        %s4534 = smul.addr %s4533, 832
        %s4535 = scalar_lea.vmem [#allocation9], %s4534
        // Predicated region
        $region61: #{tpu_custom_call.1} parent=43 // pred_check
          %p4536 = pneg %p183
        $region62: #{tpu_custom_call.1} parent=43 // pred_check_branch
          %4538 = sbr.rel (%p4536) target = $region64
        $region63: #{tpu_custom_call.1} parent=43 // pred_region
          %s4539 = smul.u32 8, %s24
          %s4540 = smul.addr %s4539, 4
          %s4541 = scalar_lea.vmem %s6, %s4540
          // Predicated region
          $region65: #{tpu_custom_call.1} parent=63 // pred_check
            _
          $region66: #{tpu_custom_call.1} parent=63 // pred_check_branch
            %4543 = sbr.rel (0) target = $region68
          $region67: #{tpu_custom_call.1} parent=63 // pred_region
            // Predicated region
            $region69: #{tpu_custom_call.1} parent=67 // pred_check
              _
            $region70: #{tpu_custom_call.1} parent=67 // pred_check_branch
              %4545 = sbr.rel (0) target = $region72
            $region71: #{tpu_custom_call.1} parent=67 // pred_region
              loop: start=0, step=1, limit=1
              $region73: #{tpu_custom_call.1} parent=71 // loop_pre_header
                _
              $region74: #{tpu_custom_call.1} parent=71 // loop_header
                %s4547 = sphi 0, %s4551
                %p4548 = scmp.ge.s32.totalorder %s4547, 1
                %s4552 = sphi %s4535, %s4535
                %s4553 = sphi %s4541, %s4541
              $region75: #{tpu_custom_call.1} parent=71 // loop_header_branch
                %4550 = sbr.rel (%p4548) target = $region79
              $region76: #{tpu_custom_call.1} parent=71 // loop_body
                %v4554 = vld [vmem:[%s4552] sm:$0xff]
                %4555 = vst [vmem:[%s4553] sm:$0xff] %v4554
                %v4556 = vld [vmem:[%s4552 + $0x8] sm:$0xff]
                %4557 = vst [vmem:[%s4553 + $0x8] sm:$0xff] %v4556
                %v4558 = vld [vmem:[%s4552 + $0x10] sm:$0xff]
                %4559 = vst [vmem:[%s4553 + $0x10] sm:$0xff] %v4558
                %v4560 = vld [vmem:[%s4552 + $0x18] sm:$0xff]
                %4561 = vst [vmem:[%s4553 + $0x18] sm:$0xff] %v4560
                %v4562 = vld [vmem:[%s4552 + $0x20] sm:$0xff]
                %4563 = vst [vmem:[%s4553 + $0x40] sm:$0xff] %v4562
                %v4564 = vld [vmem:[%s4552 + $0x28] sm:$0xff]
                %4565 = vst [vmem:[%s4553 + $0x48] sm:$0xff] %v4564
                %v4566 = vld [vmem:[%s4552 + $0x30] sm:$0xff]
                %4567 = vst [vmem:[%s4553 + $0x50] sm:$0xff] %v4566
                %v4568 = vld [vmem:[%s4552 + $0x38] sm:$0xff]
                %4569 = vst [vmem:[%s4553 + $0x58] sm:$0xff] %v4568
                %v4570 = vld [vmem:[%s4552 + $0x40] sm:$0xff]
                %4571 = vst [vmem:[%s4553 + $0x80] sm:$0xff] %v4570
                %v4572 = vld [vmem:[%s4552 + $0x48] sm:$0xff]
                %4573 = vst [vmem:[%s4553 + $0x88] sm:$0xff] %v4572
                %v4574 = vld [vmem:[%s4552 + $0x50] sm:$0xff]
                %4575 = vst [vmem:[%s4553 + $0x90] sm:$0xff] %v4574
                %v4576 = vld [vmem:[%s4552 + $0x58] sm:$0xff]
                %4577 = vst [vmem:[%s4553 + $0x98] sm:$0xff] %v4576
                %v4578 = vld [vmem:[%s4552 + $0x60] sm:$0xff]
                %4579 = vst [vmem:[%s4553 + $0xc0] sm:$0xff] %v4578
                %v4580 = vld [vmem:[%s4552 + $0x68] sm:$0xff]
                %4581 = vst [vmem:[%s4553 + $0xc8] sm:$0xff] %v4580
                %v4582 = vld [vmem:[%s4552 + $0x70] sm:$0xff]
                %4583 = vst [vmem:[%s4553 + $0xd0] sm:$0xff] %v4582
                %v4584 = vld [vmem:[%s4552 + $0x78] sm:$0xff]
                %4585 = vst [vmem:[%s4553 + $0xd8] sm:$0xff] %v4584
                %v4586 = vld [vmem:[%s4552 + $0x80] sm:$0xff]
                %4587 = vst [vmem:[%s4553 + $0x100] sm:$0xff] %v4586
                %v4588 = vld [vmem:[%s4552 + $0x88] sm:$0xff]
                %4589 = vst [vmem:[%s4553 + $0x108] sm:$0xff] %v4588
                %v4590 = vld [vmem:[%s4552 + $0x90] sm:$0xff]
                %4591 = vst [vmem:[%s4553 + $0x110] sm:$0xff] %v4590
                %v4592 = vld [vmem:[%s4552 + $0x98] sm:$0xff]
                %4593 = vst [vmem:[%s4553 + $0x118] sm:$0xff] %v4592
                %v4594 = vld [vmem:[%s4552 + $0xa0] sm:$0xff]
                %4595 = vst [vmem:[%s4553 + $0x140] sm:$0xff] %v4594
                %v4596 = vld [vmem:[%s4552 + $0xa8] sm:$0xff]
                %4597 = vst [vmem:[%s4553 + $0x148] sm:$0xff] %v4596
                %v4598 = vld [vmem:[%s4552 + $0xb0] sm:$0xff]
                %4599 = vst [vmem:[%s4553 + $0x150] sm:$0xff] %v4598
                %v4600 = vld [vmem:[%s4552 + $0xb8] sm:$0xff]
                %4601 = vst [vmem:[%s4553 + $0x158] sm:$0xff] %v4600
                %v4602 = vld [vmem:[%s4552 + $0xc0] sm:$0xff]
                %4603 = vst [vmem:[%s4553 + $0x180] sm:$0xff] %v4602
                %v4604 = vld [vmem:[%s4552 + $0xc8] sm:$0xff]
                %4605 = vst [vmem:[%s4553 + $0x188] sm:$0xff] %v4604
                %v4606 = vld [vmem:[%s4552 + $0xd0] sm:$0xff]
                %4607 = vst [vmem:[%s4553 + $0x190] sm:$0xff] %v4606
                %v4608 = vld [vmem:[%s4552 + $0xd8] sm:$0xff]
                %4609 = vst [vmem:[%s4553 + $0x198] sm:$0xff] %v4608
                %v4610 = vld [vmem:[%s4552 + $0xe0] sm:$0xff]
                %4611 = vst [vmem:[%s4553 + $0x1c0] sm:$0xff] %v4610
                %v4612 = vld [vmem:[%s4552 + $0xe8] sm:$0xff]
                %4613 = vst [vmem:[%s4553 + $0x1c8] sm:$0xff] %v4612
                %v4614 = vld [vmem:[%s4552 + $0xf0] sm:$0xff]
                %4615 = vst [vmem:[%s4553 + $0x1d0] sm:$0xff] %v4614
                %v4616 = vld [vmem:[%s4552 + $0xf8] sm:$0xff]
                %4617 = vst [vmem:[%s4553 + $0x1d8] sm:$0xff] %v4616
                %v4618 = vld [vmem:[%s4552 + $0x100] sm:$0xff]
                %4619 = vst [vmem:[%s4553 + $0x200] sm:$0xff] %v4618
                %v4620 = vld [vmem:[%s4552 + $0x108] sm:$0xff]
                %4621 = vst [vmem:[%s4553 + $0x208] sm:$0xff] %v4620
                %v4622 = vld [vmem:[%s4552 + $0x110] sm:$0xff]
                %4623 = vst [vmem:[%s4553 + $0x210] sm:$0xff] %v4622
                %v4624 = vld [vmem:[%s4552 + $0x118] sm:$0xff]
                %4625 = vst [vmem:[%s4553 + $0x218] sm:$0xff] %v4624
                %v4626 = vld [vmem:[%s4552 + $0x120] sm:$0xff]
                %4627 = vst [vmem:[%s4553 + $0x240] sm:$0xff] %v4626
                %v4628 = vld [vmem:[%s4552 + $0x128] sm:$0xff]
                %4629 = vst [vmem:[%s4553 + $0x248] sm:$0xff] %v4628
                %v4630 = vld [vmem:[%s4552 + $0x130] sm:$0xff]
                %4631 = vst [vmem:[%s4553 + $0x250] sm:$0xff] %v4630
                %v4632 = vld [vmem:[%s4552 + $0x138] sm:$0xff]
                %4633 = vst [vmem:[%s4553 + $0x258] sm:$0xff] %v4632
                %v4634 = vld [vmem:[%s4552 + $0x140] sm:$0xff]
                %4635 = vst [vmem:[%s4553 + $0x280] sm:$0xff] %v4634
                %v4636 = vld [vmem:[%s4552 + $0x148] sm:$0xff]
                %4637 = vst [vmem:[%s4553 + $0x288] sm:$0xff] %v4636
                %v4638 = vld [vmem:[%s4552 + $0x150] sm:$0xff]
                %4639 = vst [vmem:[%s4553 + $0x290] sm:$0xff] %v4638
                %v4640 = vld [vmem:[%s4552 + $0x158] sm:$0xff]
                %4641 = vst [vmem:[%s4553 + $0x298] sm:$0xff] %v4640
                %v4642 = vld [vmem:[%s4552 + $0x160] sm:$0xff]
                %4643 = vst [vmem:[%s4553 + $0x2c0] sm:$0xff] %v4642
                %v4644 = vld [vmem:[%s4552 + $0x168] sm:$0xff]
                %4645 = vst [vmem:[%s4553 + $0x2c8] sm:$0xff] %v4644
                %v4646 = vld [vmem:[%s4552 + $0x170] sm:$0xff]
                %4647 = vst [vmem:[%s4553 + $0x2d0] sm:$0xff] %v4646
                %v4648 = vld [vmem:[%s4552 + $0x178] sm:$0xff]
                %4649 = vst [vmem:[%s4553 + $0x2d8] sm:$0xff] %v4648
                %v4650 = vld [vmem:[%s4552 + $0x180] sm:$0xff]
                %4651 = vst [vmem:[%s4553 + $0x300] sm:$0xff] %v4650
                %v4652 = vld [vmem:[%s4552 + $0x188] sm:$0xff]
                %4653 = vst [vmem:[%s4553 + $0x308] sm:$0xff] %v4652
                %v4654 = vld [vmem:[%s4552 + $0x190] sm:$0xff]
                %4655 = vst [vmem:[%s4553 + $0x310] sm:$0xff] %v4654
                %v4656 = vld [vmem:[%s4552 + $0x198] sm:$0xff]
                %4657 = vst [vmem:[%s4553 + $0x318] sm:$0xff] %v4656
                %v4658 = vld [vmem:[%s4552 + $0x1a0] sm:$0xff]
                %4659 = vst [vmem:[%s4553 + $0x340] sm:$0xff] %v4658
                %v4660 = vld [vmem:[%s4552 + $0x1a8] sm:$0xff]
                %4661 = vst [vmem:[%s4553 + $0x348] sm:$0xff] %v4660
                %v4662 = vld [vmem:[%s4552 + $0x1b0] sm:$0xff]
                %4663 = vst [vmem:[%s4553 + $0x350] sm:$0xff] %v4662
                %v4664 = vld [vmem:[%s4552 + $0x1b8] sm:$0xff]
                %4665 = vst [vmem:[%s4553 + $0x358] sm:$0xff] %v4664
                %v4666 = vld [vmem:[%s4552 + $0x1c0] sm:$0xff]
                %4667 = vst [vmem:[%s4553 + $0x380] sm:$0xff] %v4666
                %v4668 = vld [vmem:[%s4552 + $0x1c8] sm:$0xff]
                %4669 = vst [vmem:[%s4553 + $0x388] sm:$0xff] %v4668
                %v4670 = vld [vmem:[%s4552 + $0x1d0] sm:$0xff]
                %4671 = vst [vmem:[%s4553 + $0x390] sm:$0xff] %v4670
                %v4672 = vld [vmem:[%s4552 + $0x1d8] sm:$0xff]
                %4673 = vst [vmem:[%s4553 + $0x398] sm:$0xff] %v4672
                %v4674 = vld [vmem:[%s4552 + $0x1e0] sm:$0xff]
                %4675 = vst [vmem:[%s4553 + $0x3c0] sm:$0xff] %v4674
                %v4676 = vld [vmem:[%s4552 + $0x1e8] sm:$0xff]
                %4677 = vst [vmem:[%s4553 + $0x3c8] sm:$0xff] %v4676
                %v4678 = vld [vmem:[%s4552 + $0x1f0] sm:$0xff]
                %4679 = vst [vmem:[%s4553 + $0x3d0] sm:$0xff] %v4678
                %v4680 = vld [vmem:[%s4552 + $0x1f8] sm:$0xff]
                %4681 = vst [vmem:[%s4553 + $0x3d8] sm:$0xff] %v4680
                %v4682 = vld [vmem:[%s4552 + $0x200] sm:$0xff]
                %4683 = vst [vmem:[%s4553 + $0x400] sm:$0xff] %v4682
                %v4684 = vld [vmem:[%s4552 + $0x208] sm:$0xff]
                %4685 = vst [vmem:[%s4553 + $0x408] sm:$0xff] %v4684
                %v4686 = vld [vmem:[%s4552 + $0x210] sm:$0xff]
                %4687 = vst [vmem:[%s4553 + $0x410] sm:$0xff] %v4686
                %v4688 = vld [vmem:[%s4552 + $0x218] sm:$0xff]
                %4689 = vst [vmem:[%s4553 + $0x418] sm:$0xff] %v4688
                %v4690 = vld [vmem:[%s4552 + $0x220] sm:$0xff]
                %4691 = vst [vmem:[%s4553 + $0x440] sm:$0xff] %v4690
                %v4692 = vld [vmem:[%s4552 + $0x228] sm:$0xff]
                %4693 = vst [vmem:[%s4553 + $0x448] sm:$0xff] %v4692
                %v4694 = vld [vmem:[%s4552 + $0x230] sm:$0xff]
                %4695 = vst [vmem:[%s4553 + $0x450] sm:$0xff] %v4694
                %v4696 = vld [vmem:[%s4552 + $0x238] sm:$0xff]
                %4697 = vst [vmem:[%s4553 + $0x458] sm:$0xff] %v4696
                %v4698 = vld [vmem:[%s4552 + $0x240] sm:$0xff]
                %4699 = vst [vmem:[%s4553 + $0x480] sm:$0xff] %v4698
                %v4700 = vld [vmem:[%s4552 + $0x248] sm:$0xff]
                %4701 = vst [vmem:[%s4553 + $0x488] sm:$0xff] %v4700
                %v4702 = vld [vmem:[%s4552 + $0x250] sm:$0xff]
                %4703 = vst [vmem:[%s4553 + $0x490] sm:$0xff] %v4702
                %v4704 = vld [vmem:[%s4552 + $0x258] sm:$0xff]
                %4705 = vst [vmem:[%s4553 + $0x498] sm:$0xff] %v4704
                %v4706 = vld [vmem:[%s4552 + $0x260] sm:$0xff]
                %4707 = vst [vmem:[%s4553 + $0x4c0] sm:$0xff] %v4706
                %v4708 = vld [vmem:[%s4552 + $0x268] sm:$0xff]
                %4709 = vst [vmem:[%s4553 + $0x4c8] sm:$0xff] %v4708
                %v4710 = vld [vmem:[%s4552 + $0x270] sm:$0xff]
                %4711 = vst [vmem:[%s4553 + $0x4d0] sm:$0xff] %v4710
                %v4712 = vld [vmem:[%s4552 + $0x278] sm:$0xff]
                %4713 = vst [vmem:[%s4553 + $0x4d8] sm:$0xff] %v4712
                %v4714 = vld [vmem:[%s4552 + $0x280] sm:$0xff]
                %4715 = vst [vmem:[%s4553 + $0x500] sm:$0xff] %v4714
                %v4716 = vld [vmem:[%s4552 + $0x288] sm:$0xff]
                %4717 = vst [vmem:[%s4553 + $0x508] sm:$0xff] %v4716
                %v4718 = vld [vmem:[%s4552 + $0x290] sm:$0xff]
                %4719 = vst [vmem:[%s4553 + $0x510] sm:$0xff] %v4718
                %v4720 = vld [vmem:[%s4552 + $0x298] sm:$0xff]
                %4721 = vst [vmem:[%s4553 + $0x518] sm:$0xff] %v4720
                %v4722 = vld [vmem:[%s4552 + $0x2a0] sm:$0xff]
                %4723 = vst [vmem:[%s4553 + $0x540] sm:$0xff] %v4722
                %v4724 = vld [vmem:[%s4552 + $0x2a8] sm:$0xff]
                %4725 = vst [vmem:[%s4553 + $0x548] sm:$0xff] %v4724
                %v4726 = vld [vmem:[%s4552 + $0x2b0] sm:$0xff]
                %4727 = vst [vmem:[%s4553 + $0x550] sm:$0xff] %v4726
                %v4728 = vld [vmem:[%s4552 + $0x2b8] sm:$0xff]
                %4729 = vst [vmem:[%s4553 + $0x558] sm:$0xff] %v4728
                %v4730 = vld [vmem:[%s4552 + $0x2c0] sm:$0xff]
                %4731 = vst [vmem:[%s4553 + $0x580] sm:$0xff] %v4730
                %v4732 = vld [vmem:[%s4552 + $0x2c8] sm:$0xff]
                %4733 = vst [vmem:[%s4553 + $0x588] sm:$0xff] %v4732
                %v4734 = vld [vmem:[%s4552 + $0x2d0] sm:$0xff]
                %4735 = vst [vmem:[%s4553 + $0x590] sm:$0xff] %v4734
                %v4736 = vld [vmem:[%s4552 + $0x2d8] sm:$0xff]
                %4737 = vst [vmem:[%s4553 + $0x598] sm:$0xff] %v4736
                %v4738 = vld [vmem:[%s4552 + $0x2e0] sm:$0xff]
                %4739 = vst [vmem:[%s4553 + $0x5c0] sm:$0xff] %v4738
                %v4740 = vld [vmem:[%s4552 + $0x2e8] sm:$0xff]
                %4741 = vst [vmem:[%s4553 + $0x5c8] sm:$0xff] %v4740
                %v4742 = vld [vmem:[%s4552 + $0x2f0] sm:$0xff]
                %4743 = vst [vmem:[%s4553 + $0x5d0] sm:$0xff] %v4742
                %v4744 = vld [vmem:[%s4552 + $0x2f8] sm:$0xff]
                %4745 = vst [vmem:[%s4553 + $0x5d8] sm:$0xff] %v4744
                %v4746 = vld [vmem:[%s4552 + $0x300] sm:$0xff]
                %4747 = vst [vmem:[%s4553 + $0x600] sm:$0xff] %v4746
                %v4748 = vld [vmem:[%s4552 + $0x308] sm:$0xff]
                %4749 = vst [vmem:[%s4553 + $0x608] sm:$0xff] %v4748
                %v4750 = vld [vmem:[%s4552 + $0x310] sm:$0xff]
                %4751 = vst [vmem:[%s4553 + $0x610] sm:$0xff] %v4750
                %v4752 = vld [vmem:[%s4552 + $0x318] sm:$0xff]
                %4753 = vst [vmem:[%s4553 + $0x618] sm:$0xff] %v4752
                %v4754 = vld [vmem:[%s4552 + $0x320] sm:$0xff]
                %4755 = vst [vmem:[%s4553 + $0x640] sm:$0xff] %v4754
                %v4756 = vld [vmem:[%s4552 + $0x328] sm:$0xff]
                %4757 = vst [vmem:[%s4553 + $0x648] sm:$0xff] %v4756
                %v4758 = vld [vmem:[%s4552 + $0x330] sm:$0xff]
                %4759 = vst [vmem:[%s4553 + $0x650] sm:$0xff] %v4758
                %v4760 = vld [vmem:[%s4552 + $0x338] sm:$0xff]
                %4761 = vst [vmem:[%s4553 + $0x658] sm:$0xff] %v4760
              $region77: #{tpu_custom_call.1} parent=71 // loop_footer
                %s4551 = sadd.s32 1, %s4547
              $region78: #{tpu_custom_call.1} parent=71 // loop_footer_branch
                %4546 = sbr.rel target = $region74
              $region79: #{tpu_custom_call.1} parent=71 // loop_exit
                _
            $region72: #{tpu_custom_call.1} parent=67 // pred_fallthru
              _
            // Predicated region
            $region80: #{tpu_custom_call.1} parent=67 // pred_check
              _
            $region81: #{tpu_custom_call.1} parent=67 // pred_check_branch
              %4763 = sbr.rel target = $region83
            $region82: #{tpu_custom_call.1} parent=67 // pred_region
              _
            $region83: #{tpu_custom_call.1} parent=67 // pred_fallthru
              _
          $region68: #{tpu_custom_call.1} parent=63 // pred_fallthru
            _
          %4764 = vnop
        $region64: #{tpu_custom_call.1} parent=43 // pred_fallthru
          _
      $region44: #{tpu_custom_call.1} parent=5 // pred_fallthru
        _
      %p4765 = scmp.le.s32.totalorder 2, %s19
      // Predicated region
      $region84: #{tpu_custom_call.1} parent=5 // pred_check
        %p4766 = pneg %p4765
      $region85: #{tpu_custom_call.1} parent=5 // pred_check_branch
        %4768 = sbr.rel (%p4766) target = $region87
      $region86: #{tpu_custom_call.1} parent=5 // pred_region
        %s4769 = ssub.s32 %s19, 2
        // Predicated region
        $region88: #{tpu_custom_call.1} parent=86 // pred_check
          %p4770 = pneg %p189
        $region89: #{tpu_custom_call.1} parent=86 // pred_check_branch
          %4772 = sbr.rel (%p4770) target = $region91
        $region90: #{tpu_custom_call.1} parent=86 // pred_region
          %s4773 = sand.u32 %s174, 1
          %s4774 = sand.u32 %s174, 1
          %s4775 = smul.addr %s4774, 832
          %s4776 = scalar_lea.vmem [#allocation9], %s4775
        $region91: #{tpu_custom_call.1} parent=86 // pred_fallthru
          _
      $region87: #{tpu_custom_call.1} parent=5 // pred_fallthru
        _
    $region6: #{tpu_custom_call.1} parent=1 // loop_footer
      %s23 = sadd.s32 1, %s19
    $region7: #{tpu_custom_call.1} parent=1 // loop_footer_branch
      %18 = sbr.rel target = $region3
    $region8: #{tpu_custom_call.1} parent=1 // loop_exit
      _
    %4777 = vsyncpa [#allocation3], 1
    %s4778 = scalar_lea.sflag [#allocation3], 1
    %4779 = vsyncpa %s4778, 1
    %4780 = vsyncpa [#allocation5], 1
    %s4781 = scalar_lea.sflag [#allocation5], 1
    %4782 = vsyncpa %s4781, 1
    %4783 = vsyncpa [#allocation8], 1
    %s4784 = scalar_lea.sflag [#allocation8], 1
    %4785 = vsyncpa %s4784, 1

</llo_original>
